<compile_context>
chip_gen: v6e
topology: v6e:2x2x1
jax: 0.10.0
libtpu: 0.0.40
codegen_flags: <defaults>
</compile_context>

<pallas_src>
import functools

import jax
import jax.numpy as jnp
from jax.experimental import pallas as pl
from jax.experimental.pallas import tpu as pltpu


def _round_up(x, m):
    return (x + m - 1) // m * m


# -----------------------------------------------------------------------------
# Pallas matmul kernel: out = A @ B (+ bias), f32 VMEM accumulator,
# optional fused column sum / sum-of-squares (for BatchNorm batch stats).
# -----------------------------------------------------------------------------

def _mm_kernel(*refs, has_bias, want_stats):
    it = iter(refs)
    a_ref = next(it)
    b_ref = next(it)
    bias_ref = next(it) if has_bias else None
    o_ref = next(it)
    stats_ref = next(it) if want_stats else None
    acc_ref = next(it)

    k = pl.program_id(2)

    @pl.when(k == 0)
    def _init():
        acc_ref[...] = jnp.zeros_like(acc_ref)

    acc_ref[...] += jnp.dot(a_ref[...], b_ref[...],
                            preferred_element_type=jnp.float32)

    @pl.when(k == pl.num_programs(2) - 1)
    def _finalize():
        bw = o_ref.shape[1]                       # valid output columns (static)
        y = acc_ref[:, :bw]
        if has_bias:
            y = y + bias_ref[...]                 # (tm, bw) + (1, bw)
        o_ref[...] = y.astype(o_ref.dtype)
        if want_stats:
            # Pack col-sum (rows 0..3) and col-sumsq (rows 4..7) into one 8-row tile.
            s = jnp.sum(y, axis=0, keepdims=True)
            q = jnp.sum(y * y, axis=0, keepdims=True)
            ridx = jax.lax.broadcasted_iota(jnp.int32, (8, bw), 0)
            stats_ref[...] = jnp.where(ridx < 4,
                                       jnp.broadcast_to(s, (8, bw)),
                                       jnp.broadcast_to(q, (8, bw)))


def pallas_matmul(a, b, bias=None, *, out_dtype=jnp.bfloat16, want_stats=False):
    """(M, K) @ (K, N) [+ bias] on the MXU (bf16 operands, f32 accumulation).

    Returns (out[M, N], col_sum[N] | None, col_sumsq[N] | None).  Statistics are
    exact over the M real rows: row/K padding is zero and bias is disallowed when
    stats are requested.
    """
    assert not (want_stats and bias is not None), "fused stats + bias unsupported"
    M, K = a.shape
    Kb, N = b.shape
    assert K == Kb

    # ---- tile / padding selection -------------------------------------------
    if M % 256 == 0:
        tm = 256
    elif M % 128 == 0:
        tm = 128
    elif M <= 512:
        tm = _round_up(M, 8)
    else:
        tm = 256
    Mp = _round_up(M, tm)

    Np = _round_up(N, 128)
    tn = 256 if Np % 256 == 0 else 128
    gn = Np // tn
    bw = N if gn == 1 else Np             # width written to HBM / stats width
    obw = bw if gn == 1 else tn           # per-block output width

    if 256 <= K <= 2048 and K % 16 == 0:
        Kp = tk = K                        # full-K block: no HBM pad copy of A
    elif K <= 2048:
        Kp = tk = _round_up(K, 128)        # small K: pad to a safe aligned width
    else:
        Kp = _round_up(K, 128)
        tk = next(t for t in (2048, 1024, 512, 256, 128) if Kp % t == 0)
    gm, gk = Mp // tm, Kp // tk

    # ---- operand staging (bf16; copies only when shapes are not aligned) -----
    a_p = a if a.dtype == jnp.bfloat16 else a.astype(jnp.bfloat16)
    if (Mp, Kp) != (M, K):
        a_p = jnp.pad(a_p, ((0, Mp - M), (0, Kp - K)))
    b_p = jnp.pad(b, ((0, Kp - K), (0, Np - N))).astype(jnp.bfloat16)

    in_specs = [pl.BlockSpec((tm, tk), lambda i, j, k: (i, k)),
                pl.BlockSpec((tk, tn), lambda i, j, k: (k, j))]
    operands = [a_p, b_p]
    if bias is not None:
        bias_p = bias.reshape(1, N).astype(jnp.float32)
        if bw != N:
            bias_p = jnp.pad(bias_p, ((0, 0), (0, bw - N)))
        in_specs.append(pl.BlockSpec((1, obw), lambda i, j, k: (0, j)))
        operands.append(bias_p)

    out_shapes = [jax.ShapeDtypeStruct((Mp, bw), out_dtype)]
    out_specs = [pl.BlockSpec((tm, obw), lambda i, j, k: (i, j))]
    if want_stats:
        out_shapes.append(jax.ShapeDtypeStruct((8 * gm, bw), jnp.float32))
        out_specs.append(pl.BlockSpec((8, obw), lambda i, j, k: (i, j)))

    results = pl.pallas_call(
        functools.partial(_mm_kernel, has_bias=bias is not None,
                          want_stats=want_stats),
        out_shape=tuple(out_shapes),
        grid=(gm, gn, gk),
        in_specs=in_specs,
        out_specs=tuple(out_specs),
        scratch_shapes=[pltpu.VMEM((tm, tn), jnp.float32)],
        compiler_params=pltpu.CompilerParams(
            dimension_semantics=("parallel", "parallel", "arbitrary"),
            vmem_limit_bytes=32 * 1024 * 1024),
    )(*operands)

    if want_stats:
        out_p, st = results
        st = st.reshape(gm, 8, bw)
        col_sum = st[:, 0, :].sum(axis=0)[:N]
        col_sq = st[:, 4, :].sum(axis=0)[:N]
    else:
        (out_p,) = results
        col_sum = col_sq = None
    out = out_p[:M, :N] if (Mp, bw) != (M, N) else out_p
    return out, col_sum, col_sq


# -----------------------------------------------------------------------------
# Fused BN affine (+ residual) (+ ReLU) elementwise kernels (lane-dense blocks)
# -----------------------------------------------------------------------------

def _bn_act_kernel(x_ref, s_ref, b_ref, o_ref, *, relu):
    y = x_ref[...].astype(jnp.float32) * s_ref[...] + b_ref[...]
    if relu:
        y = jnp.maximum(y, 0.0)
    o_ref[...] = y.astype(o_ref.dtype)


def _bn_add_relu_kernel(x_ref, s_ref, b_ref, r_ref, o_ref):
    y = (x_ref[...].astype(jnp.float32) * s_ref[...] + b_ref[...]
         + r_ref[...].astype(jnp.float32))
    o_ref[...] = jnp.maximum(y, 0.0).astype(o_ref.dtype)


def _pick_rows_tile(rows, width, elem_bytes=2):
    """Row tile giving roughly 0.5-4 MiB blocks (multiple-of-8 rows)."""
    if rows <= 8192 and rows * width * elem_bytes <= 4 * 1024 * 1024:
        rp = _round_up(rows, 8)
        return rp, rp                                     # single block
    t = max(8, ((1024 * 1024) // (width * elem_bytes)) // 8 * 8)
    return t, _round_up(rows, t)


def _bn_elementwise(x, scale, bias, res, relu):
    """y = x*scale + bias [+ res]; optional ReLU.  bf16 in/out, f32 math.

    When C divides 128 the contiguous (M, C) buffer is viewed as (M*C/128, 128)
    and scale/bias are tiled, so every store is full-lane instead of a masked
    partial store."""
    M, C = x.shape
    if C % 128 != 0 and 128 % C == 0 and (M * C) % 128 == 0:
        rep = 128 // C
        rows, width = (M * C) // 128, 128
        xd = x.reshape(rows, width)
        rd = None if res is None else res.reshape(rows, width)
        sd = jnp.tile(scale.astype(jnp.float32), rep).reshape(1, width)
        bd = jnp.tile(bias.astype(jnp.float32), rep).reshape(1, width)
    else:
        rows, width = M, C
        xd, rd = x, res
        sd = scale.reshape(1, C).astype(jnp.float32)
        bd = bias.reshape(1, C).astype(jnp.float32)

    tr, rp = _pick_rows_tile(rows, width)
    if rp != rows:
        xd = jnp.pad(xd, ((0, rp - rows), (0, 0)))
        if rd is not None:
            rd = jnp.pad(rd, ((0, rp - rows), (0, 0)))

    row_spec = pl.BlockSpec((tr, width), lambda i: (i, 0))
    vec_spec = pl.BlockSpec((1, width), lambda i: (0, 0))
    cparams = pltpu.CompilerParams(dimension_semantics=("parallel",),
                                   vmem_limit_bytes=32 * 1024 * 1024)
    if rd is None:
        out = pl.pallas_call(
            functools.partial(_bn_act_kernel, relu=relu),
            out_shape=jax.ShapeDtypeStruct((rp, width), jnp.bfloat16),
            grid=(rp // tr,),
            in_specs=[row_spec, vec_spec, vec_spec],
            out_specs=row_spec,
            compiler_params=cparams,
        )(xd, sd, bd)
    else:
        out = pl.pallas_call(
            _bn_add_relu_kernel,
            out_shape=jax.ShapeDtypeStruct((rp, width), jnp.bfloat16),
            grid=(rp // tr,),
            in_specs=[row_spec, vec_spec, vec_spec, row_spec],
            out_specs=row_spec,
            compiler_params=cparams,
        )(xd, sd, bd, rd)
    return out[:rows].reshape(M, C)


# -----------------------------------------------------------------------------
# Glue: im2col (bf16, XLA data movement) + conv/BN composition
# -----------------------------------------------------------------------------

def _im2col(x_nhwc, kh, kw, stride, pad):
    N, H, W, C = x_nhwc.shape
    Ho = (H + 2 * pad - kh) // stride + 1
    Wo = (W + 2 * pad - kw) // stride + 1
    if kh == 1 and kw == 1 and pad == 0:
        patches = x_nhwc[:, ::stride, ::stride, :]
        return patches.reshape(N * Ho * Wo, C), (N, Ho, Wo)
    xp = jnp.pad(x_nhwc, ((0, 0), (pad, pad), (pad, pad), (0, 0)))
    cols = []
    for i in range(kh):                       # kh, kw, stride are static ints
        for j in range(kw):
            cols.append(xp[:, i:i + stride * Ho:stride,
                           j:j + stride * Wo:stride, :])
    patches = jnp.stack(cols, axis=3)          # (N, Ho, Wo, kh*kw, C) bf16
    return patches.reshape(N * Ho * Wo, kh * kw * C), (N, Ho, Wo)


def _bn_fold(col_sum, col_sq, count, gamma, beta, eps=1e-5):
    mean = col_sum / count
    # NOTE: E[x^2]-E[x]^2 can cancel; clamp at 0 (eps keeps rsqrt finite).
    var = jnp.maximum(col_sq / count - mean * mean, 0.0)
    scale = gamma * jax.lax.rsqrt(var + eps)
    bias = beta - mean * scale
    return scale, bias


def conv_bn(x_nhwc, w_oihw, gamma, beta, *, stride, pad, relu, residual=None):
    """conv (MXU matmul w/ fused batch stats) -> BN -> [+res] -> [ReLU]; bf16."""
    Cout, Cin, kh, kw = w_oihw.shape
    patches, (N, Ho, Wo) = _im2col(x_nhwc, kh, kw, stride, pad)
    w_mat = jnp.transpose(w_oihw, (2, 3, 1, 0)).reshape(kh * kw * Cin, Cout)
    out, csum, csq = pallas_matmul(patches, w_mat, want_stats=True,
                                   out_dtype=jnp.bfloat16)
    scale, bias = _bn_fold(csum, csq, patches.shape[0], gamma, beta)
    res = None if residual is None else residual.reshape(-1, Cout)
    y = _bn_elementwise(out, scale, bias, res,
                        relu=True if residual is not None else relu)
    return y.reshape(N, Ho, Wo, Cout)


# -----------------------------------------------------------------------------
# Model definition (parameters + static config + forward)
# -----------------------------------------------------------------------------

def _kaiming_conv(key, cout, cin, kh, kw):
    fan_out = cout * kh * kw
    std = (2.0 / fan_out) ** 0.5
    return jax.random.normal(key, (cout, cin, kh, kw), jnp.float32) * std


def make_basic_block(key, in_planes, planes, stride):
    k1, k2, k3 = jax.random.split(key, 3)
    has_proj = (stride != 1) or (in_planes != planes)
    p = {
        "conv1_w": _kaiming_conv(k1, planes, in_planes, 3, 3),
        "bn1_g": jnp.ones((planes,), jnp.float32),
        "bn1_b": jnp.zeros((planes,), jnp.float32),
        "conv2_w": _kaiming_conv(k2, planes, planes, 3, 3),
        "bn2_g": jnp.ones((planes,), jnp.float32),
        "bn2_b": jnp.zeros((planes,), jnp.float32),
    }
    if has_proj:
        p["sc_w"] = _kaiming_conv(k3, planes, in_planes, 1, 1)
        p["sc_g"] = jnp.ones((planes,), jnp.float32)
        p["sc_b"] = jnp.zeros((planes,), jnp.float32)
    return p, (stride, has_proj)


def make_resnet(key, in_planes, num_blocks, num_classes, flat_features):
    keys = jax.random.split(key, 2 + sum(num_blocks))
    params = {
        "conv1_w": _kaiming_conv(keys[0], in_planes, 3, 3, 3),
        "bn1_g": jnp.ones((in_planes,), jnp.float32),
        "bn1_b": jnp.zeros((in_planes,), jnp.float32),
    }
    config = []
    cur = in_planes
    ki = 1
    layer_planes = [in_planes, in_planes * 2, in_planes * 4]
    layer_strides = [1, 2, 2]
    for li, (planes, nb, st) in enumerate(
            zip(layer_planes, num_blocks, layer_strides), start=1):
        strides = [st] + [1] * (nb - 1)
        blocks, bcfg = [], []
        for s in strides:
            bp, cfg = make_basic_block(keys[ki], cur, planes, s)
            ki += 1
            blocks.append(bp)
            bcfg.append(cfg)
            cur = planes
        params[f"layer{li}"] = blocks
        config.append(tuple(bcfg))
    params["lin_w"] = jax.random.normal(
        keys[ki], (flat_features, num_classes), jnp.float32) * 0.001
    params["lin_b"] = jnp.zeros((num_classes,), jnp.float32)
    return params, tuple(config)


def basic_block_forward(x_nhwc, p, stride, has_proj):
    out1 = conv_bn(x_nhwc, p["conv1_w"], p["bn1_g"], p["bn1_b"],
                   stride=stride, pad=1, relu=True)
    if has_proj:
        sc = conv_bn(x_nhwc, p["sc_w"], p["sc_g"], p["sc_b"],
                     stride=stride, pad=0, relu=False)
    else:
        sc = x_nhwc
    return conv_bn(out1, p["conv2_w"], p["bn2_g"], p["bn2_b"],
                   stride=1, pad=1, relu=True, residual=sc)


def resnet_forward(config, params, x_nchw):
    # Layout: NCHW (PyTorch) -> NHWC once; activations stay bf16 end-to-end.
    x = jnp.transpose(x_nchw, (0, 2, 3, 1)).astype(jnp.bfloat16)

    out = conv_bn(x, params["conv1_w"], params["bn1_g"], params["bn1_b"],
                  stride=1, pad=1, relu=True)
    for li, layer_cfg in enumerate(config, start=1):
        for bp, (stride, has_proj) in zip(params[f"layer{li}"], layer_cfg):
            out = basic_block_forward(out, bp, stride, has_proj)

    # F.avg_pool2d(out, 4) + view(N, -1) (NCHW flatten order) + Linear.
    # TODO(synk): the 4x4 average pool is a tiny XLA reshape-mean, not a Pallas
    #             kernel; the Linear itself runs on the Pallas MXU matmul.
    N, H, W, C = out.shape
    assert H % 4 == 0 and W % 4 == 0
    OH, OW = H // 4, W // 4
    pooled = out.reshape(N, OH, 4, OW, 4, C).astype(jnp.float32).mean(axis=(2, 4))
    flat = jnp.transpose(pooled, (0, 3, 1, 2)).reshape(N, C * OH * OW)
    logits, _, _ = pallas_matmul(flat.astype(jnp.bfloat16), params["lin_w"],
                                 bias=params["lin_b"], out_dtype=jnp.float32,
                                 want_stats=False)
    return logits


# -----------------------------------------------------------------------------
# Demo
# -----------------------------------------------------------------------------

if __name__ == "__main__":
    key = jax.random.PRNGKey(0)
    kx, kp = jax.random.split(key)

    # Small shapes: batch=2, 3-channel 16x16 images, in_planes=4, one block/layer.
    N, Cin, Himg, Wimg = 2, 3, 16, 16
    in_planes = 4
    num_blocks = [1, 1, 1]
    num_classes = 2

    # Final feature map: 4*in_planes channels at (Himg//4, Wimg//4) spatial,
    # avg_pool2d(4) reduces it to 1x1 -> flat_features = 4*in_planes.
    flat_features = (4 * in_planes) * ((Himg // 4) // 4) * ((Wimg // 4) // 4)

    params, config = make_resnet(kp, in_planes, num_blocks, num_classes,
                                 flat_features)
    x = jax.random.normal(kx, (N, Cin, Himg, Wimg), jnp.float32)

    fwd = jax.jit(functools.partial(resnet_forward, config))
    logits = fwd(params, x)
    jax.block_until_ready(logits)
    assert logits.shape == (N, num_classes)
    print("KERNEL_OK")
</pallas_src>

<mosaic_0001>
module attributes {stable_mosaic.version = 11 : i64} {
  func.func @_mm_kernel(%arg0: i32, %arg1: i32, %arg2: i32, %arg3: memref<256x128xbf16, #tpu.memory_space<vmem>>, %arg4: memref<128x128xbf16, #tpu.memory_space<vmem>>, %arg5: memref<256x4xbf16, #tpu.memory_space<vmem>>, %arg6: memref<8x4xf32, #tpu.memory_space<vmem>>, %arg7: memref<256x128xf32, #tpu.memory_space<vmem>>) attributes {dimension_semantics = [#tpu.dimension_semantics<parallel>, #tpu.dimension_semantics<parallel>, #tpu.dimension_semantics<arbitrary>], iteration_bounds = array<i64: 2, 1, 1>, scalar_prefetch = 0 : i64, scratch_operands = 1 : i64, tpu.core_type = #tpu.core_type<tc>, window_params = [{transform_indices = @transform_0, window_bounds = array<i64: 256, 128>}, {transform_indices = @transform_1, window_bounds = array<i64: 128, 128>}, {transform_indices = @transform_2, window_bounds = array<i64: 256, 4>}, {transform_indices = @transform_3, window_bounds = array<i64: 8, 4>}]} {
    %c0_i32 = arith.constant 0 : i32
    %0 = arith.cmpi eq, %arg2, %c0_i32 : i32
    %1 = arith.extui %0 : i1 to i32
    %c0_i32_0 = arith.constant 0 : i32
    %2 = arith.cmpi ne, %1, %c0_i32_0 : i32
    scf.if %2 {
      %cst_10 = arith.constant 0.000000e+00 : f32
      %12 = vector.broadcast %cst_10 : f32 to vector<256x128xf32>
      %c0_11 = arith.constant 0 : index
      %c0_12 = arith.constant 0 : index
      %13 = vector.load %arg7[%c0_11, %c0_12] : memref<256x128xf32, #tpu.memory_space<vmem>>, vector<256x128xf32>
      tpu.vector_store %arg7[%c0_11, %c0_12], %12 {strides = array<i32>} : memref<256x128xf32, #tpu.memory_space<vmem>>, vector<256x128xf32>,
    } else {
    }
    %c0 = arith.constant 0 : index
    %c0_1 = arith.constant 0 : index
    %3 = vector.load %arg7[%c0, %c0_1] : memref<256x128xf32, #tpu.memory_space<vmem>>, vector<256x128xf32>
    %c0_2 = arith.constant 0 : index
    %c0_3 = arith.constant 0 : index
    %4 = vector.load %arg3[%c0_2, %c0_3] : memref<256x128xbf16, #tpu.memory_space<vmem>>, vector<256x128xbf16>
    %c0_4 = arith.constant 0 : index
    %c0_5 = arith.constant 0 : index
    %5 = vector.load %arg4[%c0_4, %c0_5] : memref<128x128xbf16, #tpu.memory_space<vmem>>, vector<128x128xbf16>
    %cst = arith.constant dense<0.000000e+00> : vector<256x128xf32>
    %6 = tpu.matmul %4, %5, %cst {dimension_numbers = #tpu.dot_dimension_numbers<[1], [0], [0], [1], [0, 0, 1, 1], [], []>} : vector<256x128xbf16>, vector<128x128xbf16>, vector<256x128xf32> -> vector<256x128xf32>
    %7 = arith.addf %3, %6 : vector<256x128xf32>
    %c0_6 = arith.constant 0 : index
    %c0_7 = arith.constant 0 : index
    %8 = vector.load %arg7[%c0_6, %c0_7] : memref<256x128xf32, #tpu.memory_space<vmem>>, vector<256x128xf32>
    tpu.vector_store %arg7[%c0_6, %c0_7], %7 {strides = array<i32>} : memref<256x128xf32, #tpu.memory_space<vmem>>, vector<256x128xf32>,
    %c0_i32_8 = arith.constant 0 : i32
    %9 = arith.cmpi eq, %arg2, %c0_i32_8 : i32
    %10 = arith.extui %9 : i1 to i32
    %c0_i32_9 = arith.constant 0 : i32
    %11 = arith.cmpi ne, %10, %c0_i32_9 : i32
    scf.if %11 {
      %c0_10 = arith.constant 0 : index
      %c0_11 = arith.constant 0 : index
      %12 = vector.load %arg7[%c0_10, %c0_11] : memref<256x128xf32, #tpu.memory_space<vmem>>, vector<256x4xf32>
      %13 = arith.truncf %12 : vector<256x4xf32> to vector<256x4xbf16>
      %c0_12 = arith.constant 0 : index
      %c0_13 = arith.constant 0 : index
      %14 = vector.load %arg5[%c0_12, %c0_13] : memref<256x4xbf16, #tpu.memory_space<vmem>>, vector<256x4xbf16>
      tpu.vector_store %arg5[%c0_12, %c0_13], %13 {strides = array<i32>} : memref<256x4xbf16, #tpu.memory_space<vmem>>, vector<256x4xbf16>,
      %cst_14 = arith.constant dense<0.000000e+00> : vector<4xf32>
      %15 = vector.multi_reduction <add>, %12, %cst_14 [0] : vector<256x4xf32> to vector<4xf32>
      %16 = vector.shape_cast %15 : vector<4xf32> to vector<1x4xf32>
      %17 = arith.mulf %12, %12 : vector<256x4xf32>
      %cst_15 = arith.constant dense<0.000000e+00> : vector<4xf32>
      %18 = vector.multi_reduction <add>, %17, %cst_15 [0] : vector<256x4xf32> to vector<4xf32>
      %19 = vector.shape_cast %18 : vector<4xf32> to vector<1x4xf32>
      %20 = tpu.iota {dimensions = array<i32: 0>} : vector<8x4xi32>
      %c4_i32 = arith.constant 4 : i32
      %21 = vector.broadcast %c4_i32 : i32 to vector<8x4xi32>
      %22 = arith.cmpi slt, %20, %21 : vector<8x4xi32>
      %23 = vector.shape_cast %16 : vector<1x4xf32> to vector<1x4xf32>
      %24 = vector.broadcast %23 : vector<1x4xf32> to vector<8x4xf32>
      %25 = vector.shape_cast %19 : vector<1x4xf32> to vector<1x4xf32>
      %26 = vector.broadcast %25 : vector<1x4xf32> to vector<8x4xf32>
      %27 = arith.select %22, %24, %26 : vector<8x4xi1>, vector<8x4xf32>
      %c0_16 = arith.constant 0 : index
      %c0_17 = arith.constant 0 : index
      %28 = vector.load %arg6[%c0_16, %c0_17] : memref<8x4xf32, #tpu.memory_space<vmem>>, vector<8x4xf32>
      tpu.vector_store %arg6[%c0_16, %c0_17], %27 {strides = array<i32>} : memref<8x4xf32, #tpu.memory_space<vmem>>, vector<8x4xf32>,
    } else {
    }
    return
  }
  func.func @transform_0(%arg0: i32, %arg1: i32, %arg2: i32) -> (i32, i32) {
    %c0_i32 = arith.constant 0 : i32
    return %arg0, %arg2 : i32, i32
  }
  func.func @transform_1(%arg0: i32, %arg1: i32, %arg2: i32) -> (i32, i32) {
    %c0_i32 = arith.constant 0 : i32
    return %arg2, %arg1 : i32, i32
  }
  func.func @transform_2(%arg0: i32, %arg1: i32, %arg2: i32) -> (i32, i32) {
    %c0_i32 = arith.constant 0 : i32
    return %arg0, %arg1 : i32, i32
  }
  func.func @transform_3(%arg0: i32, %arg1: i32, %arg2: i32) -> (i32, i32) {
    %c0_i32 = arith.constant 0 : i32
    return %arg0, %arg1 : i32, i32
  }
}

module attributes {stable_mosaic.version = 11 : i64} {
  func.func @_bn_act_kernel(%arg0: i32, %arg1: memref<16x128xbf16, #tpu.memory_space<vmem>>, %arg2: memref<1x128xf32, #tpu.memory_space<vmem>>, %arg3: memref<1x128xf32, #tpu.memory_space<vmem>>, %arg4: memref<16x128xbf16, #tpu.memory_space<vmem>>) attributes {dimension_semantics = [#tpu.dimension_semantics<parallel>], iteration_bounds = array<i64: 1>, scalar_prefetch = 0 : i64, scratch_operands = 0 : i64, tpu.core_type = #tpu.core_type<tc>, window_params = [{transform_indices = @transform_0, window_bounds = array<i64: 16, 128>}, {pipeline_mode = #tpu.pipeline_mode<synchronous>, transform_indices = @transform_1, window_bounds = array<i64: 1, 128>}, {pipeline_mode = #tpu.pipeline_mode<synchronous>, transform_indices = @transform_2, window_bounds = array<i64: 1, 128>}, {transform_indices = @transform_3, window_bounds = array<i64: 16, 128>}]} {
    %c0 = arith.constant 0 : index
    %c0_0 = arith.constant 0 : index
    %0 = vector.load %arg1[%c0, %c0_0] : memref<16x128xbf16, #tpu.memory_space<vmem>>, vector<16x128xbf16>
    %1 = arith.extf %0 : vector<16x128xbf16> to vector<16x128xf32>
    %c0_1 = arith.constant 0 : index
    %c0_2 = arith.constant 0 : index
    %2 = vector.load %arg2[%c0_1, %c0_2] : memref<1x128xf32, #tpu.memory_space<vmem>>, vector<1x128xf32>
    %3 = vector.broadcast %2 : vector<1x128xf32> to vector<16x128xf32>
    %4 = arith.mulf %1, %3 : vector<16x128xf32>
    %c0_3 = arith.constant 0 : index
    %c0_4 = arith.constant 0 : index
    %5 = vector.load %arg3[%c0_3, %c0_4] : memref<1x128xf32, #tpu.memory_space<vmem>>, vector<1x128xf32>
    %6 = vector.broadcast %5 : vector<1x128xf32> to vector<16x128xf32>
    %7 = arith.addf %4, %6 : vector<16x128xf32>
    %cst = arith.constant 0.000000e+00 : f32
    %8 = vector.broadcast %cst : f32 to vector<16x128xf32>
    %9 = arith.maximumf %7, %8 : vector<16x128xf32>
    %10 = arith.truncf %9 : vector<16x128xf32> to vector<16x128xbf16>
    %c0_5 = arith.constant 0 : index
    %c0_6 = arith.constant 0 : index
    %11 = vector.load %arg4[%c0_5, %c0_6] : memref<16x128xbf16, #tpu.memory_space<vmem>>, vector<16x128xbf16>
    tpu.vector_store %arg4[%c0_5, %c0_6], %10 {strides = array<i32>} : memref<16x128xbf16, #tpu.memory_space<vmem>>, vector<16x128xbf16>,
    return
  }
  func.func @transform_0(%arg0: i32) -> (i32, i32) {
    %c0_i32 = arith.constant 0 : i32
    %c0_i32_0 = arith.constant 0 : i32
    return %arg0, %c0_i32 : i32, i32
  }
  func.func @transform_1(%arg0: i32) -> (i32, i32) {
    %c0_i32 = arith.constant 0 : i32
    %c0_i32_0 = arith.constant 0 : i32
    %c0_i32_1 = arith.constant 0 : i32
    return %c0_i32, %c0_i32_0 : i32, i32
  }
  func.func @transform_2(%arg0: i32) -> (i32, i32) {
    %c0_i32 = arith.constant 0 : i32
    %c0_i32_0 = arith.constant 0 : i32
    %c0_i32_1 = arith.constant 0 : i32
    return %c0_i32, %c0_i32_0 : i32, i32
  }
  func.func @transform_3(%arg0: i32) -> (i32, i32) {
    %c0_i32 = arith.constant 0 : i32
    %c0_i32_0 = arith.constant 0 : i32
    return %arg0, %c0_i32 : i32, i32
  }
}

module attributes {stable_mosaic.version = 11 : i64} {
  func.func @_bn_add_relu_kernel(%arg0: i32, %arg1: memref<16x128xbf16, #tpu.memory_space<vmem>>, %arg2: memref<1x128xf32, #tpu.memory_space<vmem>>, %arg3: memref<1x128xf32, #tpu.memory_space<vmem>>, %arg4: memref<16x128xbf16, #tpu.memory_space<vmem>>, %arg5: memref<16x128xbf16, #tpu.memory_space<vmem>>) attributes {dimension_semantics = [#tpu.dimension_semantics<parallel>], iteration_bounds = array<i64: 1>, scalar_prefetch = 0 : i64, scratch_operands = 0 : i64, tpu.core_type = #tpu.core_type<tc>, window_params = [{transform_indices = @transform_0, window_bounds = array<i64: 16, 128>}, {pipeline_mode = #tpu.pipeline_mode<synchronous>, transform_indices = @transform_1, window_bounds = array<i64: 1, 128>}, {pipeline_mode = #tpu.pipeline_mode<synchronous>, transform_indices = @transform_2, window_bounds = array<i64: 1, 128>}, {transform_indices = @transform_3, window_bounds = array<i64: 16, 128>}, {transform_indices = @transform_4, window_bounds = array<i64: 16, 128>}]} {
    %c0 = arith.constant 0 : index
    %c0_0 = arith.constant 0 : index
    %0 = vector.load %arg1[%c0, %c0_0] : memref<16x128xbf16, #tpu.memory_space<vmem>>, vector<16x128xbf16>
    %1 = arith.extf %0 : vector<16x128xbf16> to vector<16x128xf32>
    %c0_1 = arith.constant 0 : index
    %c0_2 = arith.constant 0 : index
    %2 = vector.load %arg2[%c0_1, %c0_2] : memref<1x128xf32, #tpu.memory_space<vmem>>, vector<1x128xf32>
    %3 = vector.broadcast %2 : vector<1x128xf32> to vector<16x128xf32>
    %4 = arith.mulf %1, %3 : vector<16x128xf32>
    %c0_3 = arith.constant 0 : index
    %c0_4 = arith.constant 0 : index
    %5 = vector.load %arg3[%c0_3, %c0_4] : memref<1x128xf32, #tpu.memory_space<vmem>>, vector<1x128xf32>
    %6 = vector.broadcast %5 : vector<1x128xf32> to vector<16x128xf32>
    %7 = arith.addf %4, %6 : vector<16x128xf32>
    %c0_5 = arith.constant 0 : index
    %c0_6 = arith.constant 0 : index
    %8 = vector.load %arg4[%c0_5, %c0_6] : memref<16x128xbf16, #tpu.memory_space<vmem>>, vector<16x128xbf16>
    %9 = arith.extf %8 : vector<16x128xbf16> to vector<16x128xf32>
    %10 = arith.addf %7, %9 : vector<16x128xf32>
    %cst = arith.constant 0.000000e+00 : f32
    %11 = vector.broadcast %cst : f32 to vector<16x128xf32>
    %12 = arith.maximumf %10, %11 : vector<16x128xf32>
    %13 = arith.truncf %12 : vector<16x128xf32> to vector<16x128xbf16>
    %c0_7 = arith.constant 0 : index
    %c0_8 = arith.constant 0 : index
    %14 = vector.load %arg5[%c0_7, %c0_8] : memref<16x128xbf16, #tpu.memory_space<vmem>>, vector<16x128xbf16>
    tpu.vector_store %arg5[%c0_7, %c0_8], %13 {strides = array<i32>} : memref<16x128xbf16, #tpu.memory_space<vmem>>, vector<16x128xbf16>,
    return
  }
  func.func @transform_0(%arg0: i32) -> (i32, i32) {
    %c0_i32 = arith.constant 0 : i32
    %c0_i32_0 = arith.constant 0 : i32
    return %arg0, %c0_i32 : i32, i32
  }
  func.func @transform_1(%arg0: i32) -> (i32, i32) {
    %c0_i32 = arith.constant 0 : i32
    %c0_i32_0 = arith.constant 0 : i32
    %c0_i32_1 = arith.constant 0 : i32
    return %c0_i32, %c0_i32_0 : i32, i32
  }
  func.func @transform_2(%arg0: i32) -> (i32, i32) {
    %c0_i32 = arith.constant 0 : i32
    %c0_i32_0 = arith.constant 0 : i32
    %c0_i32_1 = arith.constant 0 : i32
    return %c0_i32, %c0_i32_0 : i32, i32
  }
  func.func @transform_3(%arg0: i32) -> (i32, i32) {
    %c0_i32 = arith.constant 0 : i32
    %c0_i32_0 = arith.constant 0 : i32
    return %arg0, %c0_i32 : i32, i32
  }
  func.func @transform_4(%arg0: i32) -> (i32, i32) {
    %c0_i32 = arith.constant 0 : i32
    %c0_i32_0 = arith.constant 0 : i32
    return %arg0, %c0_i32 : i32, i32
  }
}

module attributes {stable_mosaic.version = 11 : i64} {
  func.func @_mm_kernel(%arg0: i32, %arg1: i32, %arg2: i32, %arg3: memref<128x128xbf16, #tpu.memory_space<vmem>>, %arg4: memref<128x128xbf16, #tpu.memory_space<vmem>>, %arg5: memref<128x8xbf16, #tpu.memory_space<vmem>>, %arg6: memref<8x8xf32, #tpu.memory_space<vmem>>, %arg7: memref<128x128xf32, #tpu.memory_space<vmem>>) attributes {dimension_semantics = [#tpu.dimension_semantics<parallel>, #tpu.dimension_semantics<parallel>, #tpu.dimension_semantics<arbitrary>], iteration_bounds = array<i64: 1, 1, 1>, scalar_prefetch = 0 : i64, scratch_operands = 1 : i64, tpu.core_type = #tpu.core_type<tc>, window_params = [{transform_indices = @transform_0, window_bounds = array<i64: 128, 128>}, {transform_indices = @transform_1, window_bounds = array<i64: 128, 128>}, {transform_indices = @transform_2, window_bounds = array<i64: 128, 8>}, {transform_indices = @transform_3, window_bounds = array<i64: 8, 8>}]} {
    %c0_i32 = arith.constant 0 : i32
    %0 = arith.cmpi eq, %arg2, %c0_i32 : i32
    %1 = arith.extui %0 : i1 to i32
    %c0_i32_0 = arith.constant 0 : i32
    %2 = arith.cmpi ne, %1, %c0_i32_0 : i32
    scf.if %2 {
      %cst_10 = arith.constant 0.000000e+00 : f32
      %12 = vector.broadcast %cst_10 : f32 to vector<128x128xf32>
      %c0_11 = arith.constant 0 : index
      %c0_12 = arith.constant 0 : index
      %13 = vector.load %arg7[%c0_11, %c0_12] : memref<128x128xf32, #tpu.memory_space<vmem>>, vector<128x128xf32>
      tpu.vector_store %arg7[%c0_11, %c0_12], %12 {strides = array<i32>} : memref<128x128xf32, #tpu.memory_space<vmem>>, vector<128x128xf32>,
    } else {
    }
    %c0 = arith.constant 0 : index
    %c0_1 = arith.constant 0 : index
    %3 = vector.load %arg7[%c0, %c0_1] : memref<128x128xf32, #tpu.memory_space<vmem>>, vector<128x128xf32>
    %c0_2 = arith.constant 0 : index
    %c0_3 = arith.constant 0 : index
    %4 = vector.load %arg3[%c0_2, %c0_3] : memref<128x128xbf16, #tpu.memory_space<vmem>>, vector<128x128xbf16>
    %c0_4 = arith.constant 0 : index
    %c0_5 = arith.constant 0 : index
    %5 = vector.load %arg4[%c0_4, %c0_5] : memref<128x128xbf16, #tpu.memory_space<vmem>>, vector<128x128xbf16>
    %cst = arith.constant dense<0.000000e+00> : vector<128x128xf32>
    %6 = tpu.matmul %4, %5, %cst {dimension_numbers = #tpu.dot_dimension_numbers<[1], [0], [0], [1], [0, 0, 1, 1], [], []>} : vector<128x128xbf16>, vector<128x128xbf16>, vector<128x128xf32> -> vector<128x128xf32>
    %7 = arith.addf %3, %6 : vector<128x128xf32>
    %c0_6 = arith.constant 0 : index
    %c0_7 = arith.constant 0 : index
    %8 = vector.load %arg7[%c0_6, %c0_7] : memref<128x128xf32, #tpu.memory_space<vmem>>, vector<128x128xf32>
    tpu.vector_store %arg7[%c0_6, %c0_7], %7 {strides = array<i32>} : memref<128x128xf32, #tpu.memory_space<vmem>>, vector<128x128xf32>,
    %c0_i32_8 = arith.constant 0 : i32
    %9 = arith.cmpi eq, %arg2, %c0_i32_8 : i32
    %10 = arith.extui %9 : i1 to i32
    %c0_i32_9 = arith.constant 0 : i32
    %11 = arith.cmpi ne, %10, %c0_i32_9 : i32
    scf.if %11 {
      %c0_10 = arith.constant 0 : index
      %c0_11 = arith.constant 0 : index
      %12 = vector.load %arg7[%c0_10, %c0_11] : memref<128x128xf32, #tpu.memory_space<vmem>>, vector<128x8xf32>
      %13 = arith.truncf %12 : vector<128x8xf32> to vector<128x8xbf16>
      %c0_12 = arith.constant 0 : index
      %c0_13 = arith.constant 0 : index
      %14 = vector.load %arg5[%c0_12, %c0_13] : memref<128x8xbf16, #tpu.memory_space<vmem>>, vector<128x8xbf16>
      tpu.vector_store %arg5[%c0_12, %c0_13], %13 {strides = array<i32>} : memref<128x8xbf16, #tpu.memory_space<vmem>>, vector<128x8xbf16>,
      %cst_14 = arith.constant dense<0.000000e+00> : vector<8xf32>
      %15 = vector.multi_reduction <add>, %12, %cst_14 [0] : vector<128x8xf32> to vector<8xf32>
      %16 = vector.shape_cast %15 : vector<8xf32> to vector<1x8xf32>
      %17 = arith.mulf %12, %12 : vector<128x8xf32>
      %cst_15 = arith.constant dense<0.000000e+00> : vector<8xf32>
      %18 = vector.multi_reduction <add>, %17, %cst_15 [0] : vector<128x8xf32> to vector<8xf32>
      %19 = vector.shape_cast %18 : vector<8xf32> to vector<1x8xf32>
      %20 = tpu.iota {dimensions = array<i32: 0>} : vector<8x8xi32>
      %c4_i32 = arith.constant 4 : i32
      %21 = vector.broadcast %c4_i32 : i32 to vector<8x8xi32>
      %22 = arith.cmpi slt, %20, %21 : vector<8x8xi32>
      %23 = vector.shape_cast %16 : vector<1x8xf32> to vector<1x8xf32>
      %24 = vector.broadcast %23 : vector<1x8xf32> to vector<8x8xf32>
      %25 = vector.shape_cast %19 : vector<1x8xf32> to vector<1x8xf32>
      %26 = vector.broadcast %25 : vector<1x8xf32> to vector<8x8xf32>
      %27 = arith.select %22, %24, %26 : vector<8x8xi1>, vector<8x8xf32>
      %c0_16 = arith.constant 0 : index
      %c0_17 = arith.constant 0 : index
      %28 = vector.load %arg6[%c0_16, %c0_17] : memref<8x8xf32, #tpu.memory_space<vmem>>, vector<8x8xf32>
      tpu.vector_store %arg6[%c0_16, %c0_17], %27 {strides = array<i32>} : memref<8x8xf32, #tpu.memory_space<vmem>>, vector<8x8xf32>,
    } else {
    }
    return
  }
  func.func @transform_0(%arg0: i32, %arg1: i32, %arg2: i32) -> (i32, i32) {
    %c0_i32 = arith.constant 0 : i32
    return %arg0, %arg2 : i32, i32
  }
  func.func @transform_1(%arg0: i32, %arg1: i32, %arg2: i32) -> (i32, i32) {
    %c0_i32 = arith.constant 0 : i32
    return %arg2, %arg1 : i32, i32
  }
  func.func @transform_2(%arg0: i32, %arg1: i32, %arg2: i32) -> (i32, i32) {
    %c0_i32 = arith.constant 0 : i32
    return %arg0, %arg1 : i32, i32
  }
  func.func @transform_3(%arg0: i32, %arg1: i32, %arg2: i32) -> (i32, i32) {
    %c0_i32 = arith.constant 0 : i32
    return %arg0, %arg1 : i32, i32
  }
}

module attributes {stable_mosaic.version = 11 : i64} {
  func.func @_bn_act_kernel(%arg0: i32, %arg1: memref<8x128xbf16, #tpu.memory_space<vmem>>, %arg2: memref<1x128xf32, #tpu.memory_space<vmem>>, %arg3: memref<1x128xf32, #tpu.memory_space<vmem>>, %arg4: memref<8x128xbf16, #tpu.memory_space<vmem>>) attributes {dimension_semantics = [#tpu.dimension_semantics<parallel>], iteration_bounds = array<i64: 1>, scalar_prefetch = 0 : i64, scratch_operands = 0 : i64, tpu.core_type = #tpu.core_type<tc>, window_params = [{transform_indices = @transform_0, window_bounds = array<i64: 8, 128>}, {pipeline_mode = #tpu.pipeline_mode<synchronous>, transform_indices = @transform_1, window_bounds = array<i64: 1, 128>}, {pipeline_mode = #tpu.pipeline_mode<synchronous>, transform_indices = @transform_2, window_bounds = array<i64: 1, 128>}, {transform_indices = @transform_3, window_bounds = array<i64: 8, 128>}]} {
    %c0 = arith.constant 0 : index
    %c0_0 = arith.constant 0 : index
    %0 = vector.load %arg1[%c0, %c0_0] : memref<8x128xbf16, #tpu.memory_space<vmem>>, vector<8x128xbf16>
    %1 = arith.extf %0 : vector<8x128xbf16> to vector<8x128xf32>
    %c0_1 = arith.constant 0 : index
    %c0_2 = arith.constant 0 : index
    %2 = vector.load %arg2[%c0_1, %c0_2] : memref<1x128xf32, #tpu.memory_space<vmem>>, vector<1x128xf32>
    %3 = vector.broadcast %2 : vector<1x128xf32> to vector<8x128xf32>
    %4 = arith.mulf %1, %3 : vector<8x128xf32>
    %c0_3 = arith.constant 0 : index
    %c0_4 = arith.constant 0 : index
    %5 = vector.load %arg3[%c0_3, %c0_4] : memref<1x128xf32, #tpu.memory_space<vmem>>, vector<1x128xf32>
    %6 = vector.broadcast %5 : vector<1x128xf32> to vector<8x128xf32>
    %7 = arith.addf %4, %6 : vector<8x128xf32>
    %8 = arith.truncf %7 : vector<8x128xf32> to vector<8x128xbf16>
    %c0_5 = arith.constant 0 : index
    %c0_6 = arith.constant 0 : index
    %9 = vector.load %arg4[%c0_5, %c0_6] : memref<8x128xbf16, #tpu.memory_space<vmem>>, vector<8x128xbf16>
    tpu.vector_store %arg4[%c0_5, %c0_6], %8 {strides = array<i32>} : memref<8x128xbf16, #tpu.memory_space<vmem>>, vector<8x128xbf16>,
    return
  }
  func.func @transform_0(%arg0: i32) -> (i32, i32) {
    %c0_i32 = arith.constant 0 : i32
    %c0_i32_0 = arith.constant 0 : i32
    return %arg0, %c0_i32 : i32, i32
  }
  func.func @transform_1(%arg0: i32) -> (i32, i32) {
    %c0_i32 = arith.constant 0 : i32
    %c0_i32_0 = arith.constant 0 : i32
    %c0_i32_1 = arith.constant 0 : i32
    return %c0_i32, %c0_i32_0 : i32, i32
  }
  func.func @transform_2(%arg0: i32) -> (i32, i32) {
    %c0_i32 = arith.constant 0 : i32
    %c0_i32_0 = arith.constant 0 : i32
    %c0_i32_1 = arith.constant 0 : i32
    return %c0_i32, %c0_i32_0 : i32, i32
  }
  func.func @transform_3(%arg0: i32) -> (i32, i32) {
    %c0_i32 = arith.constant 0 : i32
    %c0_i32_0 = arith.constant 0 : i32
    return %arg0, %c0_i32 : i32, i32
  }
}

module attributes {stable_mosaic.version = 11 : i64} {
  func.func @_bn_act_kernel(%arg0: i32, %arg1: memref<8x128xbf16, #tpu.memory_space<vmem>>, %arg2: memref<1x128xf32, #tpu.memory_space<vmem>>, %arg3: memref<1x128xf32, #tpu.memory_space<vmem>>, %arg4: memref<8x128xbf16, #tpu.memory_space<vmem>>) attributes {dimension_semantics = [#tpu.dimension_semantics<parallel>], iteration_bounds = array<i64: 1>, scalar_prefetch = 0 : i64, scratch_operands = 0 : i64, tpu.core_type = #tpu.core_type<tc>, window_params = [{transform_indices = @transform_0, window_bounds = array<i64: 8, 128>}, {pipeline_mode = #tpu.pipeline_mode<synchronous>, transform_indices = @transform_1, window_bounds = array<i64: 1, 128>}, {pipeline_mode = #tpu.pipeline_mode<synchronous>, transform_indices = @transform_2, window_bounds = array<i64: 1, 128>}, {transform_indices = @transform_3, window_bounds = array<i64: 8, 128>}]} {
    %c0 = arith.constant 0 : index
    %c0_0 = arith.constant 0 : index
    %0 = vector.load %arg1[%c0, %c0_0] : memref<8x128xbf16, #tpu.memory_space<vmem>>, vector<8x128xbf16>
    %1 = arith.extf %0 : vector<8x128xbf16> to vector<8x128xf32>
    %c0_1 = arith.constant 0 : index
    %c0_2 = arith.constant 0 : index
    %2 = vector.load %arg2[%c0_1, %c0_2] : memref<1x128xf32, #tpu.memory_space<vmem>>, vector<1x128xf32>
    %3 = vector.broadcast %2 : vector<1x128xf32> to vector<8x128xf32>
    %4 = arith.mulf %1, %3 : vector<8x128xf32>
    %c0_3 = arith.constant 0 : index
    %c0_4 = arith.constant 0 : index
    %5 = vector.load %arg3[%c0_3, %c0_4] : memref<1x128xf32, #tpu.memory_space<vmem>>, vector<1x128xf32>
    %6 = vector.broadcast %5 : vector<1x128xf32> to vector<8x128xf32>
    %7 = arith.addf %4, %6 : vector<8x128xf32>
    %cst = arith.constant 0.000000e+00 : f32
    %8 = vector.broadcast %cst : f32 to vector<8x128xf32>
    %9 = arith.maximumf %7, %8 : vector<8x128xf32>
    %10 = arith.truncf %9 : vector<8x128xf32> to vector<8x128xbf16>
    %c0_5 = arith.constant 0 : index
    %c0_6 = arith.constant 0 : index
    %11 = vector.load %arg4[%c0_5, %c0_6] : memref<8x128xbf16, #tpu.memory_space<vmem>>, vector<8x128xbf16>
    tpu.vector_store %arg4[%c0_5, %c0_6], %10 {strides = array<i32>} : memref<8x128xbf16, #tpu.memory_space<vmem>>, vector<8x128xbf16>,
    return
  }
  func.func @transform_0(%arg0: i32) -> (i32, i32) {
    %c0_i32 = arith.constant 0 : i32
    %c0_i32_0 = arith.constant 0 : i32
    return %arg0, %c0_i32 : i32, i32
  }
  func.func @transform_1(%arg0: i32) -> (i32, i32) {
    %c0_i32 = arith.constant 0 : i32
    %c0_i32_0 = arith.constant 0 : i32
    %c0_i32_1 = arith.constant 0 : i32
    return %c0_i32, %c0_i32_0 : i32, i32
  }
  func.func @transform_2(%arg0: i32) -> (i32, i32) {
    %c0_i32 = arith.constant 0 : i32
    %c0_i32_0 = arith.constant 0 : i32
    %c0_i32_1 = arith.constant 0 : i32
    return %c0_i32, %c0_i32_0 : i32, i32
  }
  func.func @transform_3(%arg0: i32) -> (i32, i32) {
    %c0_i32 = arith.constant 0 : i32
    %c0_i32_0 = arith.constant 0 : i32
    return %arg0, %c0_i32 : i32, i32
  }
}

module attributes {stable_mosaic.version = 11 : i64} {
  func.func @_bn_add_relu_kernel(%arg0: i32, %arg1: memref<8x128xbf16, #tpu.memory_space<vmem>>, %arg2: memref<1x128xf32, #tpu.memory_space<vmem>>, %arg3: memref<1x128xf32, #tpu.memory_space<vmem>>, %arg4: memref<8x128xbf16, #tpu.memory_space<vmem>>, %arg5: memref<8x128xbf16, #tpu.memory_space<vmem>>) attributes {dimension_semantics = [#tpu.dimension_semantics<parallel>], iteration_bounds = array<i64: 1>, scalar_prefetch = 0 : i64, scratch_operands = 0 : i64, tpu.core_type = #tpu.core_type<tc>, window_params = [{transform_indices = @transform_0, window_bounds = array<i64: 8, 128>}, {pipeline_mode = #tpu.pipeline_mode<synchronous>, transform_indices = @transform_1, window_bounds = array<i64: 1, 128>}, {pipeline_mode = #tpu.pipeline_mode<synchronous>, transform_indices = @transform_2, window_bounds = array<i64: 1, 128>}, {transform_indices = @transform_3, window_bounds = array<i64: 8, 128>}, {transform_indices = @transform_4, window_bounds = array<i64: 8, 128>}]} {
    %c0 = arith.constant 0 : index
    %c0_0 = arith.constant 0 : index
    %0 = vector.load %arg1[%c0, %c0_0] : memref<8x128xbf16, #tpu.memory_space<vmem>>, vector<8x128xbf16>
    %1 = arith.extf %0 : vector<8x128xbf16> to vector<8x128xf32>
    %c0_1 = arith.constant 0 : index
    %c0_2 = arith.constant 0 : index
    %2 = vector.load %arg2[%c0_1, %c0_2] : memref<1x128xf32, #tpu.memory_space<vmem>>, vector<1x128xf32>
    %3 = vector.broadcast %2 : vector<1x128xf32> to vector<8x128xf32>
    %4 = arith.mulf %1, %3 : vector<8x128xf32>
    %c0_3 = arith.constant 0 : index
    %c0_4 = arith.constant 0 : index
    %5 = vector.load %arg3[%c0_3, %c0_4] : memref<1x128xf32, #tpu.memory_space<vmem>>, vector<1x128xf32>
    %6 = vector.broadcast %5 : vector<1x128xf32> to vector<8x128xf32>
    %7 = arith.addf %4, %6 : vector<8x128xf32>
    %c0_5 = arith.constant 0 : index
    %c0_6 = arith.constant 0 : index
    %8 = vector.load %arg4[%c0_5, %c0_6] : memref<8x128xbf16, #tpu.memory_space<vmem>>, vector<8x128xbf16>
    %9 = arith.extf %8 : vector<8x128xbf16> to vector<8x128xf32>
    %10 = arith.addf %7, %9 : vector<8x128xf32>
    %cst = arith.constant 0.000000e+00 : f32
    %11 = vector.broadcast %cst : f32 to vector<8x128xf32>
    %12 = arith.maximumf %10, %11 : vector<8x128xf32>
    %13 = arith.truncf %12 : vector<8x128xf32> to vector<8x128xbf16>
    %c0_7 = arith.constant 0 : index
    %c0_8 = arith.constant 0 : index
    %14 = vector.load %arg5[%c0_7, %c0_8] : memref<8x128xbf16, #tpu.memory_space<vmem>>, vector<8x128xbf16>
    tpu.vector_store %arg5[%c0_7, %c0_8], %13 {strides = array<i32>} : memref<8x128xbf16, #tpu.memory_space<vmem>>, vector<8x128xbf16>,
    return
  }
  func.func @transform_0(%arg0: i32) -> (i32, i32) {
    %c0_i32 = arith.constant 0 : i32
    %c0_i32_0 = arith.constant 0 : i32
    return %arg0, %c0_i32 : i32, i32
  }
  func.func @transform_1(%arg0: i32) -> (i32, i32) {
    %c0_i32 = arith.constant 0 : i32
    %c0_i32_0 = arith.constant 0 : i32
    %c0_i32_1 = arith.constant 0 : i32
    return %c0_i32, %c0_i32_0 : i32, i32
  }
  func.func @transform_2(%arg0: i32) -> (i32, i32) {
    %c0_i32 = arith.constant 0 : i32
    %c0_i32_0 = arith.constant 0 : i32
    %c0_i32_1 = arith.constant 0 : i32
    return %c0_i32, %c0_i32_0 : i32, i32
  }
  func.func @transform_3(%arg0: i32) -> (i32, i32) {
    %c0_i32 = arith.constant 0 : i32
    %c0_i32_0 = arith.constant 0 : i32
    return %arg0, %c0_i32 : i32, i32
  }
  func.func @transform_4(%arg0: i32) -> (i32, i32) {
    %c0_i32 = arith.constant 0 : i32
    %c0_i32_0 = arith.constant 0 : i32
    return %arg0, %c0_i32 : i32, i32
  }
}

module attributes {stable_mosaic.version = 11 : i64} {
  func.func @_mm_kernel(%arg0: i32, %arg1: i32, %arg2: i32, %arg3: memref<32x128xbf16, #tpu.memory_space<vmem>>, %arg4: memref<128x128xbf16, #tpu.memory_space<vmem>>, %arg5: memref<32x16xbf16, #tpu.memory_space<vmem>>, %arg6: memref<8x16xf32, #tpu.memory_space<vmem>>, %arg7: memref<32x128xf32, #tpu.memory_space<vmem>>) attributes {dimension_semantics = [#tpu.dimension_semantics<parallel>, #tpu.dimension_semantics<parallel>, #tpu.dimension_semantics<arbitrary>], iteration_bounds = array<i64: 1, 1, 1>, scalar_prefetch = 0 : i64, scratch_operands = 1 : i64, tpu.core_type = #tpu.core_type<tc>, window_params = [{transform_indices = @transform_0, window_bounds = array<i64: 32, 128>}, {transform_indices = @transform_1, window_bounds = array<i64: 128, 128>}, {transform_indices = @transform_2, window_bounds = array<i64: 32, 16>}, {transform_indices = @transform_3, window_bounds = array<i64: 8, 16>}]} {
    %c0_i32 = arith.constant 0 : i32
    %0 = arith.cmpi eq, %arg2, %c0_i32 : i32
    %1 = arith.extui %0 : i1 to i32
    %c0_i32_0 = arith.constant 0 : i32
    %2 = arith.cmpi ne, %1, %c0_i32_0 : i32
    scf.if %2 {
      %cst_10 = arith.constant 0.000000e+00 : f32
      %12 = vector.broadcast %cst_10 : f32 to vector<32x128xf32>
      %c0_11 = arith.constant 0 : index
      %c0_12 = arith.constant 0 : index
      %13 = vector.load %arg7[%c0_11, %c0_12] : memref<32x128xf32, #tpu.memory_space<vmem>>, vector<32x128xf32>
      tpu.vector_store %arg7[%c0_11, %c0_12], %12 {strides = array<i32>} : memref<32x128xf32, #tpu.memory_space<vmem>>, vector<32x128xf32>,
    } else {
    }
    %c0 = arith.constant 0 : index
    %c0_1 = arith.constant 0 : index
    %3 = vector.load %arg7[%c0, %c0_1] : memref<32x128xf32, #tpu.memory_space<vmem>>, vector<32x128xf32>
    %c0_2 = arith.constant 0 : index
    %c0_3 = arith.constant 0 : index
    %4 = vector.load %arg3[%c0_2, %c0_3] : memref<32x128xbf16, #tpu.memory_space<vmem>>, vector<32x128xbf16>
    %c0_4 = arith.constant 0 : index
    %c0_5 = arith.constant 0 : index
    %5 = vector.load %arg4[%c0_4, %c0_5] : memref<128x128xbf16, #tpu.memory_space<vmem>>, vector<128x128xbf16>
    %cst = arith.constant dense<0.000000e+00> : vector<32x128xf32>
    %6 = tpu.matmul %4, %5, %cst {dimension_numbers = #tpu.dot_dimension_numbers<[1], [0], [0], [1], [0, 0, 1, 1], [], []>} : vector<32x128xbf16>, vector<128x128xbf16>, vector<32x128xf32> -> vector<32x128xf32>
    %7 = arith.addf %3, %6 : vector<32x128xf32>
    %c0_6 = arith.constant 0 : index
    %c0_7 = arith.constant 0 : index
    %8 = vector.load %arg7[%c0_6, %c0_7] : memref<32x128xf32, #tpu.memory_space<vmem>>, vector<32x128xf32>
    tpu.vector_store %arg7[%c0_6, %c0_7], %7 {strides = array<i32>} : memref<32x128xf32, #tpu.memory_space<vmem>>, vector<32x128xf32>,
    %c0_i32_8 = arith.constant 0 : i32
    %9 = arith.cmpi eq, %arg2, %c0_i32_8 : i32
    %10 = arith.extui %9 : i1 to i32
    %c0_i32_9 = arith.constant 0 : i32
    %11 = arith.cmpi ne, %10, %c0_i32_9 : i32
    scf.if %11 {
      %c0_10 = arith.constant 0 : index
      %c0_11 = arith.constant 0 : index
      %12 = vector.load %arg7[%c0_10, %c0_11] : memref<32x128xf32, #tpu.memory_space<vmem>>, vector<32x16xf32>
      %13 = arith.truncf %12 : vector<32x16xf32> to vector<32x16xbf16>
      %c0_12 = arith.constant 0 : index
      %c0_13 = arith.constant 0 : index
      %14 = vector.load %arg5[%c0_12, %c0_13] : memref<32x16xbf16, #tpu.memory_space<vmem>>, vector<32x16xbf16>
      tpu.vector_store %arg5[%c0_12, %c0_13], %13 {strides = array<i32>} : memref<32x16xbf16, #tpu.memory_space<vmem>>, vector<32x16xbf16>,
      %cst_14 = arith.constant dense<0.000000e+00> : vector<16xf32>
      %15 = vector.multi_reduction <add>, %12, %cst_14 [0] : vector<32x16xf32> to vector<16xf32>
      %16 = vector.shape_cast %15 : vector<16xf32> to vector<1x16xf32>
      %17 = arith.mulf %12, %12 : vector<32x16xf32>
      %cst_15 = arith.constant dense<0.000000e+00> : vector<16xf32>
      %18 = vector.multi_reduction <add>, %17, %cst_15 [0] : vector<32x16xf32> to vector<16xf32>
      %19 = vector.shape_cast %18 : vector<16xf32> to vector<1x16xf32>
      %20 = tpu.iota {dimensions = array<i32: 0>} : vector<8x16xi32>
      %c4_i32 = arith.constant 4 : i32
      %21 = vector.broadcast %c4_i32 : i32 to vector<8x16xi32>
      %22 = arith.cmpi slt, %20, %21 : vector<8x16xi32>
      %23 = vector.shape_cast %16 : vector<1x16xf32> to vector<1x16xf32>
      %24 = vector.broadcast %23 : vector<1x16xf32> to vector<8x16xf32>
      %25 = vector.shape_cast %19 : vector<1x16xf32> to vector<1x16xf32>
      %26 = vector.broadcast %25 : vector<1x16xf32> to vector<8x16xf32>
      %27 = arith.select %22, %24, %26 : vector<8x16xi1>, vector<8x16xf32>
      %c0_16 = arith.constant 0 : index
      %c0_17 = arith.constant 0 : index
      %28 = vector.load %arg6[%c0_16, %c0_17] : memref<8x16xf32, #tpu.memory_space<vmem>>, vector<8x16xf32>
      tpu.vector_store %arg6[%c0_16, %c0_17], %27 {strides = array<i32>} : memref<8x16xf32, #tpu.memory_space<vmem>>, vector<8x16xf32>,
    } else {
    }
    return
  }
  func.func @transform_0(%arg0: i32, %arg1: i32, %arg2: i32) -> (i32, i32) {
    %c0_i32 = arith.constant 0 : i32
    return %arg0, %arg2 : i32, i32
  }
  func.func @transform_1(%arg0: i32, %arg1: i32, %arg2: i32) -> (i32, i32) {
    %c0_i32 = arith.constant 0 : i32
    return %arg2, %arg1 : i32, i32
  }
  func.func @transform_2(%arg0: i32, %arg1: i32, %arg2: i32) -> (i32, i32) {
    %c0_i32 = arith.constant 0 : i32
    return %arg0, %arg1 : i32, i32
  }
  func.func @transform_3(%arg0: i32, %arg1: i32, %arg2: i32) -> (i32, i32) {
    %c0_i32 = arith.constant 0 : i32
    return %arg0, %arg1 : i32, i32
  }
}

module attributes {stable_mosaic.version = 11 : i64} {
  func.func @_mm_kernel(%arg0: i32, %arg1: i32, %arg2: i32, %arg3: memref<32x256xbf16, #tpu.memory_space<vmem>>, %arg4: memref<256x128xbf16, #tpu.memory_space<vmem>>, %arg5: memref<32x16xbf16, #tpu.memory_space<vmem>>, %arg6: memref<8x16xf32, #tpu.memory_space<vmem>>, %arg7: memref<32x128xf32, #tpu.memory_space<vmem>>) attributes {dimension_semantics = [#tpu.dimension_semantics<parallel>, #tpu.dimension_semantics<parallel>, #tpu.dimension_semantics<arbitrary>], iteration_bounds = array<i64: 1, 1, 1>, scalar_prefetch = 0 : i64, scratch_operands = 1 : i64, tpu.core_type = #tpu.core_type<tc>, window_params = [{transform_indices = @transform_0, window_bounds = array<i64: 32, 256>}, {transform_indices = @transform_1, window_bounds = array<i64: 256, 128>}, {transform_indices = @transform_2, window_bounds = array<i64: 32, 16>}, {transform_indices = @transform_3, window_bounds = array<i64: 8, 16>}]} {
    %c0_i32 = arith.constant 0 : i32
    %0 = arith.cmpi eq, %arg2, %c0_i32 : i32
    %1 = arith.extui %0 : i1 to i32
    %c0_i32_0 = arith.constant 0 : i32
    %2 = arith.cmpi ne, %1, %c0_i32_0 : i32
    scf.if %2 {
      %cst_10 = arith.constant 0.000000e+00 : f32
      %12 = vector.broadcast %cst_10 : f32 to vector<32x128xf32>
      %c0_11 = arith.constant 0 : index
      %c0_12 = arith.constant 0 : index
      %13 = vector.load %arg7[%c0_11, %c0_12] : memref<32x128xf32, #tpu.memory_space<vmem>>, vector<32x128xf32>
      tpu.vector_store %arg7[%c0_11, %c0_12], %12 {strides = array<i32>} : memref<32x128xf32, #tpu.memory_space<vmem>>, vector<32x128xf32>,
    } else {
    }
    %c0 = arith.constant 0 : index
    %c0_1 = arith.constant 0 : index
    %3 = vector.load %arg7[%c0, %c0_1] : memref<32x128xf32, #tpu.memory_space<vmem>>, vector<32x128xf32>
    %c0_2 = arith.constant 0 : index
    %c0_3 = arith.constant 0 : index
    %4 = vector.load %arg3[%c0_2, %c0_3] : memref<32x256xbf16, #tpu.memory_space<vmem>>, vector<32x256xbf16>
    %c0_4 = arith.constant 0 : index
    %c0_5 = arith.constant 0 : index
    %5 = vector.load %arg4[%c0_4, %c0_5] : memref<256x128xbf16, #tpu.memory_space<vmem>>, vector<256x128xbf16>
    %cst = arith.constant dense<0.000000e+00> : vector<32x128xf32>
    %6 = tpu.matmul %4, %5, %cst {dimension_numbers = #tpu.dot_dimension_numbers<[1], [0], [0], [1], [0, 0, 1, 1], [], []>} : vector<32x256xbf16>, vector<256x128xbf16>, vector<32x128xf32> -> vector<32x128xf32>
    %7 = arith.addf %3, %6 : vector<32x128xf32>
    %c0_6 = arith.constant 0 : index
    %c0_7 = arith.constant 0 : index
    %8 = vector.load %arg7[%c0_6, %c0_7] : memref<32x128xf32, #tpu.memory_space<vmem>>, vector<32x128xf32>
    tpu.vector_store %arg7[%c0_6, %c0_7], %7 {strides = array<i32>} : memref<32x128xf32, #tpu.memory_space<vmem>>, vector<32x128xf32>,
    %c0_i32_8 = arith.constant 0 : i32
    %9 = arith.cmpi eq, %arg2, %c0_i32_8 : i32
    %10 = arith.extui %9 : i1 to i32
    %c0_i32_9 = arith.constant 0 : i32
    %11 = arith.cmpi ne, %10, %c0_i32_9 : i32
    scf.if %11 {
      %c0_10 = arith.constant 0 : index
      %c0_11 = arith.constant 0 : index
      %12 = vector.load %arg7[%c0_10, %c0_11] : memref<32x128xf32, #tpu.memory_space<vmem>>, vector<32x16xf32>
      %13 = arith.truncf %12 : vector<32x16xf32> to vector<32x16xbf16>
      %c0_12 = arith.constant 0 : index
      %c0_13 = arith.constant 0 : index
      %14 = vector.load %arg5[%c0_12, %c0_13] : memref<32x16xbf16, #tpu.memory_space<vmem>>, vector<32x16xbf16>
      tpu.vector_store %arg5[%c0_12, %c0_13], %13 {strides = array<i32>} : memref<32x16xbf16, #tpu.memory_space<vmem>>, vector<32x16xbf16>,
      %cst_14 = arith.constant dense<0.000000e+00> : vector<16xf32>
      %15 = vector.multi_reduction <add>, %12, %cst_14 [0] : vector<32x16xf32> to vector<16xf32>
      %16 = vector.shape_cast %15 : vector<16xf32> to vector<1x16xf32>
      %17 = arith.mulf %12, %12 : vector<32x16xf32>
      %cst_15 = arith.constant dense<0.000000e+00> : vector<16xf32>
      %18 = vector.multi_reduction <add>, %17, %cst_15 [0] : vector<32x16xf32> to vector<16xf32>
      %19 = vector.shape_cast %18 : vector<16xf32> to vector<1x16xf32>
      %20 = tpu.iota {dimensions = array<i32: 0>} : vector<8x16xi32>
      %c4_i32 = arith.constant 4 : i32
      %21 = vector.broadcast %c4_i32 : i32 to vector<8x16xi32>
      %22 = arith.cmpi slt, %20, %21 : vector<8x16xi32>
      %23 = vector.shape_cast %16 : vector<1x16xf32> to vector<1x16xf32>
      %24 = vector.broadcast %23 : vector<1x16xf32> to vector<8x16xf32>
      %25 = vector.shape_cast %19 : vector<1x16xf32> to vector<1x16xf32>
      %26 = vector.broadcast %25 : vector<1x16xf32> to vector<8x16xf32>
      %27 = arith.select %22, %24, %26 : vector<8x16xi1>, vector<8x16xf32>
      %c0_16 = arith.constant 0 : index
      %c0_17 = arith.constant 0 : index
      %28 = vector.load %arg6[%c0_16, %c0_17] : memref<8x16xf32, #tpu.memory_space<vmem>>, vector<8x16xf32>
      tpu.vector_store %arg6[%c0_16, %c0_17], %27 {strides = array<i32>} : memref<8x16xf32, #tpu.memory_space<vmem>>, vector<8x16xf32>,
    } else {
    }
    return
  }
  func.func @transform_0(%arg0: i32, %arg1: i32, %arg2: i32) -> (i32, i32) {
    %c0_i32 = arith.constant 0 : i32
    return %arg0, %arg2 : i32, i32
  }
  func.func @transform_1(%arg0: i32, %arg1: i32, %arg2: i32) -> (i32, i32) {
    %c0_i32 = arith.constant 0 : i32
    return %arg2, %arg1 : i32, i32
  }
  func.func @transform_2(%arg0: i32, %arg1: i32, %arg2: i32) -> (i32, i32) {
    %c0_i32 = arith.constant 0 : i32
    return %arg0, %arg1 : i32, i32
  }
  func.func @transform_3(%arg0: i32, %arg1: i32, %arg2: i32) -> (i32, i32) {
    %c0_i32 = arith.constant 0 : i32
    return %arg0, %arg1 : i32, i32
  }
}

module attributes {stable_mosaic.version = 11 : i64} {
  func.func @_mm_kernel(%arg0: i32, %arg1: i32, %arg2: i32, %arg3: memref<8x128xbf16, #tpu.memory_space<vmem>>, %arg4: memref<128x128xbf16, #tpu.memory_space<vmem>>, %arg5: memref<1x2xf32, #tpu.memory_space<vmem>>, %arg6: memref<8x2xf32, #tpu.memory_space<vmem>>, %arg7: memref<8x128xf32, #tpu.memory_space<vmem>>) attributes {dimension_semantics = [#tpu.dimension_semantics<parallel>, #tpu.dimension_semantics<parallel>, #tpu.dimension_semantics<arbitrary>], iteration_bounds = array<i64: 1, 1, 1>, scalar_prefetch = 0 : i64, scratch_operands = 1 : i64, tpu.core_type = #tpu.core_type<tc>, window_params = [{transform_indices = @transform_0, window_bounds = array<i64: 8, 128>}, {transform_indices = @transform_1, window_bounds = array<i64: 128, 128>}, {transform_indices = @transform_2, window_bounds = array<i64: 1, 2>}, {transform_indices = @transform_3, window_bounds = array<i64: 8, 2>}]} {
    %c0_i32 = arith.constant 0 : i32
    %0 = arith.cmpi eq, %arg2, %c0_i32 : i32
    %1 = arith.extui %0 : i1 to i32
    %c0_i32_0 = arith.constant 0 : i32
    %2 = arith.cmpi ne, %1, %c0_i32_0 : i32
    scf.if %2 {
      %cst_10 = arith.constant 0.000000e+00 : f32
      %12 = vector.broadcast %cst_10 : f32 to vector<8x128xf32>
      %c0_11 = arith.constant 0 : index
      %c0_12 = arith.constant 0 : index
      %13 = vector.load %arg7[%c0_11, %c0_12] : memref<8x128xf32, #tpu.memory_space<vmem>>, vector<8x128xf32>
      tpu.vector_store %arg7[%c0_11, %c0_12], %12 {strides = array<i32>} : memref<8x128xf32, #tpu.memory_space<vmem>>, vector<8x128xf32>,
    } else {
    }
    %c0 = arith.constant 0 : index
    %c0_1 = arith.constant 0 : index
    %3 = vector.load %arg7[%c0, %c0_1] : memref<8x128xf32, #tpu.memory_space<vmem>>, vector<8x128xf32>
    %c0_2 = arith.constant 0 : index
    %c0_3 = arith.constant 0 : index
    %4 = vector.load %arg3[%c0_2, %c0_3] : memref<8x128xbf16, #tpu.memory_space<vmem>>, vector<8x128xbf16>
    %c0_4 = arith.constant 0 : index
    %c0_5 = arith.constant 0 : index
    %5 = vector.load %arg4[%c0_4, %c0_5] : memref<128x128xbf16, #tpu.memory_space<vmem>>, vector<128x128xbf16>
    %cst = arith.constant dense<0.000000e+00> : vector<8x128xf32>
    %6 = tpu.matmul %4, %5, %cst {dimension_numbers = #tpu.dot_dimension_numbers<[1], [0], [0], [1], [0, 0, 1, 1], [], []>} : vector<8x128xbf16>, vector<128x128xbf16>, vector<8x128xf32> -> vector<8x128xf32>
    %7 = arith.addf %3, %6 : vector<8x128xf32>
    %c0_6 = arith.constant 0 : index
    %c0_7 = arith.constant 0 : index
    %8 = vector.load %arg7[%c0_6, %c0_7] : memref<8x128xf32, #tpu.memory_space<vmem>>, vector<8x128xf32>
    tpu.vector_store %arg7[%c0_6, %c0_7], %7 {strides = array<i32>} : memref<8x128xf32, #tpu.memory_space<vmem>>, vector<8x128xf32>,
    %c0_i32_8 = arith.constant 0 : i32
    %9 = arith.cmpi eq, %arg2, %c0_i32_8 : i32
    %10 = arith.extui %9 : i1 to i32
    %c0_i32_9 = arith.constant 0 : i32
    %11 = arith.cmpi ne, %10, %c0_i32_9 : i32
    scf.if %11 {
      %c0_10 = arith.constant 0 : index
      %c0_11 = arith.constant 0 : index
      %12 = vector.load %arg7[%c0_10, %c0_11] : memref<8x128xf32, #tpu.memory_space<vmem>>, vector<8x2xf32>
      %c0_12 = arith.constant 0 : index
      %c0_13 = arith.constant 0 : index
      %13 = vector.load %arg5[%c0_12, %c0_13] : memref<1x2xf32, #tpu.memory_space<vmem>>, vector<1x2xf32>
      %14 = vector.broadcast %13 : vector<1x2xf32> to vector<8x2xf32>
      %15 = arith.addf %12, %14 : vector<8x2xf32>
      %c0_14 = arith.constant 0 : index
      %c0_15 = arith.constant 0 : index
      %16 = vector.load %arg6[%c0_14, %c0_15] : memref<8x2xf32, #tpu.memory_space<vmem>>, vector<8x2xf32>
      tpu.vector_store %arg6[%c0_14, %c0_15], %15 {strides = array<i32>} : memref<8x2xf32, #tpu.memory_space<vmem>>, vector<8x2xf32>,
    } else {
    }
    return
  }
  func.func @transform_0(%arg0: i32, %arg1: i32, %arg2: i32) -> (i32, i32) {
    %c0_i32 = arith.constant 0 : i32
    return %arg0, %arg2 : i32, i32
  }
  func.func @transform_1(%arg0: i32, %arg1: i32, %arg2: i32) -> (i32, i32) {
    %c0_i32 = arith.constant 0 : i32
    return %arg2, %arg1 : i32, i32
  }
  func.func @transform_2(%arg0: i32, %arg1: i32, %arg2: i32) -> (i32, i32) {
    %c0_i32 = arith.constant 0 : i32
    %c0_i32_0 = arith.constant 0 : i32
    return %c0_i32, %arg1 : i32, i32
  }
  func.func @transform_3(%arg0: i32, %arg1: i32, %arg2: i32) -> (i32, i32) {
    %c0_i32 = arith.constant 0 : i32
    return %arg0, %arg1 : i32, i32
  }
}

</mosaic_0001>

<llo_original>
// kernel: tile.93
$region0: #{tile.93}
  #allocation0 [shape = 's32[1]{0}', space=sflag, size = 0x4, scoped, tag = 'scoped memory for tile.93']
  %s0 = inlined_call_operand.vmem [shape: f32[4], index: 0, kind: input, shape index: {}]
  %s1 = inlined_call_operand.vmem [shape: f32[32,4], index: 1, kind: output, shape index: {}]
  // Predicated region
  $region2: #{tile.93} parent=0 // pred_check
    _
  $region3: #{tile.93} parent=0 // pred_check_branch
    %3 = sbr.rel (0) target = $region5
  $region4: #{tile.93} parent=0 // pred_region
    _
  $region5: #{tile.93} parent=0 // pred_fallthru
    _
  %v4 = vld [vmem:[%s0] ss:$0 sm:$0xff]
  %5 = vst [vmem:[%s1] sm:$0xff] %v4
  %s6 = scalar_lea.vmem %s1, 8
  %7 = vst [vmem:[%s6] sm:$0xff] %v4
  %s8 = scalar_lea.vmem %s1, 16
  %9 = vst [vmem:[%s8] sm:$0xff] %v4
  %s10 = scalar_lea.vmem %s1, 24
  %11 = vst [vmem:[%s10] sm:$0xff] %v4

// kernel: tile.94
$region0: #{tile.94}
  %s0 = inlined_call_operand.vmem [shape: f32[32,4], index: 0, kind: input, shape index: {}]
  %s1 = inlined_call_operand.vmem [shape: f32[1,128], index: 1, kind: output, shape index: {}]
  $region1: #{tile.94} parent=0
    #allocation0 [shape = 'u8[4096]{0}', space=vmem, size = 0x1000, scoped, tag = 'scoped mem for output reshape']
    %v2 = vld [vmem:[%s0] sm:$0x1]
    %vm3 = vcmask 31744
    %4 = vst.msk [vmem:[#allocation0] sm:$0x1] %vm3, %v2
    %s5 = scalar_lea.vmem %s0, 31
    %v6 = vld [vmem:[%s5] sm:$0x1]
    %7 = vrot.lane.b32.xlu0 %v6, 124
    %v8 = vpop.permute.xlu0 %7
    %vm9 = vcmask 1048544
    %10 = vst.msk [vmem:[#allocation0] sm:$0x1] %vm9, %v8
    %s11 = scalar_lea.vmem %s0, 30
    %v12 = vld [vmem:[%s11] sm:$0x1]
    %13 = vrot.lane.b32.xlu0 %v12, 120
    %v14 = vpop.permute.xlu0 %13
    %vm15 = vcmask 1015744
    %16 = vst.msk [vmem:[#allocation0] sm:$0x1] %vm15, %v14
    %s17 = scalar_lea.vmem %s0, 29
    %v18 = vld [vmem:[%s17] sm:$0x1]
    %19 = vrot.lane.b32.xlu0 %v18, 116
    %v20 = vpop.permute.xlu0 %19
    %vm21 = vcmask 982944
    %22 = vst.msk [vmem:[#allocation0] sm:$0x1] %vm21, %v20
    %s23 = scalar_lea.vmem %s0, 28
    %v24 = vld [vmem:[%s23] sm:$0x1]
    %25 = vrot.lane.b32.xlu0 %v24, 112
    %v26 = vpop.permute.xlu0 %25
    %vm27 = vcmask 950144
    %28 = vst.msk [vmem:[#allocation0] sm:$0x1] %vm27, %v26
    %s29 = scalar_lea.vmem %s0, 27
    %v30 = vld [vmem:[%s29] sm:$0x1]
    %31 = vrot.lane.b32.xlu0 %v30, 108
    %v32 = vpop.permute.xlu0 %31
    %vm33 = vcmask 917344
    %34 = vst.msk [vmem:[#allocation0] sm:$0x1] %vm33, %v32
    %s35 = scalar_lea.vmem %s0, 26
    %v36 = vld [vmem:[%s35] sm:$0x1]
    %37 = vrot.lane.b32.xlu0 %v36, 104
    %v38 = vpop.permute.xlu0 %37
    %vm39 = vcmask 884544
    %40 = vst.msk [vmem:[#allocation0] sm:$0x1] %vm39, %v38
    %s41 = scalar_lea.vmem %s0, 25
    %v42 = vld [vmem:[%s41] sm:$0x1]
    %43 = vrot.lane.b32.xlu0 %v42, 100
    %v44 = vpop.permute.xlu0 %43
    %vm45 = vcmask 851744
    %46 = vst.msk [vmem:[#allocation0] sm:$0x1] %vm45, %v44
    %s47 = scalar_lea.vmem %s0, 24
    %v48 = vld [vmem:[%s47] sm:$0x1]
    %49 = vrot.lane.b32.xlu0 %v48, 96
    %v50 = vpop.permute.xlu0 %49
    %vm51 = vcmask 818944
    %52 = vst.msk [vmem:[#allocation0] sm:$0x1] %vm51, %v50
    %s53 = scalar_lea.vmem %s0, 23
    %v54 = vld [vmem:[%s53] sm:$0x1]
    %55 = vrot.lane.b32.xlu0 %v54, 92
    %v56 = vpop.permute.xlu0 %55
    %vm57 = vcmask 786144
    %58 = vst.msk [vmem:[#allocation0] sm:$0x1] %vm57, %v56
    %s59 = scalar_lea.vmem %s0, 22
    %v60 = vld [vmem:[%s59] sm:$0x1]
    %61 = vrot.lane.b32.xlu0 %v60, 88
    %v62 = vpop.permute.xlu0 %61
    %vm63 = vcmask 753344
    %64 = vst.msk [vmem:[#allocation0] sm:$0x1] %vm63, %v62
    %s65 = scalar_lea.vmem %s0, 21
    %v66 = vld [vmem:[%s65] sm:$0x1]
    %67 = vrot.lane.b32.xlu0 %v66, 84
    %v68 = vpop.permute.xlu0 %67
    %vm69 = vcmask 720544
    %70 = vst.msk [vmem:[#allocation0] sm:$0x1] %vm69, %v68
    %s71 = scalar_lea.vmem %s0, 20
    %v72 = vld [vmem:[%s71] sm:$0x1]
    %73 = vrot.lane.b32.xlu0 %v72, 80
    %v74 = vpop.permute.xlu0 %73
    %vm75 = vcmask 687744
    %76 = vst.msk [vmem:[#allocation0] sm:$0x1] %vm75, %v74
    %s77 = scalar_lea.vmem %s0, 19
    %v78 = vld [vmem:[%s77] sm:$0x1]
    %79 = vrot.lane.b32.xlu0 %v78, 76
    %v80 = vpop.permute.xlu0 %79
    %vm81 = vcmask 654944
    %82 = vst.msk [vmem:[#allocation0] sm:$0x1] %vm81, %v80
    %s83 = scalar_lea.vmem %s0, 18
    %v84 = vld [vmem:[%s83] sm:$0x1]
    %85 = vrot.lane.b32.xlu0 %v84, 72
    %v86 = vpop.permute.xlu0 %85
    %vm87 = vcmask 622144
    %88 = vst.msk [vmem:[#allocation0] sm:$0x1] %vm87, %v86
    %s89 = scalar_lea.vmem %s0, 17
    %v90 = vld [vmem:[%s89] sm:$0x1]
    %91 = vrot.lane.b32.xlu0 %v90, 68
    %v92 = vpop.permute.xlu0 %91
    %vm93 = vcmask 589344
    %94 = vst.msk [vmem:[#allocation0] sm:$0x1] %vm93, %v92
    %s95 = scalar_lea.vmem %s0, 16
    %v96 = vld [vmem:[%s95] sm:$0x1]
    %97 = vrot.lane.b32.xlu0 %v96, 64
    %v98 = vpop.permute.xlu0 %97
    %vm99 = vcmask 556544
    %100 = vst.msk [vmem:[#allocation0] sm:$0x1] %vm99, %v98
    %s101 = scalar_lea.vmem %s0, 15
    %v102 = vld [vmem:[%s101] sm:$0x1]
    %103 = vrot.lane.b32.xlu0 %v102, 60
    %v104 = vpop.permute.xlu0 %103
    %vm105 = vcmask 523744
    %106 = vst.msk [vmem:[#allocation0] sm:$0x1] %vm105, %v104
    %s107 = scalar_lea.vmem %s0, 14
    %v108 = vld [vmem:[%s107] sm:$0x1]
    %109 = vrot.lane.b32.xlu0 %v108, 56
    %v110 = vpop.permute.xlu0 %109
    %vm111 = vcmask 490944
    %112 = vst.msk [vmem:[#allocation0] sm:$0x1] %vm111, %v110
    %s113 = scalar_lea.vmem %s0, 13
    %v114 = vld [vmem:[%s113] sm:$0x1]
    %115 = vrot.lane.b32.xlu0 %v114, 52
    %v116 = vpop.permute.xlu0 %115
    %vm117 = vcmask 458144
    %118 = vst.msk [vmem:[#allocation0] sm:$0x1] %vm117, %v116
    %s119 = scalar_lea.vmem %s0, 12
    %v120 = vld [vmem:[%s119] sm:$0x1]
    %121 = vrot.lane.b32.xlu0 %v120, 48
    %v122 = vpop.permute.xlu0 %121
    %vm123 = vcmask 425344
    %124 = vst.msk [vmem:[#allocation0] sm:$0x1] %vm123, %v122
    %s125 = scalar_lea.vmem %s0, 11
    %v126 = vld [vmem:[%s125] sm:$0x1]
    %127 = vrot.lane.b32.xlu0 %v126, 44
    %v128 = vpop.permute.xlu0 %127
    %vm129 = vcmask 392544
    %130 = vst.msk [vmem:[#allocation0] sm:$0x1] %vm129, %v128
    %s131 = scalar_lea.vmem %s0, 10
    %v132 = vld [vmem:[%s131] sm:$0x1]
    %133 = vrot.lane.b32.xlu0 %v132, 40
    %v134 = vpop.permute.xlu0 %133
    %vm135 = vcmask 359744
    %136 = vst.msk [vmem:[#allocation0] sm:$0x1] %vm135, %v134
    %s137 = scalar_lea.vmem %s0, 9
    %v138 = vld [vmem:[%s137] sm:$0x1]
    %139 = vrot.lane.b32.xlu0 %v138, 36
    %v140 = vpop.permute.xlu0 %139
    %vm141 = vcmask 326944
    %142 = vst.msk [vmem:[#allocation0] sm:$0x1] %vm141, %v140
    %s143 = scalar_lea.vmem %s0, 8
    %v144 = vld [vmem:[%s143] sm:$0x1]
    %145 = vrot.lane.b32.xlu0 %v144, 32
    %v146 = vpop.permute.xlu0 %145
    %vm147 = vcmask 294144
    %148 = vst.msk [vmem:[#allocation0] sm:$0x1] %vm147, %v146
    %s149 = scalar_lea.vmem %s0, 7
    %v150 = vld [vmem:[%s149] sm:$0x1]
    %151 = vrot.lane.b32.xlu0 %v150, 28
    %v152 = vpop.permute.xlu0 %151
    %vm153 = vcmask 261344
    %154 = vst.msk [vmem:[#allocation0] sm:$0x1] %vm153, %v152
    %s155 = scalar_lea.vmem %s0, 6
    %v156 = vld [vmem:[%s155] sm:$0x1]
    %157 = vrot.lane.b32.xlu0 %v156, 24
    %v158 = vpop.permute.xlu0 %157
    %vm159 = vcmask 228544
    %160 = vst.msk [vmem:[#allocation0] sm:$0x1] %vm159, %v158
    %s161 = scalar_lea.vmem %s0, 5
    %v162 = vld [vmem:[%s161] sm:$0x1]
    %163 = vrot.lane.b32.xlu0 %v162, 20
    %v164 = vpop.permute.xlu0 %163
    %vm165 = vcmask 195744
    %166 = vst.msk [vmem:[#allocation0] sm:$0x1] %vm165, %v164
    %s167 = scalar_lea.vmem %s0, 4
    %v168 = vld [vmem:[%s167] sm:$0x1]
    %169 = vrot.lane.b32.xlu0 %v168, 16
    %v170 = vpop.permute.xlu0 %169
    %vm171 = vcmask 162944
    %172 = vst.msk [vmem:[#allocation0] sm:$0x1] %vm171, %v170
    %s173 = scalar_lea.vmem %s0, 3
    %v174 = vld [vmem:[%s173] sm:$0x1]
    %175 = vrot.lane.b32.xlu0 %v174, 12
    %v176 = vpop.permute.xlu0 %175
    %vm177 = vcmask 130144
    %178 = vst.msk [vmem:[#allocation0] sm:$0x1] %vm177, %v176
    %s179 = scalar_lea.vmem %s0, 2
    %v180 = vld [vmem:[%s179] sm:$0x1]
    %181 = vrot.lane.b32.xlu0 %v180, 8
    %v182 = vpop.permute.xlu0 %181
    %vm183 = vcmask 97344
    %184 = vst.msk [vmem:[#allocation0] sm:$0x1] %vm183, %v182
    %s185 = scalar_lea.vmem %s0, 1
    %v186 = vld [vmem:[%s185] sm:$0x1]
    %187 = vrot.lane.b32.xlu0 %v186, 4
    %v188 = vpop.permute.xlu0 %187
    %vm189 = vcmask 64544
    %190 = vst.msk [vmem:[#allocation0] sm:$0x1] %vm189, %v188
    %s192 = sshll.u32 1, 1
    %s193 = ssub.s32 %s192, 1
    %v195 = vld [vmem:[#allocation0] sm:%s193]
    %s196 = sshll.u32 1, 1
    %s197 = ssub.s32 %s196, 1
    %198 = vst [vmem:[%s1] sm:%s197] %v195

// kernel: resnet_forward.20
$region0: #{resnet_forward.20}
  #allocation0 [shape = 'u32[]', space=smem, size = 0x4, offset = 0x4, fixed_abs, tag = 'smem constant byte address 0x4 - core index']
  #allocation1 [shape = 'u32[144,128]{1,0:T(1,128)}', space=vmem, size = 0x12000, scoped, tag = 'internal scratch']
  %s0 = inlined_call_operand.vmem [shape: bf16[16,128], index: 0, kind: input, shape index: {}]
  %s1 = inlined_call_operand.vmem [shape: f32[1,128], index: 1, kind: input, shape index: {}]
  %s2 = inlined_call_operand.vmem [shape: f32[1,128], index: 2, kind: input, shape index: {}]
  %s3 = inlined_call_operand.vmem [shape: bf16[16,128], index: 3, kind: output, shape index: {}]
  %s4 = sld [smem:[#allocation0]]
  $region22: #{resnet_forward.20} parent=0
    _
  %s6 = ssub.s32 1, %s4
  %s7 = scalar_select 0, %s6, %s4
  // Predicated region
  $region2: #{resnet_forward.20} parent=0 // pred_check
    _
  $region3: #{resnet_forward.20} parent=0 // pred_check_branch
    %9 = sbr.rel (0) target = $region5
  $region4: #{resnet_forward.20} parent=0 // pred_region
    _
  $region5: #{resnet_forward.20} parent=0 // pred_fallthru
    _
  // Predicated region
  $region6: #{resnet_forward.20} parent=0 // pred_check
    _
  $region7: #{resnet_forward.20} parent=0 // pred_check_branch
    %11 = sbr.rel (0) target = $region9
  $region8: #{resnet_forward.20} parent=0 // pred_region
    _
  $region9: #{resnet_forward.20} parent=0 // pred_fallthru
    _
  // Predicated region
  $region10: #{resnet_forward.20} parent=0 // pred_check
    _
  $region11: #{resnet_forward.20} parent=0 // pred_check_branch
    %13 = sbr.rel (0) target = $region13
  $region12: #{resnet_forward.20} parent=0 // pred_region
    _
  $region13: #{resnet_forward.20} parent=0 // pred_fallthru
    _
  %v14 = vld [vmem:[%s0] sm:$0xf]
  %v15 = vld [vmem:[%s0 + $0x4] sm:$0xf]
  %v16 = vunpack.c.l.bf16 %v14
  %v17 = vunpack.c.l.bf16 %v15
  %v18 = vld [vmem:[%s1] sm:$0x1]
  %v20 = vlaneseq
  %v21 = vshrl.u32 %v20, 7
  %v22 = vsub.s32 0, %v21
  %v23 = vrot.slane %v18, %v22
  %v25 = vmul.f32 %v16, %v23
  %v26 = vmul.f32 %v17, %v23
  %v27 = vld [vmem:[%s2] sm:$0x1]
  %v29 = vlaneseq
  %v30 = vshrl.u32 %v29, 7
  %v31 = vsub.s32 0, %v30
  %v32 = vrot.slane %v27, %v31
  %v34 = vadd.f32 %v25, %v32
  %v35 = vadd.f32 %v26, %v32
  %v36 = vmax.f32 %v34, 0.0
  %v37 = vmax.f32 %v35, 0.0
  %v38 = vpack.c.bf16 %v37, %v36
  %v40 = vunpack.c.l.b16 %v38
  %v41 = vunpack.c.h.b16 %v38
  %v42 = vpack.c.b16 %v40, %v40
  %v43 = vpack.c.b16 %v41, %v41
  %46 = vst [vmem:[%s3] sm:$0xf] %v42
  %47 = vst [vmem:[%s3 + $0x4] sm:$0xf] %v43
  // Predicated region
  $region14: #{resnet_forward.20} parent=0 // pred_check
    _
  $region15: #{resnet_forward.20} parent=0 // pred_check_branch
    %49 = sbr.rel (0) target = $region17
  $region16: #{resnet_forward.20} parent=0 // pred_region
    _
  $region17: #{resnet_forward.20} parent=0 // pred_fallthru
    _
  // Predicated region
  $region18: #{resnet_forward.20} parent=0 // pred_check
    _
  $region19: #{resnet_forward.20} parent=0 // pred_check_branch
    %51 = sbr.rel (0) target = $region21
  $region20: #{resnet_forward.20} parent=0 // pred_region
    _
  $region21: #{resnet_forward.20} parent=0 // pred_fallthru
    _

// kernel: resnet_forward.19
$region0: #{resnet_forward.19}
  #allocation0 [shape = 'u32[]', space=smem, size = 0x4, offset = 0x4, fixed_abs, tag = 'smem constant byte address 0x4 - core index']
  #allocation1 [shape = 'u32[144,128]{1,0:T(1,128)}', space=vmem, size = 0x12000, scoped, tag = 'internal scratch']
  #allocation2 [shape = 'f32[256,128]{1,0:T(8,128)}', space=vmem, size = 0x20000, scoped, tag = 'scratch operand']
  %s0 = inlined_call_operand.vmem [shape: bf16[512,128], index: 0, kind: input, shape index: {}]
  %s1 = inlined_call_operand.vmem [shape: bf16[128,128], index: 1, kind: input, shape index: {}]
  %s2 = inlined_call_operand.vmem [shape: bf16[512,4], index: 2, kind: output, shape index: {0}]
  %s3 = inlined_call_operand.vmem [shape: f32[16,4], index: 3, kind: output, shape index: {1}]
  %4 = xla_tuple %s2, %s3
  %s5 = sld [smem:[#allocation0]]
  $region57: #{resnet_forward.19} parent=0
    _
  %s7 = ssub.s32 1, %s5
  %s8 = scalar_select 0, %s7, %s5
  loop: start=0, step=1, limit=4
  $region2: #{resnet_forward.19} parent=0 // loop_pre_header
    _
  $region3: #{resnet_forward.19} parent=0 // loop_header
    %s10 = sphi 0, %s14
    %p11 = scmp.ge.s32.totalorder %s10, 4
    %s17 = sphi 0, %s36
    %s18 = sphi 0, %s32
    %s19 = sphi 0, %s28
    %s20 = sphi 0, %s17
    %s21 = sphi 0, %s18
    %s22 = sphi 0, %s19
    %s23 = sphi 0, %s20
    %s24 = sphi 0, %s21
    %s25 = sphi 0, %s22
    %s41 = sphi 0, %s43
    %s44 = sphi 0, %s41
    %s45 = sphi 0, %s44
    %s61 = sphi 0, %s45
    %s69 = sphi 0, %s71
    %s72 = sphi 0, %s69
    %s73 = sphi 0, %s72
    %s89 = sphi 0, %s73
    %s97 = sphi 0, %s99
    %s100 = sphi 0, %s97
    %s101 = sphi 0, %s100
    %s117 = sphi 0, %s101
    %s125 = sphi 0, %s127
    %s128 = sphi 0, %s125
    %s129 = sphi 0, %s128
    %s145 = sphi 0, %s129
  $region4: #{resnet_forward.19} parent=0 // loop_header_branch
    %13 = sbr.rel (%p11) target = $region8
  $region5: #{resnet_forward.19} parent=0 // loop_body
    %s15 = ssub.s32 %s10, 1
    %s16 = ssub.s32 %s10, 2
    %s26 = sadd.s32 1, %s19
    %p27 = scmp.ge.s32.totalorder %s26, 1
    %s28 = scalar_select %p27, 0, %s26
    %s29 = sadd.s32 1, %s18
    %s30 = scalar_select %p27, %s29, %s18
    %p31 = scmp.ge.s32.totalorder %s30, 1
    %s32 = scalar_select %p31, 0, %s30
    %s33 = sadd.s32 1, %s17
    %s34 = scalar_select %p31, %s33, %s17
    %p35 = scmp.ge.s32.totalorder %s34, 2
    %s36 = scalar_select %p35, 0, %s34
    %s37 = ssub.s32 %s17, %s36
    %s38 = ssub.s32 %s19, %s28
    %s39 = sor.u32 %s37, %s38
    %p40 = scmp.eq.s32.totalorder %s39, 0
    %s42 = sadd.s32 %s41, 1
    %s43 = scalar_select %p40, %s41, %s42
    %p46 = pneg %p40
    %p47 = scmp.eq.s32.totalorder %s10, 1
    %p48 = por %p46, %p47
    %p49 = scmp.ne.s32.totalorder %s41, %s44
    %p50 = scmp.eq.s32.totalorder %s10, 0
    %p51 = por %p49, %p50
    %p52 = scmp.ne.s32.totalorder %s41, %s44
    %p53 = scmp.eq.s32.totalorder %s15, 1
    %p54 = por %p52, %p53
    %p55 = scmp.ne.s32.totalorder %s44, %s45
    %p56 = scmp.eq.s32.totalorder %s15, 0
    %p57 = por %p55, %p56
    %p58 = scmp.ne.s32.totalorder %s44, %s45
    %p59 = scmp.eq.s32.totalorder %s16, 1
    %p60 = por %p58, %p59
    %p62 = scmp.ne.s32.totalorder %s45, %s61
    %p63 = scmp.eq.s32.totalorder %s16, 0
    %p64 = por %p62, %p63
    %s65 = ssub.s32 %s19, %s28
    %s66 = ssub.s32 %s18, %s32
    %s67 = sor.u32 %s65, %s66
    %p68 = scmp.eq.s32.totalorder %s67, 0
    %s70 = sadd.s32 %s69, 1
    %s71 = scalar_select %p68, %s69, %s70
    %p74 = pneg %p68
    %p75 = scmp.eq.s32.totalorder %s10, 1
    %p76 = por %p74, %p75
    %p77 = scmp.ne.s32.totalorder %s69, %s72
    %p78 = scmp.eq.s32.totalorder %s10, 0
    %p79 = por %p77, %p78
    %p80 = scmp.ne.s32.totalorder %s69, %s72
    %p81 = scmp.eq.s32.totalorder %s15, 1
    %p82 = por %p80, %p81
    %p83 = scmp.ne.s32.totalorder %s72, %s73
    %p84 = scmp.eq.s32.totalorder %s15, 0
    %p85 = por %p83, %p84
    %p86 = scmp.ne.s32.totalorder %s72, %s73
    %p87 = scmp.eq.s32.totalorder %s16, 1
    %p88 = por %p86, %p87
    %p90 = scmp.ne.s32.totalorder %s73, %s89
    %p91 = scmp.eq.s32.totalorder %s16, 0
    %p92 = por %p90, %p91
    %s93 = ssub.s32 %s17, %s36
    %s94 = ssub.s32 %s18, %s32
    %s95 = sor.u32 %s93, %s94
    %p96 = scmp.eq.s32.totalorder %s95, 0
    %s98 = sadd.s32 %s97, 1
    %s99 = scalar_select %p96, %s97, %s98
    %p102 = pneg %p96
    %p103 = scmp.eq.s32.totalorder %s10, 1
    %p104 = por %p102, %p103
    %p105 = scmp.ne.s32.totalorder %s97, %s100
    %p106 = scmp.eq.s32.totalorder %s10, 0
    %p107 = por %p105, %p106
    %p108 = scmp.ne.s32.totalorder %s97, %s100
    %p109 = scmp.eq.s32.totalorder %s15, 1
    %p110 = por %p108, %p109
    %p111 = scmp.ne.s32.totalorder %s100, %s101
    %p112 = scmp.eq.s32.totalorder %s15, 0
    %p113 = por %p111, %p112
    %p114 = scmp.ne.s32.totalorder %s100, %s101
    %p115 = scmp.eq.s32.totalorder %s16, 1
    %p116 = por %p114, %p115
    %p118 = scmp.ne.s32.totalorder %s101, %s117
    %p119 = scmp.eq.s32.totalorder %s16, 0
    %p120 = por %p118, %p119
    %s121 = ssub.s32 %s17, %s36
    %s122 = ssub.s32 %s18, %s32
    %s123 = sor.u32 %s121, %s122
    %p124 = scmp.eq.s32.totalorder %s123, 0
    %s126 = sadd.s32 %s125, 1
    %s127 = scalar_select %p124, %s125, %s126
    %p130 = pneg %p124
    %p131 = scmp.eq.s32.totalorder %s10, 1
    %p132 = por %p130, %p131
    %p133 = scmp.ne.s32.totalorder %s125, %s128
    %p134 = scmp.eq.s32.totalorder %s10, 0
    %p135 = por %p133, %p134
    %p136 = scmp.ne.s32.totalorder %s125, %s128
    %p137 = scmp.eq.s32.totalorder %s15, 1
    %p138 = por %p136, %p137
    %p139 = scmp.ne.s32.totalorder %s128, %s129
    %p140 = scmp.eq.s32.totalorder %s15, 0
    %p141 = por %p139, %p140
    %p142 = scmp.ne.s32.totalorder %s128, %s129
    %p143 = scmp.eq.s32.totalorder %s16, 1
    %p144 = por %p142, %p143
    %p146 = scmp.ne.s32.totalorder %s129, %s145
    %p147 = scmp.eq.s32.totalorder %s16, 0
    %p148 = por %p146, %p147
    %p149 = scmp.le.s32.totalorder 1, %s10
    %p150 = scmp.lt.s32.totalorder %s10, 3
    %p151 = pnand %p149, %p150
    %p152 = pneg %p151
    // Predicated region
    $region9: #{resnet_forward.19} parent=5 // pred_check
      _
    $region10: #{resnet_forward.19} parent=5 // pred_check_branch
      %154 = sbr.rel (%p151) target = $region12
    $region11: #{resnet_forward.19} parent=5 // pred_region
      %s155 = ssub.s32 %s10, 1
      // Predicated region
      $region13: #{resnet_forward.19} parent=11 // pred_check
        %p156 = pneg %p85
      $region14: #{resnet_forward.19} parent=11 // pred_check_branch
        %158 = sbr.rel (%p156) target = $region16
      $region15: #{resnet_forward.19} parent=11 // pred_region
        %s159 = smul.u32 16, %s22
        %p160 = scmp.lt.s32.totalorder %s159, 15
        %s161 = scalar_select %p160, %s159, 15
        %p162 = scmp.lt.s32.totalorder %s21, 0
        %s163 = scalar_select %p162, %s21, 0
        %s164 = sadd.s32 %s163, %s161
        %s165 = smul.addr %s164, 4
        %s166 = scalar_lea.vmem %s1, %s165
        %s167 = smul.u32 16, %s22
      $region16: #{resnet_forward.19} parent=11 // pred_fallthru
        _
    $region12: #{resnet_forward.19} parent=5 // pred_fallthru
      _
    %p168 = scmp.lt.s32.totalorder %s10, 2
    // Predicated region
    $region17: #{resnet_forward.19} parent=5 // pred_check
      %p169 = pneg %p168
    $region18: #{resnet_forward.19} parent=5 // pred_check_branch
      %171 = sbr.rel (%p169) target = $region20
    $region19: #{resnet_forward.19} parent=5 // pred_region
      // Predicated region
      $region21: #{resnet_forward.19} parent=19 // pred_check
        %p172 = pneg %p51
      $region22: #{resnet_forward.19} parent=19 // pred_check_branch
        %174 = sbr.rel (%p172) target = $region24
      $region23: #{resnet_forward.19} parent=19 // pred_region
        %s175 = smul.u32 32, %s17
        %p176 = scmp.lt.s32.totalorder %s175, 63
        %s177 = scalar_select %p176, %s175, 63
        %p178 = scmp.lt.s32.totalorder %s19, 0
        %s179 = scalar_select %p178, %s19, 0
        %s180 = sadd.s32 %s179, %s177
        %s181 = smul.addr %s180, 4
        %s182 = scalar_lea.vmem %s0, %s181
        %s183 = smul.u32 32, %s17
      $region24: #{resnet_forward.19} parent=19 // pred_fallthru
        _
    $region20: #{resnet_forward.19} parent=5 // pred_fallthru
      _
    %p184 = scmp.le.s32.totalorder 1, %s10
    %p185 = scmp.lt.s32.totalorder %s10, 3
    %p186 = pnand %p184, %p185
    %p187 = pneg %p186
    // Predicated region
    $region25: #{resnet_forward.19} parent=5 // pred_check
      _
    $region26: #{resnet_forward.19} parent=5 // pred_check_branch
      %189 = sbr.rel (%p186) target = $region28
    $region27: #{resnet_forward.19} parent=5 // pred_region
      %s190 = ssub.s32 %s10, 1
      %s191 = smul.u32 32, %s20
      %p192 = scmp.lt.s32.totalorder %s191, 63
      %s193 = scalar_select %p192, %s191, 63
      %p194 = scmp.lt.s32.totalorder %s22, 0
      %s195 = scalar_select %p194, %s22, 0
      %s196 = sadd.s32 %s195, %s193
      %s197 = smul.addr %s196, 4
      %s198 = scalar_lea.vmem %s0, %s197
      %p199 = pneg %p57
      %p200 = pneg %p54
      %s201 = smul.u32 16, %s22
      %p202 = scmp.lt.s32.totalorder %s201, 15
      %s203 = scalar_select %p202, %s201, 15
      %p204 = scmp.lt.s32.totalorder %s21, 0
      %s205 = scalar_select %p204, %s21, 0
      %s206 = sadd.s32 %s205, %s203
      %s207 = smul.addr %s206, 4
      %s208 = scalar_lea.vmem %s1, %s207
      %p209 = pneg %p85
      %p210 = pneg %p82
      %p211 = pneg %p113
      %p212 = pneg %p110
      %s213 = smul.u32 32, %s20
      %p214 = scmp.lt.s32.totalorder %s213, 63
      %s215 = scalar_select %p214, %s213, 63
      %p216 = scmp.lt.s32.totalorder %s21, 0
      %s217 = scalar_select %p216, %s21, 0
      %s218 = sadd.s32 %s217, %s215
      %s219 = smul.addr %s218, 4
      %s220 = scalar_lea.vmem %s2, %s219
      %p221 = pneg %p141
      %p222 = pneg %p138
      %p223 = scmp.lt.s32.totalorder %s20, 1
      %s224 = scalar_select %p223, %s20, 1
      %p225 = scmp.lt.s32.totalorder %s21, 0
      %s226 = scalar_select %p225, %s21, 0
      %s227 = sadd.s32 %s226, %s224
      %s228 = smul.addr %s227, 8
      %s229 = scalar_lea.vmem %s3, %s228
      %s230 = smul.u32 32, %s20
      %p231 = scmp.lt.s32.totalorder %s230, 63
      %s232 = scalar_select %p231, %s230, 63
      %p233 = scmp.lt.s32.totalorder %s22, 0
      %s234 = scalar_select %p233, %s22, 0
      %s235 = sadd.s32 %s234, %s232
      %s236 = smul.addr %s235, 4
      %s237 = scalar_lea.vmem %s0, %s236
      %s238 = smul.u32 32, %s20
      %s239 = smul.u32 16, %s22
      %p240 = scmp.lt.s32.totalorder %s239, 15
      %s241 = scalar_select %p240, %s239, 15
      %p242 = scmp.lt.s32.totalorder %s21, 0
      %s243 = scalar_select %p242, %s21, 0
      %s244 = sadd.s32 %s243, %s241
      %s245 = smul.addr %s244, 4
      %s246 = scalar_lea.vmem %s1, %s245
      %s247 = smul.u32 16, %s22
      %s248 = smul.u32 32, %s20
      %p249 = scmp.lt.s32.totalorder %s248, 63
      %s250 = scalar_select %p249, %s248, 63
      %p251 = scmp.lt.s32.totalorder %s21, 0
      %s252 = scalar_select %p251, %s21, 0
      %s253 = sadd.s32 %s252, %s250
      %s254 = smul.addr %s253, 4
      %s255 = scalar_lea.vmem %s2, %s254
      %s256 = smul.u32 32, %s20
      %p257 = scmp.lt.s32.totalorder %s20, 1
      %s258 = scalar_select %p257, %s20, 1
      %p259 = scmp.lt.s32.totalorder %s21, 0
      %s260 = scalar_select %p259, %s21, 0
      %s261 = sadd.s32 %s260, %s258
      %s262 = smul.addr %s261, 8
      %s263 = scalar_lea.vmem %s3, %s262
      %p265 = scmp.eq.s32.totalorder %s22, 0
      // Predicated region
      $region29: #{resnet_forward.19} parent=27 // pred_check
        %p266 = pneg %p265
      $region30: #{resnet_forward.19} parent=27 // pred_check_branch
        %268 = sbr.rel (%p266) target = $region32
      $region31: #{resnet_forward.19} parent=27 // pred_region
        %269 = vst [vmem:[#allocation2] sm:$0xff] 0.0
        %270 = vst [vmem:[#allocation2 + $0x8] sm:$0xff] 0.0
        %271 = vst [vmem:[#allocation2 + $0x10] sm:$0xff] 0.0
        %272 = vst [vmem:[#allocation2 + $0x18] sm:$0xff] 0.0
        %273 = vst [vmem:[#allocation2 + $0x20] sm:$0xff] 0.0
        %274 = vst [vmem:[#allocation2 + $0x28] sm:$0xff] 0.0
        %275 = vst [vmem:[#allocation2 + $0x30] sm:$0xff] 0.0
        %276 = vst [vmem:[#allocation2 + $0x38] sm:$0xff] 0.0
        %277 = vst [vmem:[#allocation2 + $0x40] sm:$0xff] 0.0
        %278 = vst [vmem:[#allocation2 + $0x48] sm:$0xff] 0.0
        %279 = vst [vmem:[#allocation2 + $0x50] sm:$0xff] 0.0
        %280 = vst [vmem:[#allocation2 + $0x58] sm:$0xff] 0.0
        %281 = vst [vmem:[#allocation2 + $0x60] sm:$0xff] 0.0
        %282 = vst [vmem:[#allocation2 + $0x68] sm:$0xff] 0.0
        %283 = vst [vmem:[#allocation2 + $0x70] sm:$0xff] 0.0
        %284 = vst [vmem:[#allocation2 + $0x78] sm:$0xff] 0.0
        %285 = vst [vmem:[#allocation2 + $0x80] sm:$0xff] 0.0
        %286 = vst [vmem:[#allocation2 + $0x88] sm:$0xff] 0.0
        %287 = vst [vmem:[#allocation2 + $0x90] sm:$0xff] 0.0
        %288 = vst [vmem:[#allocation2 + $0x98] sm:$0xff] 0.0
        %289 = vst [vmem:[#allocation2 + $0xa0] sm:$0xff] 0.0
        %290 = vst [vmem:[#allocation2 + $0xa8] sm:$0xff] 0.0
        %291 = vst [vmem:[#allocation2 + $0xb0] sm:$0xff] 0.0
        %292 = vst [vmem:[#allocation2 + $0xb8] sm:$0xff] 0.0
        %293 = vst [vmem:[#allocation2 + $0xc0] sm:$0xff] 0.0
        %294 = vst [vmem:[#allocation2 + $0xc8] sm:$0xff] 0.0
        %295 = vst [vmem:[#allocation2 + $0xd0] sm:$0xff] 0.0
        %296 = vst [vmem:[#allocation2 + $0xd8] sm:$0xff] 0.0
        %297 = vst [vmem:[#allocation2 + $0xe0] sm:$0xff] 0.0
        %298 = vst [vmem:[#allocation2 + $0xe8] sm:$0xff] 0.0
        %299 = vst [vmem:[#allocation2 + $0xf0] sm:$0xff] 0.0
        %300 = vst [vmem:[#allocation2 + $0xf8] sm:$0xff] 0.0
      $region32: #{resnet_forward.19} parent=27 // pred_fallthru
        _
      %v301 = vld [vmem:[#allocation2] sm:$0xff]
      %v302 = vld [vmem:[#allocation2 + $0x8] sm:$0xff]
      %v303 = vld [vmem:[#allocation2 + $0x10] sm:$0xff]
      %v304 = vld [vmem:[#allocation2 + $0x18] sm:$0xff]
      %v305 = vld [vmem:[#allocation2 + $0x20] sm:$0xff]
      %v306 = vld [vmem:[#allocation2 + $0x28] sm:$0xff]
      %v307 = vld [vmem:[#allocation2 + $0x30] sm:$0xff]
      %v308 = vld [vmem:[#allocation2 + $0x38] sm:$0xff]
      %v309 = vld [vmem:[#allocation2 + $0x40] sm:$0xff]
      %v310 = vld [vmem:[#allocation2 + $0x48] sm:$0xff]
      %v311 = vld [vmem:[#allocation2 + $0x50] sm:$0xff]
      %v312 = vld [vmem:[#allocation2 + $0x58] sm:$0xff]
      %v313 = vld [vmem:[#allocation2 + $0x60] sm:$0xff]
      %v314 = vld [vmem:[#allocation2 + $0x68] sm:$0xff]
      %v315 = vld [vmem:[#allocation2 + $0x70] sm:$0xff]
      %v316 = vld [vmem:[#allocation2 + $0x78] sm:$0xff]
      %v317 = vld [vmem:[#allocation2 + $0x80] sm:$0xff]
      %v318 = vld [vmem:[#allocation2 + $0x88] sm:$0xff]
      %v319 = vld [vmem:[#allocation2 + $0x90] sm:$0xff]
      %v320 = vld [vmem:[#allocation2 + $0x98] sm:$0xff]
      %v321 = vld [vmem:[#allocation2 + $0xa0] sm:$0xff]
      %v322 = vld [vmem:[#allocation2 + $0xa8] sm:$0xff]
      %v323 = vld [vmem:[#allocation2 + $0xb0] sm:$0xff]
      %v324 = vld [vmem:[#allocation2 + $0xb8] sm:$0xff]
      %v325 = vld [vmem:[#allocation2 + $0xc0] sm:$0xff]
      %v326 = vld [vmem:[#allocation2 + $0xc8] sm:$0xff]
      %v327 = vld [vmem:[#allocation2 + $0xd0] sm:$0xff]
      %v328 = vld [vmem:[#allocation2 + $0xd8] sm:$0xff]
      %v329 = vld [vmem:[#allocation2 + $0xe0] sm:$0xff]
      %v330 = vld [vmem:[#allocation2 + $0xe8] sm:$0xff]
      %v331 = vld [vmem:[#allocation2 + $0xf0] sm:$0xff]
      %v332 = vld [vmem:[#allocation2 + $0xf8] sm:$0xff]
      %v333 = vld [vmem:[%s237] sm:$0xf]
      %v334 = vld [vmem:[%s237 + $0x4] sm:$0xf]
      %v335 = vld [vmem:[%s237 + $0x8] sm:$0xf]
      %v336 = vld [vmem:[%s237 + $0xc] sm:$0xf]
      %v337 = vld [vmem:[%s237 + $0x10] sm:$0xf]
      %v338 = vld [vmem:[%s237 + $0x14] sm:$0xf]
      %v339 = vld [vmem:[%s237 + $0x18] sm:$0xf]
      %v340 = vld [vmem:[%s237 + $0x1c] sm:$0xf]
      %v341 = vld [vmem:[%s237 + $0x20] sm:$0xf]
      %v342 = vld [vmem:[%s237 + $0x24] sm:$0xf]
      %v343 = vld [vmem:[%s237 + $0x28] sm:$0xf]
      %v344 = vld [vmem:[%s237 + $0x2c] sm:$0xf]
      %v345 = vld [vmem:[%s237 + $0x30] sm:$0xf]
      %v346 = vld [vmem:[%s237 + $0x34] sm:$0xf]
      %v347 = vld [vmem:[%s237 + $0x38] sm:$0xf]
      %v348 = vld [vmem:[%s237 + $0x3c] sm:$0xf]
      %v349 = vld [vmem:[%s237 + $0x40] sm:$0xf]
      %v350 = vld [vmem:[%s237 + $0x44] sm:$0xf]
      %v351 = vld [vmem:[%s237 + $0x48] sm:$0xf]
      %v352 = vld [vmem:[%s237 + $0x4c] sm:$0xf]
      %v353 = vld [vmem:[%s237 + $0x50] sm:$0xf]
      %v354 = vld [vmem:[%s237 + $0x54] sm:$0xf]
      %v355 = vld [vmem:[%s237 + $0x58] sm:$0xf]
      %v356 = vld [vmem:[%s237 + $0x5c] sm:$0xf]
      %v357 = vld [vmem:[%s237 + $0x60] sm:$0xf]
      %v358 = vld [vmem:[%s237 + $0x64] sm:$0xf]
      %v359 = vld [vmem:[%s237 + $0x68] sm:$0xf]
      %v360 = vld [vmem:[%s237 + $0x6c] sm:$0xf]
      %v361 = vld [vmem:[%s237 + $0x70] sm:$0xf]
      %v362 = vld [vmem:[%s237 + $0x74] sm:$0xf]
      %v363 = vld [vmem:[%s237 + $0x78] sm:$0xf]
      %v364 = vld [vmem:[%s237 + $0x7c] sm:$0xf]
      %v365 = vld [vmem:[%s246] sm:$0xf]
      %v366 = vld [vmem:[%s246 + $0x4] sm:$0xf]
      %v367 = vld [vmem:[%s246 + $0x8] sm:$0xf]
      %v368 = vld [vmem:[%s246 + $0xc] sm:$0xf]
      %v369 = vld [vmem:[%s246 + $0x10] sm:$0xf]
      %v370 = vld [vmem:[%s246 + $0x14] sm:$0xf]
      %v371 = vld [vmem:[%s246 + $0x18] sm:$0xf]
      %v372 = vld [vmem:[%s246 + $0x1c] sm:$0xf]
      %v373 = vld [vmem:[%s246 + $0x20] sm:$0xf]
      %v374 = vld [vmem:[%s246 + $0x24] sm:$0xf]
      %v375 = vld [vmem:[%s246 + $0x28] sm:$0xf]
      %v376 = vld [vmem:[%s246 + $0x2c] sm:$0xf]
      %v377 = vld [vmem:[%s246 + $0x30] sm:$0xf]
      %v378 = vld [vmem:[%s246 + $0x34] sm:$0xf]
      %v379 = vld [vmem:[%s246 + $0x38] sm:$0xf]
      %v380 = vld [vmem:[%s246 + $0x3c] sm:$0xf]
      %v413 = vunpack.c.l.b16 %v333
      %v414 = vunpack.c.l.b16 %v334
      %v415 = vunpack.c.l.b16 %v335
      %v416 = vunpack.c.l.b16 %v336
      %v417 = vunpack.c.l.b16 %v337
      %v418 = vunpack.c.l.b16 %v338
      %v419 = vunpack.c.l.b16 %v339
      %v420 = vunpack.c.l.b16 %v340
      %v421 = vunpack.c.l.b16 %v341
      %v422 = vunpack.c.l.b16 %v342
      %v423 = vunpack.c.l.b16 %v343
      %v424 = vunpack.c.l.b16 %v344
      %v425 = vunpack.c.l.b16 %v345
      %v426 = vunpack.c.l.b16 %v346
      %v427 = vunpack.c.l.b16 %v347
      %v428 = vunpack.c.l.b16 %v348
      %v429 = vunpack.c.l.b16 %v349
      %v430 = vunpack.c.l.b16 %v350
      %v431 = vunpack.c.l.b16 %v351
      %v432 = vunpack.c.l.b16 %v352
      %v433 = vunpack.c.l.b16 %v353
      %v434 = vunpack.c.l.b16 %v354
      %v435 = vunpack.c.l.b16 %v355
      %v436 = vunpack.c.l.b16 %v356
      %v437 = vunpack.c.l.b16 %v357
      %v438 = vunpack.c.l.b16 %v358
      %v439 = vunpack.c.l.b16 %v359
      %v440 = vunpack.c.l.b16 %v360
      %v441 = vunpack.c.l.b16 %v361
      %v442 = vunpack.c.l.b16 %v362
      %v443 = vunpack.c.l.b16 %v363
      %v444 = vunpack.c.l.b16 %v364
      %v445 = vpack.c.b16 %v414, %v413
      %v446 = vpack.c.b16 %v416, %v415
      %v447 = vpack.c.b16 %v418, %v417
      %v448 = vpack.c.b16 %v420, %v419
      %v449 = vpack.c.b16 %v422, %v421
      %v450 = vpack.c.b16 %v424, %v423
      %v451 = vpack.c.b16 %v426, %v425
      %v452 = vpack.c.b16 %v428, %v427
      %v453 = vpack.c.b16 %v430, %v429
      %v454 = vpack.c.b16 %v432, %v431
      %v455 = vpack.c.b16 %v434, %v433
      %v456 = vpack.c.b16 %v436, %v435
      %v457 = vpack.c.b16 %v438, %v437
      %v458 = vpack.c.b16 %v440, %v439
      %v459 = vpack.c.b16 %v442, %v441
      %v460 = vpack.c.b16 %v444, %v443
      %v493 = vunpack.c.l.b16 %v365
      %v494 = vunpack.c.l.b16 %v366
      %v495 = vunpack.c.l.b16 %v367
      %v496 = vunpack.c.l.b16 %v368
      %v497 = vunpack.c.l.b16 %v369
      %v498 = vunpack.c.l.b16 %v370
      %v499 = vunpack.c.l.b16 %v371
      %v500 = vunpack.c.l.b16 %v372
      %v501 = vunpack.c.l.b16 %v373
      %v502 = vunpack.c.l.b16 %v374
      %v503 = vunpack.c.l.b16 %v375
      %v504 = vunpack.c.l.b16 %v376
      %v505 = vunpack.c.l.b16 %v377
      %v506 = vunpack.c.l.b16 %v378
      %v507 = vunpack.c.l.b16 %v379
      %v508 = vunpack.c.l.b16 %v380
      %v509 = vpack.c.b16 %v494, %v493
      %v510 = vpack.c.b16 %v496, %v495
      %v511 = vpack.c.b16 %v498, %v497
      %v512 = vpack.c.b16 %v500, %v499
      %v513 = vpack.c.b16 %v502, %v501
      %v514 = vpack.c.b16 %v504, %v503
      %v515 = vpack.c.b16 %v506, %v505
      %v516 = vpack.c.b16 %v508, %v507
      %525 = vmatprep.subr.bf16.mxu0 0
      %526 = vmatpush1.bf16.msra.mxu0 %v516
      %527 = vmatprep.subr.bf16.mxu0 0
      %528 = vmatpush1.bf16.msra.mxu0 %v515
      %529 = vmatprep.subr.bf16.mxu0 0
      %530 = vmatpush1.bf16.msra.mxu0 %v514
      %531 = vmatprep.subr.bf16.mxu0 0
      %532 = vmatpush1.bf16.msra.mxu0 %v513
      %533 = vmatprep.subr.bf16.mxu0 0
      %534 = vmatpush1.bf16.msra.mxu0 %v512
      %535 = vmatprep.subr.bf16.mxu0 0
      %536 = vmatpush1.bf16.msra.mxu0 %v511
      %537 = vmatprep.subr.bf16.mxu0 0
      %538 = vmatpush1.bf16.msra.mxu0 %v510
      %539 = vmatprep.subr.bf16.mxu0 0
      %540 = vmatpush1.bf16.msra.mxu0 %v509
      %541 = vmatprep.subr.bf16.mxu0 0
      %542 = vmatpush2.bf16.msra.mxu0 0
      %543 = vmatprep.subr.bf16.mxu0 0
      %544 = vmatpush2.bf16.msra.mxu0 0
      %545 = vmatprep.subr.bf16.mxu0 0
      %546 = vmatpush2.bf16.msra.mxu0 0
      %547 = vmatprep.subr.bf16.mxu0 0
      %548 = vmatpush2.bf16.msra.mxu0 0
      %549 = vmatprep.subr.bf16.mxu0 0
      %550 = vmatpush2.bf16.msra.mxu0 0
      %551 = vmatprep.subr.bf16.mxu0 0
      %552 = vmatpush2.bf16.msra.mxu0 0
      %553 = vmatprep.subr.bf16.mxu0 0
      %554 = vmatpush2.bf16.msra.mxu0 0
      %555 = vmatprep.subr.bf16.mxu0 0
      %556 = vmatpush2.bf16.msra.mxu0 0
      %557 = vmatprep.mubr.bf16.mxu0 0
      %558 = vmatmul.mubr.bf16.gmra.mxu0 %v445
      %v559 = vpop.f32.mrf.mxu0
      %v560 = vadd.f32 0.0, %v559
      %v561 = vpop.f32.mrf.mxu0
      %v562 = vpop.f32.mrf.mxu0
      %v563 = vadd.f32 0.0, %v562
      %v564 = vpop.f32.mrf.mxu0
      %565 = vmatprep.mubr.bf16.mxu0 0
      %566 = vmatmul.mubr.bf16.gmra.mxu0 %v446
      %v567 = vpop.f32.mrf.mxu0
      %v568 = vadd.f32 0.0, %v567
      %v569 = vpop.f32.mrf.mxu0
      %v570 = vpop.f32.mrf.mxu0
      %v571 = vadd.f32 0.0, %v570
      %v572 = vpop.f32.mrf.mxu0
      %573 = vmatprep.mubr.bf16.mxu0 0
      %574 = vmatmul.mubr.bf16.gmra.mxu0 %v447
      %v575 = vpop.f32.mrf.mxu0
      %v576 = vadd.f32 0.0, %v575
      %v577 = vpop.f32.mrf.mxu0
      %v578 = vpop.f32.mrf.mxu0
      %v579 = vadd.f32 0.0, %v578
      %v580 = vpop.f32.mrf.mxu0
      %581 = vmatprep.mubr.bf16.mxu0 0
      %582 = vmatmul.mubr.bf16.gmra.mxu0 %v448
      %v583 = vpop.f32.mrf.mxu0
      %v584 = vadd.f32 0.0, %v583
      %v585 = vpop.f32.mrf.mxu0
      %v586 = vpop.f32.mrf.mxu0
      %v587 = vadd.f32 0.0, %v586
      %v588 = vpop.f32.mrf.mxu0
      %589 = vmatprep.mubr.bf16.mxu0 0
      %590 = vmatmul.mubr.bf16.gmra.mxu0 %v449
      %v591 = vpop.f32.mrf.mxu0
      %v592 = vadd.f32 0.0, %v591
      %v593 = vpop.f32.mrf.mxu0
      %v594 = vpop.f32.mrf.mxu0
      %v595 = vadd.f32 0.0, %v594
      %v596 = vpop.f32.mrf.mxu0
      %597 = vmatprep.mubr.bf16.mxu0 0
      %598 = vmatmul.mubr.bf16.gmra.mxu0 %v450
      %v599 = vpop.f32.mrf.mxu0
      %v600 = vadd.f32 0.0, %v599
      %v601 = vpop.f32.mrf.mxu0
      %v602 = vpop.f32.mrf.mxu0
      %v603 = vadd.f32 0.0, %v602
      %v604 = vpop.f32.mrf.mxu0
      %605 = vmatprep.mubr.bf16.mxu0 0
      %606 = vmatmul.mubr.bf16.gmra.mxu0 %v451
      %v607 = vpop.f32.mrf.mxu0
      %v608 = vadd.f32 0.0, %v607
      %v609 = vpop.f32.mrf.mxu0
      %v610 = vpop.f32.mrf.mxu0
      %v611 = vadd.f32 0.0, %v610
      %v612 = vpop.f32.mrf.mxu0
      %613 = vmatprep.mubr.bf16.mxu0 0
      %614 = vmatmul.mubr.bf16.gmra.mxu0 %v452
      %v615 = vpop.f32.mrf.mxu0
      %v616 = vadd.f32 0.0, %v615
      %v617 = vpop.f32.mrf.mxu0
      %v618 = vpop.f32.mrf.mxu0
      %v619 = vadd.f32 0.0, %v618
      %v620 = vpop.f32.mrf.mxu0
      %621 = vmatprep.mubr.bf16.mxu0 0
      %622 = vmatmul.mubr.bf16.gmra.mxu0 %v453
      %v623 = vpop.f32.mrf.mxu0
      %v624 = vadd.f32 0.0, %v623
      %v625 = vpop.f32.mrf.mxu0
      %v626 = vpop.f32.mrf.mxu0
      %v627 = vadd.f32 0.0, %v626
      %v628 = vpop.f32.mrf.mxu0
      %629 = vmatprep.mubr.bf16.mxu0 0
      %630 = vmatmul.mubr.bf16.gmra.mxu0 %v454
      %v631 = vpop.f32.mrf.mxu0
      %v632 = vadd.f32 0.0, %v631
      %v633 = vpop.f32.mrf.mxu0
      %v634 = vpop.f32.mrf.mxu0
      %v635 = vadd.f32 0.0, %v634
      %v636 = vpop.f32.mrf.mxu0
      %637 = vmatprep.mubr.bf16.mxu0 0
      %638 = vmatmul.mubr.bf16.gmra.mxu0 %v455
      %v639 = vpop.f32.mrf.mxu0
      %v640 = vadd.f32 0.0, %v639
      %v641 = vpop.f32.mrf.mxu0
      %v642 = vpop.f32.mrf.mxu0
      %v643 = vadd.f32 0.0, %v642
      %v644 = vpop.f32.mrf.mxu0
      %645 = vmatprep.mubr.bf16.mxu0 0
      %646 = vmatmul.mubr.bf16.gmra.mxu0 %v456
      %v647 = vpop.f32.mrf.mxu0
      %v648 = vadd.f32 0.0, %v647
      %v649 = vpop.f32.mrf.mxu0
      %v650 = vpop.f32.mrf.mxu0
      %v651 = vadd.f32 0.0, %v650
      %v652 = vpop.f32.mrf.mxu0
      %653 = vmatprep.mubr.bf16.mxu0 0
      %654 = vmatmul.mubr.bf16.gmra.mxu0 %v457
      %v655 = vpop.f32.mrf.mxu0
      %v656 = vadd.f32 0.0, %v655
      %v657 = vpop.f32.mrf.mxu0
      %v658 = vpop.f32.mrf.mxu0
      %v659 = vadd.f32 0.0, %v658
      %v660 = vpop.f32.mrf.mxu0
      %661 = vmatprep.mubr.bf16.mxu0 0
      %662 = vmatmul.mubr.bf16.gmra.mxu0 %v458
      %v663 = vpop.f32.mrf.mxu0
      %v664 = vadd.f32 0.0, %v663
      %v665 = vpop.f32.mrf.mxu0
      %v666 = vpop.f32.mrf.mxu0
      %v667 = vadd.f32 0.0, %v666
      %v668 = vpop.f32.mrf.mxu0
      %669 = vmatprep.mubr.bf16.mxu0 0
      %670 = vmatmul.mubr.bf16.gmra.mxu0 %v459
      %v671 = vpop.f32.mrf.mxu0
      %v672 = vadd.f32 0.0, %v671
      %v673 = vpop.f32.mrf.mxu0
      %v674 = vpop.f32.mrf.mxu0
      %v675 = vadd.f32 0.0, %v674
      %v676 = vpop.f32.mrf.mxu0
      %677 = vmatprep.mubr.bf16.mxu0 0
      %678 = vmatmul.mubr.bf16.gmra.mxu0 %v460
      %v679 = vpop.f32.mrf.mxu0
      %v680 = vadd.f32 0.0, %v679
      %v681 = vpop.f32.mrf.mxu0
      %v682 = vpop.f32.mrf.mxu0
      %v683 = vadd.f32 0.0, %v682
      %v684 = vpop.f32.mrf.mxu0
      %685 = vdwg.mxu0
      %v686 = vadd.f32 %v301, %v560
      %v687 = vadd.f32 %v302, %v563
      %v688 = vadd.f32 %v303, %v568
      %v689 = vadd.f32 %v304, %v571
      %v690 = vadd.f32 %v305, %v576
      %v691 = vadd.f32 %v306, %v579
      %v692 = vadd.f32 %v307, %v584
      %v693 = vadd.f32 %v308, %v587
      %v694 = vadd.f32 %v309, %v592
      %v695 = vadd.f32 %v310, %v595
      %v696 = vadd.f32 %v311, %v600
      %v697 = vadd.f32 %v312, %v603
      %v698 = vadd.f32 %v313, %v608
      %v699 = vadd.f32 %v314, %v611
      %v700 = vadd.f32 %v315, %v616
      %v701 = vadd.f32 %v316, %v619
      %v702 = vadd.f32 %v317, %v624
      %v703 = vadd.f32 %v318, %v627
      %v704 = vadd.f32 %v319, %v632
      %v705 = vadd.f32 %v320, %v635
      %v706 = vadd.f32 %v321, %v640
      %v707 = vadd.f32 %v322, %v643
      %v708 = vadd.f32 %v323, %v648
      %v709 = vadd.f32 %v324, %v651
      %v710 = vadd.f32 %v325, %v656
      %v711 = vadd.f32 %v326, %v659
      %v712 = vadd.f32 %v327, %v664
      %v713 = vadd.f32 %v328, %v667
      %v714 = vadd.f32 %v329, %v672
      %v715 = vadd.f32 %v330, %v675
      %v716 = vadd.f32 %v331, %v680
      %v717 = vadd.f32 %v332, %v683
      %718 = vst [vmem:[#allocation2] sm:$0xff] %v686
      %719 = vst [vmem:[#allocation2 + $0x8] sm:$0xff] %v687
      %720 = vst [vmem:[#allocation2 + $0x10] sm:$0xff] %v688
      %721 = vst [vmem:[#allocation2 + $0x18] sm:$0xff] %v689
      %722 = vst [vmem:[#allocation2 + $0x20] sm:$0xff] %v690
      %723 = vst [vmem:[#allocation2 + $0x28] sm:$0xff] %v691
      %724 = vst [vmem:[#allocation2 + $0x30] sm:$0xff] %v692
      %725 = vst [vmem:[#allocation2 + $0x38] sm:$0xff] %v693
      %726 = vst [vmem:[#allocation2 + $0x40] sm:$0xff] %v694
      %727 = vst [vmem:[#allocation2 + $0x48] sm:$0xff] %v695
      %728 = vst [vmem:[#allocation2 + $0x50] sm:$0xff] %v696
      %729 = vst [vmem:[#allocation2 + $0x58] sm:$0xff] %v697
      %730 = vst [vmem:[#allocation2 + $0x60] sm:$0xff] %v698
      %731 = vst [vmem:[#allocation2 + $0x68] sm:$0xff] %v699
      %732 = vst [vmem:[#allocation2 + $0x70] sm:$0xff] %v700
      %733 = vst [vmem:[#allocation2 + $0x78] sm:$0xff] %v701
      %734 = vst [vmem:[#allocation2 + $0x80] sm:$0xff] %v702
      %735 = vst [vmem:[#allocation2 + $0x88] sm:$0xff] %v703
      %736 = vst [vmem:[#allocation2 + $0x90] sm:$0xff] %v704
      %737 = vst [vmem:[#allocation2 + $0x98] sm:$0xff] %v705
      %738 = vst [vmem:[#allocation2 + $0xa0] sm:$0xff] %v706
      %739 = vst [vmem:[#allocation2 + $0xa8] sm:$0xff] %v707
      %740 = vst [vmem:[#allocation2 + $0xb0] sm:$0xff] %v708
      %741 = vst [vmem:[#allocation2 + $0xb8] sm:$0xff] %v709
      %742 = vst [vmem:[#allocation2 + $0xc0] sm:$0xff] %v710
      %743 = vst [vmem:[#allocation2 + $0xc8] sm:$0xff] %v711
      %744 = vst [vmem:[#allocation2 + $0xd0] sm:$0xff] %v712
      %745 = vst [vmem:[#allocation2 + $0xd8] sm:$0xff] %v713
      %746 = vst [vmem:[#allocation2 + $0xe0] sm:$0xff] %v714
      %747 = vst [vmem:[#allocation2 + $0xe8] sm:$0xff] %v715
      %748 = vst [vmem:[#allocation2 + $0xf0] sm:$0xff] %v716
      %749 = vst [vmem:[#allocation2 + $0xf8] sm:$0xff] %v717
      // Predicated region
      $region33: #{resnet_forward.19} parent=27 // pred_check
        %p750 = pneg %p265
      $region34: #{resnet_forward.19} parent=27 // pred_check_branch
        %752 = sbr.rel (%p750) target = $region36
      $region35: #{resnet_forward.19} parent=27 // pred_region
        %v753 = vld [vmem:[#allocation2] sm:$0xff]
        %v754 = vld [vmem:[#allocation2 + $0x8] sm:$0xff]
        %v755 = vld [vmem:[#allocation2 + $0x10] sm:$0xff]
        %v756 = vld [vmem:[#allocation2 + $0x18] sm:$0xff]
        %v757 = vld [vmem:[#allocation2 + $0x20] sm:$0xff]
        %v758 = vld [vmem:[#allocation2 + $0x28] sm:$0xff]
        %v759 = vld [vmem:[#allocation2 + $0x30] sm:$0xff]
        %v760 = vld [vmem:[#allocation2 + $0x38] sm:$0xff]
        %v761 = vld [vmem:[#allocation2 + $0x40] sm:$0xff]
        %v762 = vld [vmem:[#allocation2 + $0x48] sm:$0xff]
        %v763 = vld [vmem:[#allocation2 + $0x50] sm:$0xff]
        %v764 = vld [vmem:[#allocation2 + $0x58] sm:$0xff]
        %v765 = vld [vmem:[#allocation2 + $0x60] sm:$0xff]
        %v766 = vld [vmem:[#allocation2 + $0x68] sm:$0xff]
        %v767 = vld [vmem:[#allocation2 + $0x70] sm:$0xff]
        %v768 = vld [vmem:[#allocation2 + $0x78] sm:$0xff]
        %v769 = vld [vmem:[#allocation2 + $0x80] sm:$0xff]
        %v770 = vld [vmem:[#allocation2 + $0x88] sm:$0xff]
        %v771 = vld [vmem:[#allocation2 + $0x90] sm:$0xff]
        %v772 = vld [vmem:[#allocation2 + $0x98] sm:$0xff]
        %v773 = vld [vmem:[#allocation2 + $0xa0] sm:$0xff]
        %v774 = vld [vmem:[#allocation2 + $0xa8] sm:$0xff]
        %v775 = vld [vmem:[#allocation2 + $0xb0] sm:$0xff]
        %v776 = vld [vmem:[#allocation2 + $0xb8] sm:$0xff]
        %v777 = vld [vmem:[#allocation2 + $0xc0] sm:$0xff]
        %v778 = vld [vmem:[#allocation2 + $0xc8] sm:$0xff]
        %v779 = vld [vmem:[#allocation2 + $0xd0] sm:$0xff]
        %v780 = vld [vmem:[#allocation2 + $0xd8] sm:$0xff]
        %v781 = vld [vmem:[#allocation2 + $0xe0] sm:$0xff]
        %v782 = vld [vmem:[#allocation2 + $0xe8] sm:$0xff]
        %v783 = vld [vmem:[#allocation2 + $0xf0] sm:$0xff]
        %v784 = vld [vmem:[#allocation2 + $0xf8] sm:$0xff]
        %v785 = vpack.c.bf16 %v754, %v753
        %v786 = vpack.c.bf16 %v756, %v755
        %v787 = vpack.c.bf16 %v758, %v757
        %v788 = vpack.c.bf16 %v760, %v759
        %v789 = vpack.c.bf16 %v762, %v761
        %v790 = vpack.c.bf16 %v764, %v763
        %v791 = vpack.c.bf16 %v766, %v765
        %v792 = vpack.c.bf16 %v768, %v767
        %v793 = vpack.c.bf16 %v770, %v769
        %v794 = vpack.c.bf16 %v772, %v771
        %v795 = vpack.c.bf16 %v774, %v773
        %v796 = vpack.c.bf16 %v776, %v775
        %v797 = vpack.c.bf16 %v778, %v777
        %v798 = vpack.c.bf16 %v780, %v779
        %v799 = vpack.c.bf16 %v782, %v781
        %v800 = vpack.c.bf16 %v784, %v783
        %v817 = vunpack.c.l.b16 %v785
        %v818 = vunpack.c.h.b16 %v785
        %v819 = vunpack.c.l.b16 %v786
        %v820 = vunpack.c.h.b16 %v786
        %v821 = vunpack.c.l.b16 %v787
        %v822 = vunpack.c.h.b16 %v787
        %v823 = vunpack.c.l.b16 %v788
        %v824 = vunpack.c.h.b16 %v788
        %v825 = vunpack.c.l.b16 %v789
        %v826 = vunpack.c.h.b16 %v789
        %v827 = vunpack.c.l.b16 %v790
        %v828 = vunpack.c.h.b16 %v790
        %v829 = vunpack.c.l.b16 %v791
        %v830 = vunpack.c.h.b16 %v791
        %v831 = vunpack.c.l.b16 %v792
        %v832 = vunpack.c.h.b16 %v792
        %v833 = vunpack.c.l.b16 %v793
        %v834 = vunpack.c.h.b16 %v793
        %v835 = vunpack.c.l.b16 %v794
        %v836 = vunpack.c.h.b16 %v794
        %v837 = vunpack.c.l.b16 %v795
        %v838 = vunpack.c.h.b16 %v795
        %v839 = vunpack.c.l.b16 %v796
        %v840 = vunpack.c.h.b16 %v796
        %v841 = vunpack.c.l.b16 %v797
        %v842 = vunpack.c.h.b16 %v797
        %v843 = vunpack.c.l.b16 %v798
        %v844 = vunpack.c.h.b16 %v798
        %v845 = vunpack.c.l.b16 %v799
        %v846 = vunpack.c.h.b16 %v799
        %v847 = vunpack.c.l.b16 %v800
        %v848 = vunpack.c.h.b16 %v800
        %v849 = vpack.c.b16 %v817, %v817
        %v850 = vpack.c.b16 %v818, %v818
        %v851 = vpack.c.b16 %v819, %v819
        %v852 = vpack.c.b16 %v820, %v820
        %v853 = vpack.c.b16 %v821, %v821
        %v854 = vpack.c.b16 %v822, %v822
        %v855 = vpack.c.b16 %v823, %v823
        %v856 = vpack.c.b16 %v824, %v824
        %v857 = vpack.c.b16 %v825, %v825
        %v858 = vpack.c.b16 %v826, %v826
        %v859 = vpack.c.b16 %v827, %v827
        %v860 = vpack.c.b16 %v828, %v828
        %v861 = vpack.c.b16 %v829, %v829
        %v862 = vpack.c.b16 %v830, %v830
        %v863 = vpack.c.b16 %v831, %v831
        %v864 = vpack.c.b16 %v832, %v832
        %v865 = vpack.c.b16 %v833, %v833
        %v866 = vpack.c.b16 %v834, %v834
        %v867 = vpack.c.b16 %v835, %v835
        %v868 = vpack.c.b16 %v836, %v836
        %v869 = vpack.c.b16 %v837, %v837
        %v870 = vpack.c.b16 %v838, %v838
        %v871 = vpack.c.b16 %v839, %v839
        %v872 = vpack.c.b16 %v840, %v840
        %v873 = vpack.c.b16 %v841, %v841
        %v874 = vpack.c.b16 %v842, %v842
        %v875 = vpack.c.b16 %v843, %v843
        %v876 = vpack.c.b16 %v844, %v844
        %v877 = vpack.c.b16 %v845, %v845
        %v878 = vpack.c.b16 %v846, %v846
        %v879 = vpack.c.b16 %v847, %v847
        %v880 = vpack.c.b16 %v848, %v848
        %vm913 = vcmask 27648
        %914 = vst.msk [vmem:[%s255] sm:$0xf] %vm913, %v849
        %915 = vst.msk [vmem:[%s255 + $0x4] sm:$0xf] %vm913, %v850
        %916 = vst.msk [vmem:[%s255 + $0x8] sm:$0xf] %vm913, %v851
        %917 = vst.msk [vmem:[%s255 + $0xc] sm:$0xf] %vm913, %v852
        %918 = vst.msk [vmem:[%s255 + $0x10] sm:$0xf] %vm913, %v853
        %919 = vst.msk [vmem:[%s255 + $0x14] sm:$0xf] %vm913, %v854
        %920 = vst.msk [vmem:[%s255 + $0x18] sm:$0xf] %vm913, %v855
        %921 = vst.msk [vmem:[%s255 + $0x1c] sm:$0xf] %vm913, %v856
        %922 = vst.msk [vmem:[%s255 + $0x20] sm:$0xf] %vm913, %v857
        %923 = vst.msk [vmem:[%s255 + $0x24] sm:$0xf] %vm913, %v858
        %924 = vst.msk [vmem:[%s255 + $0x28] sm:$0xf] %vm913, %v859
        %925 = vst.msk [vmem:[%s255 + $0x2c] sm:$0xf] %vm913, %v860
        %926 = vst.msk [vmem:[%s255 + $0x30] sm:$0xf] %vm913, %v861
        %927 = vst.msk [vmem:[%s255 + $0x34] sm:$0xf] %vm913, %v862
        %928 = vst.msk [vmem:[%s255 + $0x38] sm:$0xf] %vm913, %v863
        %929 = vst.msk [vmem:[%s255 + $0x3c] sm:$0xf] %vm913, %v864
        %930 = vst.msk [vmem:[%s255 + $0x40] sm:$0xf] %vm913, %v865
        %931 = vst.msk [vmem:[%s255 + $0x44] sm:$0xf] %vm913, %v866
        %932 = vst.msk [vmem:[%s255 + $0x48] sm:$0xf] %vm913, %v867
        %933 = vst.msk [vmem:[%s255 + $0x4c] sm:$0xf] %vm913, %v868
        %934 = vst.msk [vmem:[%s255 + $0x50] sm:$0xf] %vm913, %v869
        %935 = vst.msk [vmem:[%s255 + $0x54] sm:$0xf] %vm913, %v870
        %936 = vst.msk [vmem:[%s255 + $0x58] sm:$0xf] %vm913, %v871
        %937 = vst.msk [vmem:[%s255 + $0x5c] sm:$0xf] %vm913, %v872
        %938 = vst.msk [vmem:[%s255 + $0x60] sm:$0xf] %vm913, %v873
        %939 = vst.msk [vmem:[%s255 + $0x64] sm:$0xf] %vm913, %v874
        %940 = vst.msk [vmem:[%s255 + $0x68] sm:$0xf] %vm913, %v875
        %941 = vst.msk [vmem:[%s255 + $0x6c] sm:$0xf] %vm913, %v876
        %942 = vst.msk [vmem:[%s255 + $0x70] sm:$0xf] %vm913, %v877
        %943 = vst.msk [vmem:[%s255 + $0x74] sm:$0xf] %vm913, %v878
        %944 = vst.msk [vmem:[%s255 + $0x78] sm:$0xf] %vm913, %v879
        %945 = vst.msk [vmem:[%s255 + $0x7c] sm:$0xf] %vm913, %v880
        %vm946 = vcmask 31744
        %v947 = vsel %vm946, %v753, 0.0
        %v948 = vsel %vm946, %v754, 0.0
        %v949 = vadd.f32 %v947, %v948
        %v950 = vsel %vm946, %v755, 0.0
        %v951 = vadd.f32 %v949, %v950
        %v952 = vsel %vm946, %v756, 0.0
        %v953 = vadd.f32 %v951, %v952
        %v954 = vsel %vm946, %v757, 0.0
        %v955 = vadd.f32 %v953, %v954
        %v956 = vsel %vm946, %v758, 0.0
        %v957 = vadd.f32 %v955, %v956
        %v958 = vsel %vm946, %v759, 0.0
        %v959 = vadd.f32 %v957, %v958
        %v960 = vsel %vm946, %v760, 0.0
        %v961 = vadd.f32 %v959, %v960
        %v962 = vsel %vm946, %v761, 0.0
        %v963 = vadd.f32 %v961, %v962
        %v964 = vsel %vm946, %v762, 0.0
        %v965 = vadd.f32 %v963, %v964
        %v966 = vsel %vm946, %v763, 0.0
        %v967 = vadd.f32 %v965, %v966
        %v968 = vsel %vm946, %v764, 0.0
        %v969 = vadd.f32 %v967, %v968
        %v970 = vsel %vm946, %v765, 0.0
        %v971 = vadd.f32 %v969, %v970
        %v972 = vsel %vm946, %v766, 0.0
        %v973 = vadd.f32 %v971, %v972
        %v974 = vsel %vm946, %v767, 0.0
        %v975 = vadd.f32 %v973, %v974
        %v976 = vsel %vm946, %v768, 0.0
        %v977 = vadd.f32 %v975, %v976
        %v978 = vsel %vm946, %v769, 0.0
        %v979 = vadd.f32 %v977, %v978
        %v980 = vsel %vm946, %v770, 0.0
        %v981 = vadd.f32 %v979, %v980
        %v982 = vsel %vm946, %v771, 0.0
        %v983 = vadd.f32 %v981, %v982
        %v984 = vsel %vm946, %v772, 0.0
        %v985 = vadd.f32 %v983, %v984
        %v986 = vsel %vm946, %v773, 0.0
        %v987 = vadd.f32 %v985, %v986
        %v988 = vsel %vm946, %v774, 0.0
        %v989 = vadd.f32 %v987, %v988
        %v990 = vsel %vm946, %v775, 0.0
        %v991 = vadd.f32 %v989, %v990
        %v992 = vsel %vm946, %v776, 0.0
        %v993 = vadd.f32 %v991, %v992
        %v994 = vsel %vm946, %v777, 0.0
        %v995 = vadd.f32 %v993, %v994
        %v996 = vsel %vm946, %v778, 0.0
        %v997 = vadd.f32 %v995, %v996
        %v998 = vsel %vm946, %v779, 0.0
        %v999 = vadd.f32 %v997, %v998
        %v1000 = vsel %vm946, %v780, 0.0
        %v1001 = vadd.f32 %v999, %v1000
        %v1002 = vsel %vm946, %v781, 0.0
        %v1003 = vadd.f32 %v1001, %v1002
        %v1004 = vsel %vm946, %v782, 0.0
        %v1005 = vadd.f32 %v1003, %v1004
        %v1006 = vsel %vm946, %v783, 0.0
        %v1007 = vadd.f32 %v1005, %v1006
        %v1008 = vsel %vm946, %v784, 0.0
        %v1009 = vadd.f32 %v1007, %v1008
        %v1010 = vrot.slane %v1009, 4
        %v1011 = vadd.f32 %v1009, %v1010
        %v1012 = vrot.slane %v1011, 2
        %v1013 = vadd.f32 %v1011, %v1012
        %v1014 = vrot.slane %v1013, 1
        %v1015 = vadd.f32 %v1013, %v1014
        %v1016 = vmul.f32 %v753, %v753
        %v1017 = vmul.f32 %v754, %v754
        %v1018 = vmul.f32 %v755, %v755
        %v1019 = vmul.f32 %v756, %v756
        %v1020 = vmul.f32 %v757, %v757
        %v1021 = vmul.f32 %v758, %v758
        %v1022 = vmul.f32 %v759, %v759
        %v1023 = vmul.f32 %v760, %v760
        %v1024 = vmul.f32 %v761, %v761
        %v1025 = vmul.f32 %v762, %v762
        %v1026 = vmul.f32 %v763, %v763
        %v1027 = vmul.f32 %v764, %v764
        %v1028 = vmul.f32 %v765, %v765
        %v1029 = vmul.f32 %v766, %v766
        %v1030 = vmul.f32 %v767, %v767
        %v1031 = vmul.f32 %v768, %v768
        %v1032 = vmul.f32 %v769, %v769
        %v1033 = vmul.f32 %v770, %v770
        %v1034 = vmul.f32 %v771, %v771
        %v1035 = vmul.f32 %v772, %v772
        %v1036 = vmul.f32 %v773, %v773
        %v1037 = vmul.f32 %v774, %v774
        %v1038 = vmul.f32 %v775, %v775
        %v1039 = vmul.f32 %v776, %v776
        %v1040 = vmul.f32 %v777, %v777
        %v1041 = vmul.f32 %v778, %v778
        %v1042 = vmul.f32 %v779, %v779
        %v1043 = vmul.f32 %v780, %v780
        %v1044 = vmul.f32 %v781, %v781
        %v1045 = vmul.f32 %v782, %v782
        %v1046 = vmul.f32 %v783, %v783
        %v1047 = vmul.f32 %v784, %v784
        %v1048 = vsel %vm946, %v1016, 0.0
        %v1049 = vsel %vm946, %v1017, 0.0
        %v1050 = vadd.f32 %v1048, %v1049
        %v1051 = vsel %vm946, %v1018, 0.0
        %v1052 = vadd.f32 %v1050, %v1051
        %v1053 = vsel %vm946, %v1019, 0.0
        %v1054 = vadd.f32 %v1052, %v1053
        %v1055 = vsel %vm946, %v1020, 0.0
        %v1056 = vadd.f32 %v1054, %v1055
        %v1057 = vsel %vm946, %v1021, 0.0
        %v1058 = vadd.f32 %v1056, %v1057
        %v1059 = vsel %vm946, %v1022, 0.0
        %v1060 = vadd.f32 %v1058, %v1059
        %v1061 = vsel %vm946, %v1023, 0.0
        %v1062 = vadd.f32 %v1060, %v1061
        %v1063 = vsel %vm946, %v1024, 0.0
        %v1064 = vadd.f32 %v1062, %v1063
        %v1065 = vsel %vm946, %v1025, 0.0
        %v1066 = vadd.f32 %v1064, %v1065
        %v1067 = vsel %vm946, %v1026, 0.0
        %v1068 = vadd.f32 %v1066, %v1067
        %v1069 = vsel %vm946, %v1027, 0.0
        %v1070 = vadd.f32 %v1068, %v1069
        %v1071 = vsel %vm946, %v1028, 0.0
        %v1072 = vadd.f32 %v1070, %v1071
        %v1073 = vsel %vm946, %v1029, 0.0
        %v1074 = vadd.f32 %v1072, %v1073
        %v1075 = vsel %vm946, %v1030, 0.0
        %v1076 = vadd.f32 %v1074, %v1075
        %v1077 = vsel %vm946, %v1031, 0.0
        %v1078 = vadd.f32 %v1076, %v1077
        %v1079 = vsel %vm946, %v1032, 0.0
        %v1080 = vadd.f32 %v1078, %v1079
        %v1081 = vsel %vm946, %v1033, 0.0
        %v1082 = vadd.f32 %v1080, %v1081
        %v1083 = vsel %vm946, %v1034, 0.0
        %v1084 = vadd.f32 %v1082, %v1083
        %v1085 = vsel %vm946, %v1035, 0.0
        %v1086 = vadd.f32 %v1084, %v1085
        %v1087 = vsel %vm946, %v1036, 0.0
        %v1088 = vadd.f32 %v1086, %v1087
        %v1089 = vsel %vm946, %v1037, 0.0
        %v1090 = vadd.f32 %v1088, %v1089
        %v1091 = vsel %vm946, %v1038, 0.0
        %v1092 = vadd.f32 %v1090, %v1091
        %v1093 = vsel %vm946, %v1039, 0.0
        %v1094 = vadd.f32 %v1092, %v1093
        %v1095 = vsel %vm946, %v1040, 0.0
        %v1096 = vadd.f32 %v1094, %v1095
        %v1097 = vsel %vm946, %v1041, 0.0
        %v1098 = vadd.f32 %v1096, %v1097
        %v1099 = vsel %vm946, %v1042, 0.0
        %v1100 = vadd.f32 %v1098, %v1099
        %v1101 = vsel %vm946, %v1043, 0.0
        %v1102 = vadd.f32 %v1100, %v1101
        %v1103 = vsel %vm946, %v1044, 0.0
        %v1104 = vadd.f32 %v1102, %v1103
        %v1105 = vsel %vm946, %v1045, 0.0
        %v1106 = vadd.f32 %v1104, %v1105
        %v1107 = vsel %vm946, %v1046, 0.0
        %v1108 = vadd.f32 %v1106, %v1107
        %v1109 = vsel %vm946, %v1047, 0.0
        %v1110 = vadd.f32 %v1108, %v1109
        %v1111 = vrot.slane %v1110, 4
        %v1112 = vadd.f32 %v1110, %v1111
        %v1113 = vrot.slane %v1112, 2
        %v1114 = vadd.f32 %v1112, %v1113
        %v1115 = vrot.slane %v1114, 1
        %v1116 = vadd.f32 %v1114, %v1115
        %v1117 = vlaneseq
        %v1118 = vshrl.u32 %v1117, 7
        %vm1119 = vcmp.lt.s32.totalorder %v1118, 4
        %v1120 = vsel %vm1119, %v1015, %v1116
        %1121 = vst.msk [vmem:[%s263] sm:$0xff] %vm946, %v1120
      $region36: #{resnet_forward.19} parent=27 // pred_fallthru
        _
      %s1122 = smul.u32 32, %s20
      %p1123 = scmp.lt.s32.totalorder %s1122, 63
      %s1124 = scalar_select %p1123, %s1122, 63
      %p1125 = scmp.lt.s32.totalorder %s21, 0
      %s1126 = scalar_select %p1125, %s21, 0
      %s1127 = sadd.s32 %s1126, %s1124
      %s1128 = smul.addr %s1127, 4
      %s1129 = scalar_lea.vmem %s2, %s1128
      %p1130 = scmp.lt.s32.totalorder %s20, 1
      %s1131 = scalar_select %p1130, %s20, 1
      %p1132 = scmp.lt.s32.totalorder %s21, 0
      %s1133 = scalar_select %p1132, %s21, 0
      %s1134 = sadd.s32 %s1133, %s1131
      %s1135 = smul.addr %s1134, 8
      %s1136 = scalar_lea.vmem %s3, %s1135
      // Predicated region
      $region37: #{resnet_forward.19} parent=27 // pred_check
        %p1137 = pneg %p110
      $region38: #{resnet_forward.19} parent=27 // pred_check_branch
        %1139 = sbr.rel (%p1137) target = $region40
      $region39: #{resnet_forward.19} parent=27 // pred_region
        %s1140 = smul.u32 32, %s20
      $region40: #{resnet_forward.19} parent=27 // pred_fallthru
        _
      // Predicated region
      $region41: #{resnet_forward.19} parent=27 // pred_check
        %p1141 = pneg %p138
      $region42: #{resnet_forward.19} parent=27 // pred_check_branch
        %1143 = sbr.rel (%p1141) target = $region44
      $region43: #{resnet_forward.19} parent=27 // pred_region
        _
      $region44: #{resnet_forward.19} parent=27 // pred_fallthru
        _
    $region28: #{resnet_forward.19} parent=5 // pred_fallthru
      _
    %p1144 = scmp.le.s32.totalorder 2, %s10
    // Predicated region
    $region45: #{resnet_forward.19} parent=5 // pred_check
      %p1145 = pneg %p1144
    $region46: #{resnet_forward.19} parent=5 // pred_check_branch
      %1147 = sbr.rel (%p1145) target = $region48
    $region47: #{resnet_forward.19} parent=5 // pred_region
      %s1148 = ssub.s32 %s10, 2
      // Predicated region
      $region49: #{resnet_forward.19} parent=47 // pred_check
        %p1149 = pneg %p116
      $region50: #{resnet_forward.19} parent=47 // pred_check_branch
        %1151 = sbr.rel (%p1149) target = $region52
      $region51: #{resnet_forward.19} parent=47 // pred_region
        %s1152 = smul.u32 32, %s23
        %p1153 = scmp.lt.s32.totalorder %s1152, 63
        %s1154 = scalar_select %p1153, %s1152, 63
        %p1155 = scmp.lt.s32.totalorder %s24, 0
        %s1156 = scalar_select %p1155, %s24, 0
        %s1157 = sadd.s32 %s1156, %s1154
        %s1158 = smul.addr %s1157, 4
        %s1159 = scalar_lea.vmem %s2, %s1158
      $region52: #{resnet_forward.19} parent=47 // pred_fallthru
        _
      // Predicated region
      $region53: #{resnet_forward.19} parent=47 // pred_check
        %p1160 = pneg %p144
      $region54: #{resnet_forward.19} parent=47 // pred_check_branch
        %1162 = sbr.rel (%p1160) target = $region56
      $region55: #{resnet_forward.19} parent=47 // pred_region
        %p1163 = scmp.lt.s32.totalorder %s23, 1
        %s1164 = scalar_select %p1163, %s23, 1
        %p1165 = scmp.lt.s32.totalorder %s24, 0
        %s1166 = scalar_select %p1165, %s24, 0
        %s1167 = sadd.s32 %s1166, %s1164
        %s1168 = smul.addr %s1167, 8
        %s1169 = scalar_lea.vmem %s3, %s1168
      $region56: #{resnet_forward.19} parent=47 // pred_fallthru
        _
    $region48: #{resnet_forward.19} parent=5 // pred_fallthru
      _
  $region6: #{resnet_forward.19} parent=0 // loop_footer
    %s14 = sadd.s32 1, %s10
  $region7: #{resnet_forward.19} parent=0 // loop_footer_branch
    %9 = sbr.rel target = $region3
  $region8: #{resnet_forward.19} parent=0 // loop_exit
    _

// kernel: resnet_forward.24
$region0: #{resnet_forward.24}
  #allocation0 [shape = 'u32[]', space=smem, size = 0x4, offset = 0x4, fixed_abs, tag = 'smem constant byte address 0x4 - core index']
  #allocation1 [shape = 'u32[144,128]{1,0:T(1,128)}', space=vmem, size = 0x12000, scoped, tag = 'internal scratch']
  %s0 = inlined_call_operand.vmem [shape: bf16[16,128], index: 0, kind: input, shape index: {}]
  %s1 = inlined_call_operand.vmem [shape: f32[1,128], index: 1, kind: input, shape index: {}]
  %s2 = inlined_call_operand.vmem [shape: f32[1,128], index: 2, kind: input, shape index: {}]
  %s3 = inlined_call_operand.vmem [shape: bf16[16,128], index: 3, kind: input, shape index: {}]
  %s4 = inlined_call_operand.vmem [shape: bf16[16,128], index: 4, kind: output, shape index: {}]
  %s5 = sld [smem:[#allocation0]]
  $region26: #{resnet_forward.24} parent=0
    _
  %s7 = ssub.s32 1, %s5
  %s8 = scalar_select 0, %s7, %s5
  // Predicated region
  $region2: #{resnet_forward.24} parent=0 // pred_check
    _
  $region3: #{resnet_forward.24} parent=0 // pred_check_branch
    %10 = sbr.rel (0) target = $region5
  $region4: #{resnet_forward.24} parent=0 // pred_region
    _
  $region5: #{resnet_forward.24} parent=0 // pred_fallthru
    _
  // Predicated region
  $region6: #{resnet_forward.24} parent=0 // pred_check
    _
  $region7: #{resnet_forward.24} parent=0 // pred_check_branch
    %12 = sbr.rel (0) target = $region9
  $region8: #{resnet_forward.24} parent=0 // pred_region
    _
  $region9: #{resnet_forward.24} parent=0 // pred_fallthru
    _
  // Predicated region
  $region10: #{resnet_forward.24} parent=0 // pred_check
    _
  $region11: #{resnet_forward.24} parent=0 // pred_check_branch
    %14 = sbr.rel (0) target = $region13
  $region12: #{resnet_forward.24} parent=0 // pred_region
    _
  $region13: #{resnet_forward.24} parent=0 // pred_fallthru
    _
  // Predicated region
  $region14: #{resnet_forward.24} parent=0 // pred_check
    _
  $region15: #{resnet_forward.24} parent=0 // pred_check_branch
    %16 = sbr.rel (0) target = $region17
  $region16: #{resnet_forward.24} parent=0 // pred_region
    _
  $region17: #{resnet_forward.24} parent=0 // pred_fallthru
    _
  %v17 = vld [vmem:[%s0] sm:$0xf]
  %v18 = vld [vmem:[%s0 + $0x4] sm:$0xf]
  %v19 = vunpack.c.l.bf16 %v17
  %v20 = vunpack.c.l.bf16 %v18
  %v21 = vld [vmem:[%s1] sm:$0x1]
  %v23 = vlaneseq
  %v24 = vshrl.u32 %v23, 7
  %v25 = vsub.s32 0, %v24
  %v26 = vrot.slane %v21, %v25
  %v28 = vmul.f32 %v19, %v26
  %v29 = vmul.f32 %v20, %v26
  %v30 = vld [vmem:[%s2] sm:$0x1]
  %v32 = vlaneseq
  %v33 = vshrl.u32 %v32, 7
  %v34 = vsub.s32 0, %v33
  %v35 = vrot.slane %v30, %v34
  %v37 = vadd.f32 %v28, %v35
  %v38 = vadd.f32 %v29, %v35
  %v39 = vld [vmem:[%s3] sm:$0xf]
  %v40 = vld [vmem:[%s3 + $0x4] sm:$0xf]
  %v41 = vunpack.c.l.bf16 %v39
  %v42 = vunpack.c.l.bf16 %v40
  %v43 = vadd.f32 %v37, %v41
  %v44 = vadd.f32 %v38, %v42
  %v45 = vmax.f32 %v43, 0.0
  %v46 = vmax.f32 %v44, 0.0
  %v47 = vpack.c.bf16 %v46, %v45
  %v49 = vunpack.c.l.b16 %v47
  %v50 = vunpack.c.h.b16 %v47
  %v51 = vpack.c.b16 %v49, %v49
  %v52 = vpack.c.b16 %v50, %v50
  %55 = vst [vmem:[%s4] sm:$0xf] %v51
  %56 = vst [vmem:[%s4 + $0x4] sm:$0xf] %v52
  // Predicated region
  $region18: #{resnet_forward.24} parent=0 // pred_check
    _
  $region19: #{resnet_forward.24} parent=0 // pred_check_branch
    %58 = sbr.rel (0) target = $region21
  $region20: #{resnet_forward.24} parent=0 // pred_region
    _
  $region21: #{resnet_forward.24} parent=0 // pred_fallthru
    _
  // Predicated region
  $region22: #{resnet_forward.24} parent=0 // pred_check
    _
  $region23: #{resnet_forward.24} parent=0 // pred_check_branch
    %60 = sbr.rel (0) target = $region25
  $region24: #{resnet_forward.24} parent=0 // pred_region
    _
  $region25: #{resnet_forward.24} parent=0 // pred_fallthru
    _

// kernel: tile.133
$region0: #{tile.133}
  #allocation0 [shape = 's32[1]{0}', space=sflag, size = 0x4, scoped, tag = 'scoped memory for tile.133']
  %s0 = inlined_call_operand.vmem [shape: f32[8], index: 0, kind: input, shape index: {}]
  %s1 = inlined_call_operand.vmem [shape: f32[16,8], index: 1, kind: output, shape index: {}]
  // Predicated region
  $region2: #{tile.133} parent=0 // pred_check
    _
  $region3: #{tile.133} parent=0 // pred_check_branch
    %3 = sbr.rel (0) target = $region5
  $region4: #{tile.133} parent=0 // pred_region
    _
  $region5: #{tile.133} parent=0 // pred_fallthru
    _
  %v4 = vld [vmem:[%s0] ss:$0 sm:$0xff]
  %5 = vst [vmem:[%s1] sm:$0xff] %v4
  %s6 = scalar_lea.vmem %s1, 8
  %7 = vst [vmem:[%s6] sm:$0xff] %v4

// kernel: tile.134
$region0: #{tile.134}
  %s0 = inlined_call_operand.vmem [shape: f32[16,8], index: 0, kind: input, shape index: {}]
  %s1 = inlined_call_operand.vmem [shape: f32[1,128], index: 1, kind: output, shape index: {}]
  $region1: #{tile.134} parent=0
    #allocation0 [shape = 'u8[4096]{0}', space=vmem, size = 0x1000, scoped, tag = 'scoped mem for output reshape']
    %v2 = vld [vmem:[%s0] sm:$0x1]
    %vm3 = vcmask 64512
    %4 = vst.msk [vmem:[#allocation0] sm:$0x1] %vm3, %v2
    %s5 = scalar_lea.vmem %s0, 15
    %v6 = vld [vmem:[%s5] sm:$0x1]
    %7 = vrot.lane.b32.xlu0 %v6, 120
    %v8 = vpop.permute.xlu0 %7
    %vm9 = vcmask 1048512
    %10 = vst.msk [vmem:[#allocation0] sm:$0x1] %vm9, %v8
    %s11 = scalar_lea.vmem %s0, 14
    %v12 = vld [vmem:[%s11] sm:$0x1]
    %13 = vrot.lane.b32.xlu0 %v12, 112
    %v14 = vpop.permute.xlu0 %13
    %vm15 = vcmask 982912
    %16 = vst.msk [vmem:[#allocation0] sm:$0x1] %vm15, %v14
    %s17 = scalar_lea.vmem %s0, 13
    %v18 = vld [vmem:[%s17] sm:$0x1]
    %19 = vrot.lane.b32.xlu0 %v18, 104
    %v20 = vpop.permute.xlu0 %19
    %vm21 = vcmask 917312
    %22 = vst.msk [vmem:[#allocation0] sm:$0x1] %vm21, %v20
    %s23 = scalar_lea.vmem %s0, 12
    %v24 = vld [vmem:[%s23] sm:$0x1]
    %25 = vrot.lane.b32.xlu0 %v24, 96
    %v26 = vpop.permute.xlu0 %25
    %vm27 = vcmask 851712
    %28 = vst.msk [vmem:[#allocation0] sm:$0x1] %vm27, %v26
    %s29 = scalar_lea.vmem %s0, 11
    %v30 = vld [vmem:[%s29] sm:$0x1]
    %31 = vrot.lane.b32.xlu0 %v30, 88
    %v32 = vpop.permute.xlu0 %31
    %vm33 = vcmask 786112
    %34 = vst.msk [vmem:[#allocation0] sm:$0x1] %vm33, %v32
    %s35 = scalar_lea.vmem %s0, 10
    %v36 = vld [vmem:[%s35] sm:$0x1]
    %37 = vrot.lane.b32.xlu0 %v36, 80
    %v38 = vpop.permute.xlu0 %37
    %vm39 = vcmask 720512
    %40 = vst.msk [vmem:[#allocation0] sm:$0x1] %vm39, %v38
    %s41 = scalar_lea.vmem %s0, 9
    %v42 = vld [vmem:[%s41] sm:$0x1]
    %43 = vrot.lane.b32.xlu0 %v42, 72
    %v44 = vpop.permute.xlu0 %43
    %vm45 = vcmask 654912
    %46 = vst.msk [vmem:[#allocation0] sm:$0x1] %vm45, %v44
    %s47 = scalar_lea.vmem %s0, 8
    %v48 = vld [vmem:[%s47] sm:$0x1]
    %49 = vrot.lane.b32.xlu0 %v48, 64
    %v50 = vpop.permute.xlu0 %49
    %vm51 = vcmask 589312
    %52 = vst.msk [vmem:[#allocation0] sm:$0x1] %vm51, %v50
    %s53 = scalar_lea.vmem %s0, 7
    %v54 = vld [vmem:[%s53] sm:$0x1]
    %55 = vrot.lane.b32.xlu0 %v54, 56
    %v56 = vpop.permute.xlu0 %55
    %vm57 = vcmask 523712
    %58 = vst.msk [vmem:[#allocation0] sm:$0x1] %vm57, %v56
    %s59 = scalar_lea.vmem %s0, 6
    %v60 = vld [vmem:[%s59] sm:$0x1]
    %61 = vrot.lane.b32.xlu0 %v60, 48
    %v62 = vpop.permute.xlu0 %61
    %vm63 = vcmask 458112
    %64 = vst.msk [vmem:[#allocation0] sm:$0x1] %vm63, %v62
    %s65 = scalar_lea.vmem %s0, 5
    %v66 = vld [vmem:[%s65] sm:$0x1]
    %67 = vrot.lane.b32.xlu0 %v66, 40
    %v68 = vpop.permute.xlu0 %67
    %vm69 = vcmask 392512
    %70 = vst.msk [vmem:[#allocation0] sm:$0x1] %vm69, %v68
    %s71 = scalar_lea.vmem %s0, 4
    %v72 = vld [vmem:[%s71] sm:$0x1]
    %73 = vrot.lane.b32.xlu0 %v72, 32
    %v74 = vpop.permute.xlu0 %73
    %vm75 = vcmask 326912
    %76 = vst.msk [vmem:[#allocation0] sm:$0x1] %vm75, %v74
    %s77 = scalar_lea.vmem %s0, 3
    %v78 = vld [vmem:[%s77] sm:$0x1]
    %79 = vrot.lane.b32.xlu0 %v78, 24
    %v80 = vpop.permute.xlu0 %79
    %vm81 = vcmask 261312
    %82 = vst.msk [vmem:[#allocation0] sm:$0x1] %vm81, %v80
    %s83 = scalar_lea.vmem %s0, 2
    %v84 = vld [vmem:[%s83] sm:$0x1]
    %85 = vrot.lane.b32.xlu0 %v84, 16
    %v86 = vpop.permute.xlu0 %85
    %vm87 = vcmask 195712
    %88 = vst.msk [vmem:[#allocation0] sm:$0x1] %vm87, %v86
    %s89 = scalar_lea.vmem %s0, 1
    %v90 = vld [vmem:[%s89] sm:$0x1]
    %91 = vrot.lane.b32.xlu0 %v90, 8
    %v92 = vpop.permute.xlu0 %91
    %vm93 = vcmask 130112
    %94 = vst.msk [vmem:[#allocation0] sm:$0x1] %vm93, %v92
    %s96 = sshll.u32 1, 1
    %s97 = ssub.s32 %s96, 1
    %v99 = vld [vmem:[#allocation0] sm:%s97]
    %s100 = sshll.u32 1, 1
    %s101 = ssub.s32 %s100, 1
    %102 = vst [vmem:[%s1] sm:%s101] %v99

// kernel: resnet_forward.27
$region0: #{resnet_forward.27}
  #allocation0 [shape = 'u32[]', space=smem, size = 0x4, offset = 0x4, fixed_abs, tag = 'smem constant byte address 0x4 - core index']
  #allocation1 [shape = 'u32[144,128]{1,0:T(1,128)}', space=vmem, size = 0x12000, scoped, tag = 'internal scratch']
  #allocation2 [shape = 'f32[128,128]{1,0:T(8,128)}', space=vmem, size = 0x10000, scoped, tag = 'scratch operand']
  %s0 = inlined_call_operand.vmem [shape: bf16[128,128], index: 0, kind: input, shape index: {}]
  %s1 = inlined_call_operand.vmem [shape: bf16[128,128], index: 1, kind: input, shape index: {}]
  %s2 = inlined_call_operand.vmem [shape: bf16[128,8], index: 2, kind: output, shape index: {0}]
  %s3 = inlined_call_operand.vmem [shape: f32[8,8], index: 3, kind: output, shape index: {1}]
  %4 = xla_tuple %s2, %s3
  %s5 = sld [smem:[#allocation0]]
  $region34: #{resnet_forward.27} parent=0
    _
  %s7 = ssub.s32 1, %s5
  %s8 = scalar_select 0, %s7, %s5
  // Predicated region
  $region2: #{resnet_forward.27} parent=0 // pred_check
    _
  $region3: #{resnet_forward.27} parent=0 // pred_check_branch
    %10 = sbr.rel (0) target = $region5
  $region4: #{resnet_forward.27} parent=0 // pred_region
    _
  $region5: #{resnet_forward.27} parent=0 // pred_fallthru
    _
  // Predicated region
  $region6: #{resnet_forward.27} parent=0 // pred_check
    _
  $region7: #{resnet_forward.27} parent=0 // pred_check_branch
    %12 = sbr.rel (0) target = $region9
  $region8: #{resnet_forward.27} parent=0 // pred_region
    _
  $region9: #{resnet_forward.27} parent=0 // pred_fallthru
    _
  %p14 = scmp.eq.s32.totalorder 0, 0
  // Predicated region
  $region10: #{resnet_forward.27} parent=0 // pred_check
    %p15 = pneg %p14
  $region11: #{resnet_forward.27} parent=0 // pred_check_branch
    %17 = sbr.rel (%p15) target = $region13
  $region12: #{resnet_forward.27} parent=0 // pred_region
    %18 = vst [vmem:[#allocation2] sm:$0xff] 0.0
    %19 = vst [vmem:[#allocation2 + $0x8] sm:$0xff] 0.0
    %20 = vst [vmem:[#allocation2 + $0x10] sm:$0xff] 0.0
    %21 = vst [vmem:[#allocation2 + $0x18] sm:$0xff] 0.0
    %22 = vst [vmem:[#allocation2 + $0x20] sm:$0xff] 0.0
    %23 = vst [vmem:[#allocation2 + $0x28] sm:$0xff] 0.0
    %24 = vst [vmem:[#allocation2 + $0x30] sm:$0xff] 0.0
    %25 = vst [vmem:[#allocation2 + $0x38] sm:$0xff] 0.0
    %26 = vst [vmem:[#allocation2 + $0x40] sm:$0xff] 0.0
    %27 = vst [vmem:[#allocation2 + $0x48] sm:$0xff] 0.0
    %28 = vst [vmem:[#allocation2 + $0x50] sm:$0xff] 0.0
    %29 = vst [vmem:[#allocation2 + $0x58] sm:$0xff] 0.0
    %30 = vst [vmem:[#allocation2 + $0x60] sm:$0xff] 0.0
    %31 = vst [vmem:[#allocation2 + $0x68] sm:$0xff] 0.0
    %32 = vst [vmem:[#allocation2 + $0x70] sm:$0xff] 0.0
    %33 = vst [vmem:[#allocation2 + $0x78] sm:$0xff] 0.0
  $region13: #{resnet_forward.27} parent=0 // pred_fallthru
    _
  %v34 = vld [vmem:[#allocation2] sm:$0xff]
  %v35 = vld [vmem:[#allocation2 + $0x8] sm:$0xff]
  %v36 = vld [vmem:[#allocation2 + $0x10] sm:$0xff]
  %v37 = vld [vmem:[#allocation2 + $0x18] sm:$0xff]
  %v38 = vld [vmem:[#allocation2 + $0x20] sm:$0xff]
  %v39 = vld [vmem:[#allocation2 + $0x28] sm:$0xff]
  %v40 = vld [vmem:[#allocation2 + $0x30] sm:$0xff]
  %v41 = vld [vmem:[#allocation2 + $0x38] sm:$0xff]
  %v42 = vld [vmem:[#allocation2 + $0x40] sm:$0xff]
  %v43 = vld [vmem:[#allocation2 + $0x48] sm:$0xff]
  %v44 = vld [vmem:[#allocation2 + $0x50] sm:$0xff]
  %v45 = vld [vmem:[#allocation2 + $0x58] sm:$0xff]
  %v46 = vld [vmem:[#allocation2 + $0x60] sm:$0xff]
  %v47 = vld [vmem:[#allocation2 + $0x68] sm:$0xff]
  %v48 = vld [vmem:[#allocation2 + $0x70] sm:$0xff]
  %v49 = vld [vmem:[#allocation2 + $0x78] sm:$0xff]
  %v50 = vld [vmem:[%s0] sm:$0xf]
  %v51 = vld [vmem:[%s0 + $0x4] sm:$0xf]
  %v52 = vld [vmem:[%s0 + $0x8] sm:$0xf]
  %v53 = vld [vmem:[%s0 + $0xc] sm:$0xf]
  %v54 = vld [vmem:[%s0 + $0x10] sm:$0xf]
  %v55 = vld [vmem:[%s0 + $0x14] sm:$0xf]
  %v56 = vld [vmem:[%s0 + $0x18] sm:$0xf]
  %v57 = vld [vmem:[%s0 + $0x1c] sm:$0xf]
  %v58 = vld [vmem:[%s0 + $0x20] sm:$0xf]
  %v59 = vld [vmem:[%s0 + $0x24] sm:$0xf]
  %v60 = vld [vmem:[%s0 + $0x28] sm:$0xf]
  %v61 = vld [vmem:[%s0 + $0x2c] sm:$0xf]
  %v62 = vld [vmem:[%s0 + $0x30] sm:$0xf]
  %v63 = vld [vmem:[%s0 + $0x34] sm:$0xf]
  %v64 = vld [vmem:[%s0 + $0x38] sm:$0xf]
  %v65 = vld [vmem:[%s0 + $0x3c] sm:$0xf]
  %v66 = vld [vmem:[%s1] sm:$0xf]
  %v67 = vld [vmem:[%s1 + $0x4] sm:$0xf]
  %v68 = vld [vmem:[%s1 + $0x8] sm:$0xf]
  %v69 = vld [vmem:[%s1 + $0xc] sm:$0xf]
  %v70 = vld [vmem:[%s1 + $0x10] sm:$0xf]
  %v71 = vld [vmem:[%s1 + $0x14] sm:$0xf]
  %v72 = vld [vmem:[%s1 + $0x18] sm:$0xf]
  %v73 = vld [vmem:[%s1 + $0x1c] sm:$0xf]
  %v74 = vld [vmem:[%s1 + $0x20] sm:$0xf]
  %v75 = vld [vmem:[%s1 + $0x24] sm:$0xf]
  %v76 = vld [vmem:[%s1 + $0x28] sm:$0xf]
  %v77 = vld [vmem:[%s1 + $0x2c] sm:$0xf]
  %v78 = vld [vmem:[%s1 + $0x30] sm:$0xf]
  %v79 = vld [vmem:[%s1 + $0x34] sm:$0xf]
  %v80 = vld [vmem:[%s1 + $0x38] sm:$0xf]
  %v81 = vld [vmem:[%s1 + $0x3c] sm:$0xf]
  %v98 = vunpack.c.l.b16 %v50
  %v99 = vunpack.c.l.b16 %v51
  %v100 = vunpack.c.l.b16 %v52
  %v101 = vunpack.c.l.b16 %v53
  %v102 = vunpack.c.l.b16 %v54
  %v103 = vunpack.c.l.b16 %v55
  %v104 = vunpack.c.l.b16 %v56
  %v105 = vunpack.c.l.b16 %v57
  %v106 = vunpack.c.l.b16 %v58
  %v107 = vunpack.c.l.b16 %v59
  %v108 = vunpack.c.l.b16 %v60
  %v109 = vunpack.c.l.b16 %v61
  %v110 = vunpack.c.l.b16 %v62
  %v111 = vunpack.c.l.b16 %v63
  %v112 = vunpack.c.l.b16 %v64
  %v113 = vunpack.c.l.b16 %v65
  %v114 = vpack.c.b16 %v99, %v98
  %v115 = vpack.c.b16 %v101, %v100
  %v116 = vpack.c.b16 %v103, %v102
  %v117 = vpack.c.b16 %v105, %v104
  %v118 = vpack.c.b16 %v107, %v106
  %v119 = vpack.c.b16 %v109, %v108
  %v120 = vpack.c.b16 %v111, %v110
  %v121 = vpack.c.b16 %v113, %v112
  %v146 = vunpack.c.l.b16 %v66
  %v147 = vunpack.c.l.b16 %v67
  %v148 = vunpack.c.l.b16 %v68
  %v149 = vunpack.c.l.b16 %v69
  %v150 = vunpack.c.l.b16 %v70
  %v151 = vunpack.c.l.b16 %v71
  %v152 = vunpack.c.l.b16 %v72
  %v153 = vunpack.c.l.b16 %v73
  %v154 = vunpack.c.l.b16 %v74
  %v155 = vunpack.c.l.b16 %v75
  %v156 = vunpack.c.l.b16 %v76
  %v157 = vunpack.c.l.b16 %v77
  %v158 = vunpack.c.l.b16 %v78
  %v159 = vunpack.c.l.b16 %v79
  %v160 = vunpack.c.l.b16 %v80
  %v161 = vunpack.c.l.b16 %v81
  %v162 = vpack.c.b16 %v147, %v146
  %v163 = vpack.c.b16 %v149, %v148
  %v164 = vpack.c.b16 %v151, %v150
  %v165 = vpack.c.b16 %v153, %v152
  %v166 = vpack.c.b16 %v155, %v154
  %v167 = vpack.c.b16 %v157, %v156
  %v168 = vpack.c.b16 %v159, %v158
  %v169 = vpack.c.b16 %v161, %v160
  %178 = vmatprep.subr.bf16.mxu0 0
  %179 = vmatpush1.bf16.msra.mxu0 %v169
  %180 = vmatprep.subr.bf16.mxu0 0
  %181 = vmatpush1.bf16.msra.mxu0 %v168
  %182 = vmatprep.subr.bf16.mxu0 0
  %183 = vmatpush1.bf16.msra.mxu0 %v167
  %184 = vmatprep.subr.bf16.mxu0 0
  %185 = vmatpush1.bf16.msra.mxu0 %v166
  %186 = vmatprep.subr.bf16.mxu0 0
  %187 = vmatpush1.bf16.msra.mxu0 %v165
  %188 = vmatprep.subr.bf16.mxu0 0
  %189 = vmatpush1.bf16.msra.mxu0 %v164
  %190 = vmatprep.subr.bf16.mxu0 0
  %191 = vmatpush1.bf16.msra.mxu0 %v163
  %192 = vmatprep.subr.bf16.mxu0 0
  %193 = vmatpush1.bf16.msra.mxu0 %v162
  %194 = vmatprep.subr.bf16.mxu0 0
  %195 = vmatpush2.bf16.msra.mxu0 0
  %196 = vmatprep.subr.bf16.mxu0 0
  %197 = vmatpush2.bf16.msra.mxu0 0
  %198 = vmatprep.subr.bf16.mxu0 0
  %199 = vmatpush2.bf16.msra.mxu0 0
  %200 = vmatprep.subr.bf16.mxu0 0
  %201 = vmatpush2.bf16.msra.mxu0 0
  %202 = vmatprep.subr.bf16.mxu0 0
  %203 = vmatpush2.bf16.msra.mxu0 0
  %204 = vmatprep.subr.bf16.mxu0 0
  %205 = vmatpush2.bf16.msra.mxu0 0
  %206 = vmatprep.subr.bf16.mxu0 0
  %207 = vmatpush2.bf16.msra.mxu0 0
  %208 = vmatprep.subr.bf16.mxu0 0
  %209 = vmatpush2.bf16.msra.mxu0 0
  %210 = vmatprep.mubr.bf16.mxu0 0
  %211 = vmatmul.mubr.bf16.gmra.mxu0 %v114
  %v212 = vpop.f32.mrf.mxu0
  %v213 = vadd.f32 0.0, %v212
  %v214 = vpop.f32.mrf.mxu0
  %v215 = vpop.f32.mrf.mxu0
  %v216 = vadd.f32 0.0, %v215
  %v217 = vpop.f32.mrf.mxu0
  %218 = vmatprep.mubr.bf16.mxu0 0
  %219 = vmatmul.mubr.bf16.gmra.mxu0 %v115
  %v220 = vpop.f32.mrf.mxu0
  %v221 = vadd.f32 0.0, %v220
  %v222 = vpop.f32.mrf.mxu0
  %v223 = vpop.f32.mrf.mxu0
  %v224 = vadd.f32 0.0, %v223
  %v225 = vpop.f32.mrf.mxu0
  %226 = vmatprep.mubr.bf16.mxu0 0
  %227 = vmatmul.mubr.bf16.gmra.mxu0 %v116
  %v228 = vpop.f32.mrf.mxu0
  %v229 = vadd.f32 0.0, %v228
  %v230 = vpop.f32.mrf.mxu0
  %v231 = vpop.f32.mrf.mxu0
  %v232 = vadd.f32 0.0, %v231
  %v233 = vpop.f32.mrf.mxu0
  %234 = vmatprep.mubr.bf16.mxu0 0
  %235 = vmatmul.mubr.bf16.gmra.mxu0 %v117
  %v236 = vpop.f32.mrf.mxu0
  %v237 = vadd.f32 0.0, %v236
  %v238 = vpop.f32.mrf.mxu0
  %v239 = vpop.f32.mrf.mxu0
  %v240 = vadd.f32 0.0, %v239
  %v241 = vpop.f32.mrf.mxu0
  %242 = vmatprep.mubr.bf16.mxu0 0
  %243 = vmatmul.mubr.bf16.gmra.mxu0 %v118
  %v244 = vpop.f32.mrf.mxu0
  %v245 = vadd.f32 0.0, %v244
  %v246 = vpop.f32.mrf.mxu0
  %v247 = vpop.f32.mrf.mxu0
  %v248 = vadd.f32 0.0, %v247
  %v249 = vpop.f32.mrf.mxu0
  %250 = vmatprep.mubr.bf16.mxu0 0
  %251 = vmatmul.mubr.bf16.gmra.mxu0 %v119
  %v252 = vpop.f32.mrf.mxu0
  %v253 = vadd.f32 0.0, %v252
  %v254 = vpop.f32.mrf.mxu0
  %v255 = vpop.f32.mrf.mxu0
  %v256 = vadd.f32 0.0, %v255
  %v257 = vpop.f32.mrf.mxu0
  %258 = vmatprep.mubr.bf16.mxu0 0
  %259 = vmatmul.mubr.bf16.gmra.mxu0 %v120
  %v260 = vpop.f32.mrf.mxu0
  %v261 = vadd.f32 0.0, %v260
  %v262 = vpop.f32.mrf.mxu0
  %v263 = vpop.f32.mrf.mxu0
  %v264 = vadd.f32 0.0, %v263
  %v265 = vpop.f32.mrf.mxu0
  %266 = vmatprep.mubr.bf16.mxu0 0
  %267 = vmatmul.mubr.bf16.gmra.mxu0 %v121
  %v268 = vpop.f32.mrf.mxu0
  %v269 = vadd.f32 0.0, %v268
  %v270 = vpop.f32.mrf.mxu0
  %v271 = vpop.f32.mrf.mxu0
  %v272 = vadd.f32 0.0, %v271
  %v273 = vpop.f32.mrf.mxu0
  %274 = vdwg.mxu0
  %v275 = vadd.f32 %v34, %v213
  %v276 = vadd.f32 %v35, %v216
  %v277 = vadd.f32 %v36, %v221
  %v278 = vadd.f32 %v37, %v224
  %v279 = vadd.f32 %v38, %v229
  %v280 = vadd.f32 %v39, %v232
  %v281 = vadd.f32 %v40, %v237
  %v282 = vadd.f32 %v41, %v240
  %v283 = vadd.f32 %v42, %v245
  %v284 = vadd.f32 %v43, %v248
  %v285 = vadd.f32 %v44, %v253
  %v286 = vadd.f32 %v45, %v256
  %v287 = vadd.f32 %v46, %v261
  %v288 = vadd.f32 %v47, %v264
  %v289 = vadd.f32 %v48, %v269
  %v290 = vadd.f32 %v49, %v272
  %291 = vst [vmem:[#allocation2] sm:$0xff] %v275
  %292 = vst [vmem:[#allocation2 + $0x8] sm:$0xff] %v276
  %293 = vst [vmem:[#allocation2 + $0x10] sm:$0xff] %v277
  %294 = vst [vmem:[#allocation2 + $0x18] sm:$0xff] %v278
  %295 = vst [vmem:[#allocation2 + $0x20] sm:$0xff] %v279
  %296 = vst [vmem:[#allocation2 + $0x28] sm:$0xff] %v280
  %297 = vst [vmem:[#allocation2 + $0x30] sm:$0xff] %v281
  %298 = vst [vmem:[#allocation2 + $0x38] sm:$0xff] %v282
  %299 = vst [vmem:[#allocation2 + $0x40] sm:$0xff] %v283
  %300 = vst [vmem:[#allocation2 + $0x48] sm:$0xff] %v284
  %301 = vst [vmem:[#allocation2 + $0x50] sm:$0xff] %v285
  %302 = vst [vmem:[#allocation2 + $0x58] sm:$0xff] %v286
  %303 = vst [vmem:[#allocation2 + $0x60] sm:$0xff] %v287
  %304 = vst [vmem:[#allocation2 + $0x68] sm:$0xff] %v288
  %305 = vst [vmem:[#allocation2 + $0x70] sm:$0xff] %v289
  %306 = vst [vmem:[#allocation2 + $0x78] sm:$0xff] %v290
  // Predicated region
  $region14: #{resnet_forward.27} parent=0 // pred_check
    %p307 = pneg %p14
  $region15: #{resnet_forward.27} parent=0 // pred_check_branch
    %309 = sbr.rel (%p307) target = $region17
  $region16: #{resnet_forward.27} parent=0 // pred_region
    %v310 = vld [vmem:[#allocation2] sm:$0xff]
    %v311 = vld [vmem:[#allocation2 + $0x8] sm:$0xff]
    %v312 = vld [vmem:[#allocation2 + $0x10] sm:$0xff]
    %v313 = vld [vmem:[#allocation2 + $0x18] sm:$0xff]
    %v314 = vld [vmem:[#allocation2 + $0x20] sm:$0xff]
    %v315 = vld [vmem:[#allocation2 + $0x28] sm:$0xff]
    %v316 = vld [vmem:[#allocation2 + $0x30] sm:$0xff]
    %v317 = vld [vmem:[#allocation2 + $0x38] sm:$0xff]
    %v318 = vld [vmem:[#allocation2 + $0x40] sm:$0xff]
    %v319 = vld [vmem:[#allocation2 + $0x48] sm:$0xff]
    %v320 = vld [vmem:[#allocation2 + $0x50] sm:$0xff]
    %v321 = vld [vmem:[#allocation2 + $0x58] sm:$0xff]
    %v322 = vld [vmem:[#allocation2 + $0x60] sm:$0xff]
    %v323 = vld [vmem:[#allocation2 + $0x68] sm:$0xff]
    %v324 = vld [vmem:[#allocation2 + $0x70] sm:$0xff]
    %v325 = vld [vmem:[#allocation2 + $0x78] sm:$0xff]
    %v326 = vpack.c.bf16 %v311, %v310
    %v327 = vpack.c.bf16 %v313, %v312
    %v328 = vpack.c.bf16 %v315, %v314
    %v329 = vpack.c.bf16 %v317, %v316
    %v330 = vpack.c.bf16 %v319, %v318
    %v331 = vpack.c.bf16 %v321, %v320
    %v332 = vpack.c.bf16 %v323, %v322
    %v333 = vpack.c.bf16 %v325, %v324
    %v342 = vunpack.c.l.b16 %v326
    %v343 = vunpack.c.h.b16 %v326
    %v344 = vunpack.c.l.b16 %v327
    %v345 = vunpack.c.h.b16 %v327
    %v346 = vunpack.c.l.b16 %v328
    %v347 = vunpack.c.h.b16 %v328
    %v348 = vunpack.c.l.b16 %v329
    %v349 = vunpack.c.h.b16 %v329
    %v350 = vunpack.c.l.b16 %v330
    %v351 = vunpack.c.h.b16 %v330
    %v352 = vunpack.c.l.b16 %v331
    %v353 = vunpack.c.h.b16 %v331
    %v354 = vunpack.c.l.b16 %v332
    %v355 = vunpack.c.h.b16 %v332
    %v356 = vunpack.c.l.b16 %v333
    %v357 = vunpack.c.h.b16 %v333
    %v358 = vpack.c.b16 %v342, %v342
    %v359 = vpack.c.b16 %v343, %v343
    %v360 = vpack.c.b16 %v344, %v344
    %v361 = vpack.c.b16 %v345, %v345
    %v362 = vpack.c.b16 %v346, %v346
    %v363 = vpack.c.b16 %v347, %v347
    %v364 = vpack.c.b16 %v348, %v348
    %v365 = vpack.c.b16 %v349, %v349
    %v366 = vpack.c.b16 %v350, %v350
    %v367 = vpack.c.b16 %v351, %v351
    %v368 = vpack.c.b16 %v352, %v352
    %v369 = vpack.c.b16 %v353, %v353
    %v370 = vpack.c.b16 %v354, %v354
    %v371 = vpack.c.b16 %v355, %v355
    %v372 = vpack.c.b16 %v356, %v356
    %v373 = vpack.c.b16 %v357, %v357
    %vm390 = vcmask 60416
    %391 = vst.msk [vmem:[%s2] sm:$0xf] %vm390, %v358
    %392 = vst.msk [vmem:[%s2 + $0x4] sm:$0xf] %vm390, %v359
    %393 = vst.msk [vmem:[%s2 + $0x8] sm:$0xf] %vm390, %v360
    %394 = vst.msk [vmem:[%s2 + $0xc] sm:$0xf] %vm390, %v361
    %395 = vst.msk [vmem:[%s2 + $0x10] sm:$0xf] %vm390, %v362
    %396 = vst.msk [vmem:[%s2 + $0x14] sm:$0xf] %vm390, %v363
    %397 = vst.msk [vmem:[%s2 + $0x18] sm:$0xf] %vm390, %v364
    %398 = vst.msk [vmem:[%s2 + $0x1c] sm:$0xf] %vm390, %v365
    %399 = vst.msk [vmem:[%s2 + $0x20] sm:$0xf] %vm390, %v366
    %400 = vst.msk [vmem:[%s2 + $0x24] sm:$0xf] %vm390, %v367
    %401 = vst.msk [vmem:[%s2 + $0x28] sm:$0xf] %vm390, %v368
    %402 = vst.msk [vmem:[%s2 + $0x2c] sm:$0xf] %vm390, %v369
    %403 = vst.msk [vmem:[%s2 + $0x30] sm:$0xf] %vm390, %v370
    %404 = vst.msk [vmem:[%s2 + $0x34] sm:$0xf] %vm390, %v371
    %405 = vst.msk [vmem:[%s2 + $0x38] sm:$0xf] %vm390, %v372
    %406 = vst.msk [vmem:[%s2 + $0x3c] sm:$0xf] %vm390, %v373
    %vm407 = vcmask 64512
    %v408 = vsel %vm407, %v310, 0.0
    %v409 = vsel %vm407, %v311, 0.0
    %v410 = vadd.f32 %v408, %v409
    %v411 = vsel %vm407, %v312, 0.0
    %v412 = vadd.f32 %v410, %v411
    %v413 = vsel %vm407, %v313, 0.0
    %v414 = vadd.f32 %v412, %v413
    %v415 = vsel %vm407, %v314, 0.0
    %v416 = vadd.f32 %v414, %v415
    %v417 = vsel %vm407, %v315, 0.0
    %v418 = vadd.f32 %v416, %v417
    %v419 = vsel %vm407, %v316, 0.0
    %v420 = vadd.f32 %v418, %v419
    %v421 = vsel %vm407, %v317, 0.0
    %v422 = vadd.f32 %v420, %v421
    %v423 = vsel %vm407, %v318, 0.0
    %v424 = vadd.f32 %v422, %v423
    %v425 = vsel %vm407, %v319, 0.0
    %v426 = vadd.f32 %v424, %v425
    %v427 = vsel %vm407, %v320, 0.0
    %v428 = vadd.f32 %v426, %v427
    %v429 = vsel %vm407, %v321, 0.0
    %v430 = vadd.f32 %v428, %v429
    %v431 = vsel %vm407, %v322, 0.0
    %v432 = vadd.f32 %v430, %v431
    %v433 = vsel %vm407, %v323, 0.0
    %v434 = vadd.f32 %v432, %v433
    %v435 = vsel %vm407, %v324, 0.0
    %v436 = vadd.f32 %v434, %v435
    %v437 = vsel %vm407, %v325, 0.0
    %v438 = vadd.f32 %v436, %v437
    %v439 = vrot.slane %v438, 4
    %v440 = vadd.f32 %v438, %v439
    %v441 = vrot.slane %v440, 2
    %v442 = vadd.f32 %v440, %v441
    %v443 = vrot.slane %v442, 1
    %v444 = vadd.f32 %v442, %v443
    %v445 = vmul.f32 %v310, %v310
    %v446 = vmul.f32 %v311, %v311
    %v447 = vmul.f32 %v312, %v312
    %v448 = vmul.f32 %v313, %v313
    %v449 = vmul.f32 %v314, %v314
    %v450 = vmul.f32 %v315, %v315
    %v451 = vmul.f32 %v316, %v316
    %v452 = vmul.f32 %v317, %v317
    %v453 = vmul.f32 %v318, %v318
    %v454 = vmul.f32 %v319, %v319
    %v455 = vmul.f32 %v320, %v320
    %v456 = vmul.f32 %v321, %v321
    %v457 = vmul.f32 %v322, %v322
    %v458 = vmul.f32 %v323, %v323
    %v459 = vmul.f32 %v324, %v324
    %v460 = vmul.f32 %v325, %v325
    %v461 = vsel %vm407, %v445, 0.0
    %v462 = vsel %vm407, %v446, 0.0
    %v463 = vadd.f32 %v461, %v462
    %v464 = vsel %vm407, %v447, 0.0
    %v465 = vadd.f32 %v463, %v464
    %v466 = vsel %vm407, %v448, 0.0
    %v467 = vadd.f32 %v465, %v466
    %v468 = vsel %vm407, %v449, 0.0
    %v469 = vadd.f32 %v467, %v468
    %v470 = vsel %vm407, %v450, 0.0
    %v471 = vadd.f32 %v469, %v470
    %v472 = vsel %vm407, %v451, 0.0
    %v473 = vadd.f32 %v471, %v472
    %v474 = vsel %vm407, %v452, 0.0
    %v475 = vadd.f32 %v473, %v474
    %v476 = vsel %vm407, %v453, 0.0
    %v477 = vadd.f32 %v475, %v476
    %v478 = vsel %vm407, %v454, 0.0
    %v479 = vadd.f32 %v477, %v478
    %v480 = vsel %vm407, %v455, 0.0
    %v481 = vadd.f32 %v479, %v480
    %v482 = vsel %vm407, %v456, 0.0
    %v483 = vadd.f32 %v481, %v482
    %v484 = vsel %vm407, %v457, 0.0
    %v485 = vadd.f32 %v483, %v484
    %v486 = vsel %vm407, %v458, 0.0
    %v487 = vadd.f32 %v485, %v486
    %v488 = vsel %vm407, %v459, 0.0
    %v489 = vadd.f32 %v487, %v488
    %v490 = vsel %vm407, %v460, 0.0
    %v491 = vadd.f32 %v489, %v490
    %v492 = vrot.slane %v491, 4
    %v493 = vadd.f32 %v491, %v492
    %v494 = vrot.slane %v493, 2
    %v495 = vadd.f32 %v493, %v494
    %v496 = vrot.slane %v495, 1
    %v497 = vadd.f32 %v495, %v496
    %v498 = vlaneseq
    %v499 = vshrl.u32 %v498, 7
    %vm500 = vcmp.lt.s32.totalorder %v499, 4
    %v501 = vsel %vm500, %v444, %v497
    %502 = vst.msk [vmem:[%s3] sm:$0xff] %vm407, %v501
  $region17: #{resnet_forward.27} parent=0 // pred_fallthru
    _
  // Predicated region
  $region18: #{resnet_forward.27} parent=0 // pred_check
    _
  $region19: #{resnet_forward.27} parent=0 // pred_check_branch
    %504 = sbr.rel (0) target = $region21
  $region20: #{resnet_forward.27} parent=0 // pred_region
    _
  $region21: #{resnet_forward.27} parent=0 // pred_fallthru
    _
  // Predicated region
  $region22: #{resnet_forward.27} parent=0 // pred_check
    _
  $region23: #{resnet_forward.27} parent=0 // pred_check_branch
    %506 = sbr.rel (0) target = $region25
  $region24: #{resnet_forward.27} parent=0 // pred_region
    _
  $region25: #{resnet_forward.27} parent=0 // pred_fallthru
    _
  // Predicated region
  $region26: #{resnet_forward.27} parent=0 // pred_check
    _
  $region27: #{resnet_forward.27} parent=0 // pred_check_branch
    %508 = sbr.rel (0) target = $region29
  $region28: #{resnet_forward.27} parent=0 // pred_region
    _
  $region29: #{resnet_forward.27} parent=0 // pred_fallthru
    _
  // Predicated region
  $region30: #{resnet_forward.27} parent=0 // pred_check
    _
  $region31: #{resnet_forward.27} parent=0 // pred_check_branch
    %510 = sbr.rel (0) target = $region33
  $region32: #{resnet_forward.27} parent=0 // pred_region
    _
  $region33: #{resnet_forward.27} parent=0 // pred_fallthru
    _

// kernel: resnet_forward.28
$region0: #{resnet_forward.28}
  #allocation0 [shape = 'u32[]', space=smem, size = 0x4, offset = 0x4, fixed_abs, tag = 'smem constant byte address 0x4 - core index']
  #allocation1 [shape = 'u32[144,128]{1,0:T(1,128)}', space=vmem, size = 0x12000, scoped, tag = 'internal scratch']
  %s0 = inlined_call_operand.vmem [shape: bf16[8,128], index: 0, kind: input, shape index: {}]
  %s1 = inlined_call_operand.vmem [shape: f32[1,128], index: 1, kind: input, shape index: {}]
  %s2 = inlined_call_operand.vmem [shape: f32[1,128], index: 2, kind: input, shape index: {}]
  %s3 = inlined_call_operand.vmem [shape: bf16[8,128], index: 3, kind: output, shape index: {}]
  %s4 = sld [smem:[#allocation0]]
  $region22: #{resnet_forward.28} parent=0
    _
  %s6 = ssub.s32 1, %s4
  %s7 = scalar_select 0, %s6, %s4
  // Predicated region
  $region2: #{resnet_forward.28} parent=0 // pred_check
    _
  $region3: #{resnet_forward.28} parent=0 // pred_check_branch
    %9 = sbr.rel (0) target = $region5
  $region4: #{resnet_forward.28} parent=0 // pred_region
    _
  $region5: #{resnet_forward.28} parent=0 // pred_fallthru
    _
  // Predicated region
  $region6: #{resnet_forward.28} parent=0 // pred_check
    _
  $region7: #{resnet_forward.28} parent=0 // pred_check_branch
    %11 = sbr.rel (0) target = $region9
  $region8: #{resnet_forward.28} parent=0 // pred_region
    _
  $region9: #{resnet_forward.28} parent=0 // pred_fallthru
    _
  // Predicated region
  $region10: #{resnet_forward.28} parent=0 // pred_check
    _
  $region11: #{resnet_forward.28} parent=0 // pred_check_branch
    %13 = sbr.rel (0) target = $region13
  $region12: #{resnet_forward.28} parent=0 // pred_region
    _
  $region13: #{resnet_forward.28} parent=0 // pred_fallthru
    _
  %v14 = vld [vmem:[%s0] sm:$0xf]
  %v15 = vunpack.c.l.bf16 %v14
  %v16 = vld [vmem:[%s1] sm:$0x1]
  %v18 = vlaneseq
  %v19 = vshrl.u32 %v18, 7
  %v20 = vsub.s32 0, %v19
  %v21 = vrot.slane %v16, %v20
  %v23 = vmul.f32 %v15, %v21
  %v24 = vld [vmem:[%s2] sm:$0x1]
  %v26 = vlaneseq
  %v27 = vshrl.u32 %v26, 7
  %v28 = vsub.s32 0, %v27
  %v29 = vrot.slane %v24, %v28
  %v31 = vadd.f32 %v23, %v29
  %v32 = vpack.c.bf16 %v31, %v31
  %33 = vst [vmem:[%s3] sm:$0xf] %v32
  // Predicated region
  $region14: #{resnet_forward.28} parent=0 // pred_check
    _
  $region15: #{resnet_forward.28} parent=0 // pred_check_branch
    %35 = sbr.rel (0) target = $region17
  $region16: #{resnet_forward.28} parent=0 // pred_region
    _
  $region17: #{resnet_forward.28} parent=0 // pred_fallthru
    _
  // Predicated region
  $region18: #{resnet_forward.28} parent=0 // pred_check
    _
  $region19: #{resnet_forward.28} parent=0 // pred_check_branch
    %37 = sbr.rel (0) target = $region21
  $region20: #{resnet_forward.28} parent=0 // pred_region
    _
  $region21: #{resnet_forward.28} parent=0 // pred_fallthru
    _

// kernel: resnet_forward.26
$region0: #{resnet_forward.26}
  #allocation0 [shape = 'u32[]', space=smem, size = 0x4, offset = 0x4, fixed_abs, tag = 'smem constant byte address 0x4 - core index']
  #allocation1 [shape = 'u32[144,128]{1,0:T(1,128)}', space=vmem, size = 0x12000, scoped, tag = 'internal scratch']
  %s0 = inlined_call_operand.vmem [shape: bf16[8,128], index: 0, kind: input, shape index: {}]
  %s1 = inlined_call_operand.vmem [shape: f32[1,128], index: 1, kind: input, shape index: {}]
  %s2 = inlined_call_operand.vmem [shape: f32[1,128], index: 2, kind: input, shape index: {}]
  %s3 = inlined_call_operand.vmem [shape: bf16[8,128], index: 3, kind: output, shape index: {}]
  %s4 = sld [smem:[#allocation0]]
  $region22: #{resnet_forward.26} parent=0
    _
  %s6 = ssub.s32 1, %s4
  %s7 = scalar_select 0, %s6, %s4
  // Predicated region
  $region2: #{resnet_forward.26} parent=0 // pred_check
    _
  $region3: #{resnet_forward.26} parent=0 // pred_check_branch
    %9 = sbr.rel (0) target = $region5
  $region4: #{resnet_forward.26} parent=0 // pred_region
    _
  $region5: #{resnet_forward.26} parent=0 // pred_fallthru
    _
  // Predicated region
  $region6: #{resnet_forward.26} parent=0 // pred_check
    _
  $region7: #{resnet_forward.26} parent=0 // pred_check_branch
    %11 = sbr.rel (0) target = $region9
  $region8: #{resnet_forward.26} parent=0 // pred_region
    _
  $region9: #{resnet_forward.26} parent=0 // pred_fallthru
    _
  // Predicated region
  $region10: #{resnet_forward.26} parent=0 // pred_check
    _
  $region11: #{resnet_forward.26} parent=0 // pred_check_branch
    %13 = sbr.rel (0) target = $region13
  $region12: #{resnet_forward.26} parent=0 // pred_region
    _
  $region13: #{resnet_forward.26} parent=0 // pred_fallthru
    _
  %v14 = vld [vmem:[%s0] sm:$0xf]
  %v15 = vunpack.c.l.bf16 %v14
  %v16 = vld [vmem:[%s1] sm:$0x1]
  %v18 = vlaneseq
  %v19 = vshrl.u32 %v18, 7
  %v20 = vsub.s32 0, %v19
  %v21 = vrot.slane %v16, %v20
  %v23 = vmul.f32 %v15, %v21
  %v24 = vld [vmem:[%s2] sm:$0x1]
  %v26 = vlaneseq
  %v27 = vshrl.u32 %v26, 7
  %v28 = vsub.s32 0, %v27
  %v29 = vrot.slane %v24, %v28
  %v31 = vadd.f32 %v23, %v29
  %v32 = vmax.f32 %v31, 0.0
  %v33 = vpack.c.bf16 %v32, %v32
  %34 = vst [vmem:[%s3] sm:$0xf] %v33
  // Predicated region
  $region14: #{resnet_forward.26} parent=0 // pred_check
    _
  $region15: #{resnet_forward.26} parent=0 // pred_check_branch
    %36 = sbr.rel (0) target = $region17
  $region16: #{resnet_forward.26} parent=0 // pred_region
    _
  $region17: #{resnet_forward.26} parent=0 // pred_fallthru
    _
  // Predicated region
  $region18: #{resnet_forward.26} parent=0 // pred_check
    _
  $region19: #{resnet_forward.26} parent=0 // pred_check_branch
    %38 = sbr.rel (0) target = $region21
  $region20: #{resnet_forward.26} parent=0 // pred_region
    _
  $region21: #{resnet_forward.26} parent=0 // pred_fallthru
    _

// kernel: resnet_forward.30
$region0: #{resnet_forward.30}
  #allocation0 [shape = 'u32[]', space=smem, size = 0x4, offset = 0x4, fixed_abs, tag = 'smem constant byte address 0x4 - core index']
  #allocation1 [shape = 'u32[144,128]{1,0:T(1,128)}', space=vmem, size = 0x12000, scoped, tag = 'internal scratch']
  %s0 = inlined_call_operand.vmem [shape: bf16[8,128], index: 0, kind: input, shape index: {}]
  %s1 = inlined_call_operand.vmem [shape: f32[1,128], index: 1, kind: input, shape index: {}]
  %s2 = inlined_call_operand.vmem [shape: f32[1,128], index: 2, kind: input, shape index: {}]
  %s3 = inlined_call_operand.vmem [shape: bf16[8,128], index: 3, kind: input, shape index: {}]
  %s4 = inlined_call_operand.vmem [shape: bf16[8,128], index: 4, kind: output, shape index: {}]
  %s5 = sld [smem:[#allocation0]]
  $region26: #{resnet_forward.30} parent=0
    _
  %s7 = ssub.s32 1, %s5
  %s8 = scalar_select 0, %s7, %s5
  // Predicated region
  $region2: #{resnet_forward.30} parent=0 // pred_check
    _
  $region3: #{resnet_forward.30} parent=0 // pred_check_branch
    %10 = sbr.rel (0) target = $region5
  $region4: #{resnet_forward.30} parent=0 // pred_region
    _
  $region5: #{resnet_forward.30} parent=0 // pred_fallthru
    _
  // Predicated region
  $region6: #{resnet_forward.30} parent=0 // pred_check
    _
  $region7: #{resnet_forward.30} parent=0 // pred_check_branch
    %12 = sbr.rel (0) target = $region9
  $region8: #{resnet_forward.30} parent=0 // pred_region
    _
  $region9: #{resnet_forward.30} parent=0 // pred_fallthru
    _
  // Predicated region
  $region10: #{resnet_forward.30} parent=0 // pred_check
    _
  $region11: #{resnet_forward.30} parent=0 // pred_check_branch
    %14 = sbr.rel (0) target = $region13
  $region12: #{resnet_forward.30} parent=0 // pred_region
    _
  $region13: #{resnet_forward.30} parent=0 // pred_fallthru
    _
  // Predicated region
  $region14: #{resnet_forward.30} parent=0 // pred_check
    _
  $region15: #{resnet_forward.30} parent=0 // pred_check_branch
    %16 = sbr.rel (0) target = $region17
  $region16: #{resnet_forward.30} parent=0 // pred_region
    _
  $region17: #{resnet_forward.30} parent=0 // pred_fallthru
    _
  %v17 = vld [vmem:[%s0] sm:$0xf]
  %v18 = vunpack.c.l.bf16 %v17
  %v19 = vld [vmem:[%s1] sm:$0x1]
  %v21 = vlaneseq
  %v22 = vshrl.u32 %v21, 7
  %v23 = vsub.s32 0, %v22
  %v24 = vrot.slane %v19, %v23
  %v26 = vmul.f32 %v18, %v24
  %v27 = vld [vmem:[%s2] sm:$0x1]
  %v29 = vlaneseq
  %v30 = vshrl.u32 %v29, 7
  %v31 = vsub.s32 0, %v30
  %v32 = vrot.slane %v27, %v31
  %v34 = vadd.f32 %v26, %v32
  %v35 = vld [vmem:[%s3] sm:$0xf]
  %v36 = vunpack.c.l.bf16 %v35
  %v37 = vadd.f32 %v34, %v36
  %v38 = vmax.f32 %v37, 0.0
  %v39 = vpack.c.bf16 %v38, %v38
  %40 = vst [vmem:[%s4] sm:$0xf] %v39
  // Predicated region
  $region18: #{resnet_forward.30} parent=0 // pred_check
    _
  $region19: #{resnet_forward.30} parent=0 // pred_check_branch
    %42 = sbr.rel (0) target = $region21
  $region20: #{resnet_forward.30} parent=0 // pred_region
    _
  $region21: #{resnet_forward.30} parent=0 // pred_fallthru
    _
  // Predicated region
  $region22: #{resnet_forward.30} parent=0 // pred_check
    _
  $region23: #{resnet_forward.30} parent=0 // pred_check_branch
    %44 = sbr.rel (0) target = $region25
  $region24: #{resnet_forward.30} parent=0 // pred_region
    _
  $region25: #{resnet_forward.30} parent=0 // pred_fallthru
    _

// kernel: tile.163
$region0: #{tile.163}
  #allocation0 [shape = 's32[1]{0}', space=sflag, size = 0x4, scoped, tag = 'scoped memory for tile.163']
  %s0 = inlined_call_operand.vmem [shape: f32[16], index: 0, kind: input, shape index: {}]
  %s1 = inlined_call_operand.vmem [shape: f32[8,16], index: 1, kind: output, shape index: {}]
  // Predicated region
  $region2: #{tile.163} parent=0 // pred_check
    _
  $region3: #{tile.163} parent=0 // pred_check_branch
    %3 = sbr.rel (0) target = $region5
  $region4: #{tile.163} parent=0 // pred_region
    _
  $region5: #{tile.163} parent=0 // pred_fallthru
    _
  %v4 = vld [vmem:[%s0] ss:$0 sm:$0xff]
  %5 = vst [vmem:[%s1] sm:$0xff] %v4

// kernel: tile.164
$region0: #{tile.164}
  %s0 = inlined_call_operand.vmem [shape: f32[8,16], index: 0, kind: input, shape index: {}]
  %s1 = inlined_call_operand.vmem [shape: f32[1,128], index: 1, kind: output, shape index: {}]
  $region1: #{tile.164} parent=0
    #allocation0 [shape = 'u8[4096]{0}', space=vmem, size = 0x1000, scoped, tag = 'scoped mem for output reshape']
    %v2 = vld [vmem:[%s0] sm:$0x1]
    %vm3 = vcmask 130048
    %4 = vst.msk [vmem:[#allocation0] sm:$0x1] %vm3, %v2
    %s5 = scalar_lea.vmem %s0, 7
    %v6 = vld [vmem:[%s5] sm:$0x1]
    %7 = vrot.lane.b32.xlu0 %v6, 112
    %v8 = vpop.permute.xlu0 %7
    %vm9 = vcmask 1048448
    %10 = vst.msk [vmem:[#allocation0] sm:$0x1] %vm9, %v8
    %s11 = scalar_lea.vmem %s0, 6
    %v12 = vld [vmem:[%s11] sm:$0x1]
    %13 = vrot.lane.b32.xlu0 %v12, 96
    %v14 = vpop.permute.xlu0 %13
    %vm15 = vcmask 917248
    %16 = vst.msk [vmem:[#allocation0] sm:$0x1] %vm15, %v14
    %s17 = scalar_lea.vmem %s0, 5
    %v18 = vld [vmem:[%s17] sm:$0x1]
    %19 = vrot.lane.b32.xlu0 %v18, 80
    %v20 = vpop.permute.xlu0 %19
    %vm21 = vcmask 786048
    %22 = vst.msk [vmem:[#allocation0] sm:$0x1] %vm21, %v20
    %s23 = scalar_lea.vmem %s0, 4
    %v24 = vld [vmem:[%s23] sm:$0x1]
    %25 = vrot.lane.b32.xlu0 %v24, 64
    %v26 = vpop.permute.xlu0 %25
    %vm27 = vcmask 654848
    %28 = vst.msk [vmem:[#allocation0] sm:$0x1] %vm27, %v26
    %s29 = scalar_lea.vmem %s0, 3
    %v30 = vld [vmem:[%s29] sm:$0x1]
    %31 = vrot.lane.b32.xlu0 %v30, 48
    %v32 = vpop.permute.xlu0 %31
    %vm33 = vcmask 523648
    %34 = vst.msk [vmem:[#allocation0] sm:$0x1] %vm33, %v32
    %s35 = scalar_lea.vmem %s0, 2
    %v36 = vld [vmem:[%s35] sm:$0x1]
    %37 = vrot.lane.b32.xlu0 %v36, 32
    %v38 = vpop.permute.xlu0 %37
    %vm39 = vcmask 392448
    %40 = vst.msk [vmem:[#allocation0] sm:$0x1] %vm39, %v38
    %s41 = scalar_lea.vmem %s0, 1
    %v42 = vld [vmem:[%s41] sm:$0x1]
    %43 = vrot.lane.b32.xlu0 %v42, 16
    %v44 = vpop.permute.xlu0 %43
    %vm45 = vcmask 261248
    %46 = vst.msk [vmem:[#allocation0] sm:$0x1] %vm45, %v44
    %s48 = sshll.u32 1, 1
    %s49 = ssub.s32 %s48, 1
    %v51 = vld [vmem:[#allocation0] sm:%s49]
    %s52 = sshll.u32 1, 1
    %s53 = ssub.s32 %s52, 1
    %54 = vst [vmem:[%s1] sm:%s53] %v51

// kernel: resnet_forward.33
$region0: #{resnet_forward.33}
  #allocation0 [shape = 'u32[]', space=smem, size = 0x4, offset = 0x4, fixed_abs, tag = 'smem constant byte address 0x4 - core index']
  #allocation1 [shape = 'u32[144,128]{1,0:T(1,128)}', space=vmem, size = 0x12000, scoped, tag = 'internal scratch']
  #allocation2 [shape = 'f32[32,128]{1,0:T(8,128)}', space=vmem, size = 0x4000, scoped, tag = 'scratch operand']
  %s0 = inlined_call_operand.vmem [shape: bf16[32,128], index: 0, kind: input, shape index: {}]
  %s1 = inlined_call_operand.vmem [shape: bf16[128,128], index: 1, kind: input, shape index: {}]
  %s2 = inlined_call_operand.vmem [shape: bf16[32,16], index: 2, kind: output, shape index: {0}]
  %s3 = inlined_call_operand.vmem [shape: f32[8,16], index: 3, kind: output, shape index: {1}]
  %4 = xla_tuple %s2, %s3
  %s5 = sld [smem:[#allocation0]]
  $region34: #{resnet_forward.33} parent=0
    _
  %s7 = ssub.s32 1, %s5
  %s8 = scalar_select 0, %s7, %s5
  // Predicated region
  $region2: #{resnet_forward.33} parent=0 // pred_check
    _
  $region3: #{resnet_forward.33} parent=0 // pred_check_branch
    %10 = sbr.rel (0) target = $region5
  $region4: #{resnet_forward.33} parent=0 // pred_region
    _
  $region5: #{resnet_forward.33} parent=0 // pred_fallthru
    _
  // Predicated region
  $region6: #{resnet_forward.33} parent=0 // pred_check
    _
  $region7: #{resnet_forward.33} parent=0 // pred_check_branch
    %12 = sbr.rel (0) target = $region9
  $region8: #{resnet_forward.33} parent=0 // pred_region
    _
  $region9: #{resnet_forward.33} parent=0 // pred_fallthru
    _
  %p14 = scmp.eq.s32.totalorder 0, 0
  // Predicated region
  $region10: #{resnet_forward.33} parent=0 // pred_check
    %p15 = pneg %p14
  $region11: #{resnet_forward.33} parent=0 // pred_check_branch
    %17 = sbr.rel (%p15) target = $region13
  $region12: #{resnet_forward.33} parent=0 // pred_region
    %18 = vst [vmem:[#allocation2] sm:$0xff] 0.0
    %19 = vst [vmem:[#allocation2 + $0x8] sm:$0xff] 0.0
    %20 = vst [vmem:[#allocation2 + $0x10] sm:$0xff] 0.0
    %21 = vst [vmem:[#allocation2 + $0x18] sm:$0xff] 0.0
  $region13: #{resnet_forward.33} parent=0 // pred_fallthru
    _
  %v22 = vld [vmem:[#allocation2] sm:$0xff]
  %v23 = vld [vmem:[#allocation2 + $0x8] sm:$0xff]
  %v24 = vld [vmem:[#allocation2 + $0x10] sm:$0xff]
  %v25 = vld [vmem:[#allocation2 + $0x18] sm:$0xff]
  %v26 = vld [vmem:[%s0] sm:$0xf]
  %v27 = vld [vmem:[%s0 + $0x4] sm:$0xf]
  %v28 = vld [vmem:[%s0 + $0x8] sm:$0xf]
  %v29 = vld [vmem:[%s0 + $0xc] sm:$0xf]
  %v30 = vld [vmem:[%s1] sm:$0xf]
  %v31 = vld [vmem:[%s1 + $0x4] sm:$0xf]
  %v32 = vld [vmem:[%s1 + $0x8] sm:$0xf]
  %v33 = vld [vmem:[%s1 + $0xc] sm:$0xf]
  %v34 = vld [vmem:[%s1 + $0x10] sm:$0xf]
  %v35 = vld [vmem:[%s1 + $0x14] sm:$0xf]
  %v36 = vld [vmem:[%s1 + $0x18] sm:$0xf]
  %v37 = vld [vmem:[%s1 + $0x1c] sm:$0xf]
  %v38 = vld [vmem:[%s1 + $0x20] sm:$0xf]
  %v39 = vld [vmem:[%s1 + $0x24] sm:$0xf]
  %v40 = vld [vmem:[%s1 + $0x28] sm:$0xf]
  %v41 = vld [vmem:[%s1 + $0x2c] sm:$0xf]
  %v42 = vld [vmem:[%s1 + $0x30] sm:$0xf]
  %v43 = vld [vmem:[%s1 + $0x34] sm:$0xf]
  %v44 = vld [vmem:[%s1 + $0x38] sm:$0xf]
  %v45 = vld [vmem:[%s1 + $0x3c] sm:$0xf]
  %v50 = vunpack.c.l.b16 %v26
  %v51 = vunpack.c.l.b16 %v27
  %v52 = vunpack.c.l.b16 %v28
  %v53 = vunpack.c.l.b16 %v29
  %v54 = vpack.c.b16 %v51, %v50
  %v55 = vpack.c.b16 %v53, %v52
  %v74 = vunpack.c.l.b16 %v30
  %v75 = vunpack.c.l.b16 %v31
  %v76 = vunpack.c.l.b16 %v32
  %v77 = vunpack.c.l.b16 %v33
  %v78 = vunpack.c.l.b16 %v34
  %v79 = vunpack.c.l.b16 %v35
  %v80 = vunpack.c.l.b16 %v36
  %v81 = vunpack.c.l.b16 %v37
  %v82 = vunpack.c.l.b16 %v38
  %v83 = vunpack.c.l.b16 %v39
  %v84 = vunpack.c.l.b16 %v40
  %v85 = vunpack.c.l.b16 %v41
  %v86 = vunpack.c.l.b16 %v42
  %v87 = vunpack.c.l.b16 %v43
  %v88 = vunpack.c.l.b16 %v44
  %v89 = vunpack.c.l.b16 %v45
  %v90 = vpack.c.b16 %v75, %v74
  %v91 = vpack.c.b16 %v77, %v76
  %v92 = vpack.c.b16 %v79, %v78
  %v93 = vpack.c.b16 %v81, %v80
  %v94 = vpack.c.b16 %v83, %v82
  %v95 = vpack.c.b16 %v85, %v84
  %v96 = vpack.c.b16 %v87, %v86
  %v97 = vpack.c.b16 %v89, %v88
  %106 = vmatprep.subr.bf16.mxu0 0
  %107 = vmatpush1.bf16.msra.mxu0 %v97
  %108 = vmatprep.subr.bf16.mxu0 0
  %109 = vmatpush1.bf16.msra.mxu0 %v96
  %110 = vmatprep.subr.bf16.mxu0 0
  %111 = vmatpush1.bf16.msra.mxu0 %v95
  %112 = vmatprep.subr.bf16.mxu0 0
  %113 = vmatpush1.bf16.msra.mxu0 %v94
  %114 = vmatprep.subr.bf16.mxu0 0
  %115 = vmatpush1.bf16.msra.mxu0 %v93
  %116 = vmatprep.subr.bf16.mxu0 0
  %117 = vmatpush1.bf16.msra.mxu0 %v92
  %118 = vmatprep.subr.bf16.mxu0 0
  %119 = vmatpush1.bf16.msra.mxu0 %v91
  %120 = vmatprep.subr.bf16.mxu0 0
  %121 = vmatpush1.bf16.msra.mxu0 %v90
  %122 = vmatprep.subr.bf16.mxu0 0
  %123 = vmatpush2.bf16.msra.mxu0 0
  %124 = vmatprep.subr.bf16.mxu0 0
  %125 = vmatpush2.bf16.msra.mxu0 0
  %126 = vmatprep.subr.bf16.mxu0 0
  %127 = vmatpush2.bf16.msra.mxu0 0
  %128 = vmatprep.subr.bf16.mxu0 0
  %129 = vmatpush2.bf16.msra.mxu0 0
  %130 = vmatprep.subr.bf16.mxu0 0
  %131 = vmatpush2.bf16.msra.mxu0 0
  %132 = vmatprep.subr.bf16.mxu0 0
  %133 = vmatpush2.bf16.msra.mxu0 0
  %134 = vmatprep.subr.bf16.mxu0 0
  %135 = vmatpush2.bf16.msra.mxu0 0
  %136 = vmatprep.subr.bf16.mxu0 0
  %137 = vmatpush2.bf16.msra.mxu0 0
  %138 = vmatprep.mubr.bf16.mxu0 0
  %139 = vmatmul.mubr.bf16.gmra.mxu0 %v54
  %v140 = vpop.f32.mrf.mxu0
  %v141 = vadd.f32 0.0, %v140
  %v142 = vpop.f32.mrf.mxu0
  %v143 = vpop.f32.mrf.mxu0
  %v144 = vadd.f32 0.0, %v143
  %v145 = vpop.f32.mrf.mxu0
  %146 = vmatprep.mubr.bf16.mxu0 0
  %147 = vmatmul.mubr.bf16.gmra.mxu0 %v55
  %v148 = vpop.f32.mrf.mxu0
  %v149 = vadd.f32 0.0, %v148
  %v150 = vpop.f32.mrf.mxu0
  %v151 = vpop.f32.mrf.mxu0
  %v152 = vadd.f32 0.0, %v151
  %v153 = vpop.f32.mrf.mxu0
  %154 = vdwg.mxu0
  %v155 = vadd.f32 %v22, %v141
  %v156 = vadd.f32 %v23, %v144
  %v157 = vadd.f32 %v24, %v149
  %v158 = vadd.f32 %v25, %v152
  %159 = vst [vmem:[#allocation2] sm:$0xff] %v155
  %160 = vst [vmem:[#allocation2 + $0x8] sm:$0xff] %v156
  %161 = vst [vmem:[#allocation2 + $0x10] sm:$0xff] %v157
  %162 = vst [vmem:[#allocation2 + $0x18] sm:$0xff] %v158
  // Predicated region
  $region14: #{resnet_forward.33} parent=0 // pred_check
    %p163 = pneg %p14
  $region15: #{resnet_forward.33} parent=0 // pred_check_branch
    %165 = sbr.rel (%p163) target = $region17
  $region16: #{resnet_forward.33} parent=0 // pred_region
    %v166 = vld [vmem:[#allocation2] sm:$0xff]
    %v167 = vld [vmem:[#allocation2 + $0x8] sm:$0xff]
    %v168 = vld [vmem:[#allocation2 + $0x10] sm:$0xff]
    %v169 = vld [vmem:[#allocation2 + $0x18] sm:$0xff]
    %v170 = vpack.c.bf16 %v167, %v166
    %v171 = vpack.c.bf16 %v169, %v168
    %v174 = vunpack.c.l.b16 %v170
    %v175 = vunpack.c.h.b16 %v170
    %v176 = vunpack.c.l.b16 %v171
    %v177 = vunpack.c.h.b16 %v171
    %v178 = vpack.c.b16 %v174, %v174
    %v179 = vpack.c.b16 %v175, %v175
    %v180 = vpack.c.b16 %v176, %v176
    %v181 = vpack.c.b16 %v177, %v177
    %vm186 = vcmask 125952
    %187 = vst.msk [vmem:[%s2] sm:$0xf] %vm186, %v178
    %188 = vst.msk [vmem:[%s2 + $0x4] sm:$0xf] %vm186, %v179
    %189 = vst.msk [vmem:[%s2 + $0x8] sm:$0xf] %vm186, %v180
    %190 = vst.msk [vmem:[%s2 + $0xc] sm:$0xf] %vm186, %v181
    %vm191 = vcmask 130048
    %v192 = vsel %vm191, %v166, 0.0
    %v193 = vsel %vm191, %v167, 0.0
    %v194 = vadd.f32 %v192, %v193
    %v195 = vsel %vm191, %v168, 0.0
    %v196 = vadd.f32 %v194, %v195
    %v197 = vsel %vm191, %v169, 0.0
    %v198 = vadd.f32 %v196, %v197
    %v199 = vrot.slane %v198, 4
    %v200 = vadd.f32 %v198, %v199
    %v201 = vrot.slane %v200, 2
    %v202 = vadd.f32 %v200, %v201
    %v203 = vrot.slane %v202, 1
    %v204 = vadd.f32 %v202, %v203
    %v205 = vmul.f32 %v166, %v166
    %v206 = vmul.f32 %v167, %v167
    %v207 = vmul.f32 %v168, %v168
    %v208 = vmul.f32 %v169, %v169
    %v209 = vsel %vm191, %v205, 0.0
    %v210 = vsel %vm191, %v206, 0.0
    %v211 = vadd.f32 %v209, %v210
    %v212 = vsel %vm191, %v207, 0.0
    %v213 = vadd.f32 %v211, %v212
    %v214 = vsel %vm191, %v208, 0.0
    %v215 = vadd.f32 %v213, %v214
    %v216 = vrot.slane %v215, 4
    %v217 = vadd.f32 %v215, %v216
    %v218 = vrot.slane %v217, 2
    %v219 = vadd.f32 %v217, %v218
    %v220 = vrot.slane %v219, 1
    %v221 = vadd.f32 %v219, %v220
    %v222 = vlaneseq
    %v223 = vshrl.u32 %v222, 7
    %vm224 = vcmp.lt.s32.totalorder %v223, 4
    %v225 = vsel %vm224, %v204, %v221
    %226 = vst.msk [vmem:[%s3] sm:$0xff] %vm191, %v225
  $region17: #{resnet_forward.33} parent=0 // pred_fallthru
    _
  // Predicated region
  $region18: #{resnet_forward.33} parent=0 // pred_check
    _
  $region19: #{resnet_forward.33} parent=0 // pred_check_branch
    %228 = sbr.rel (0) target = $region21
  $region20: #{resnet_forward.33} parent=0 // pred_region
    _
  $region21: #{resnet_forward.33} parent=0 // pred_fallthru
    _
  // Predicated region
  $region22: #{resnet_forward.33} parent=0 // pred_check
    _
  $region23: #{resnet_forward.33} parent=0 // pred_check_branch
    %230 = sbr.rel (0) target = $region25
  $region24: #{resnet_forward.33} parent=0 // pred_region
    _
  $region25: #{resnet_forward.33} parent=0 // pred_fallthru
    _
  // Predicated region
  $region26: #{resnet_forward.33} parent=0 // pred_check
    _
  $region27: #{resnet_forward.33} parent=0 // pred_check_branch
    %232 = sbr.rel (0) target = $region29
  $region28: #{resnet_forward.33} parent=0 // pred_region
    _
  $region29: #{resnet_forward.33} parent=0 // pred_fallthru
    _
  // Predicated region
  $region30: #{resnet_forward.33} parent=0 // pred_check
    _
  $region31: #{resnet_forward.33} parent=0 // pred_check_branch
    %234 = sbr.rel (0) target = $region33
  $region32: #{resnet_forward.33} parent=0 // pred_region
    _
  $region33: #{resnet_forward.33} parent=0 // pred_fallthru
    _

// kernel: resnet_forward.35
$region0: #{resnet_forward.35}
  #allocation0 [shape = 'u32[]', space=smem, size = 0x4, offset = 0x4, fixed_abs, tag = 'smem constant byte address 0x4 - core index']
  #allocation1 [shape = 'u32[144,128]{1,0:T(1,128)}', space=vmem, size = 0x12000, scoped, tag = 'internal scratch']
  #allocation2 [shape = 'f32[32,128]{1,0:T(8,128)}', space=vmem, size = 0x4000, scoped, tag = 'scratch operand']
  %s0 = inlined_call_operand.vmem [shape: bf16[32,256], index: 0, kind: input, shape index: {}]
  %s1 = inlined_call_operand.vmem [shape: bf16[256,128], index: 1, kind: input, shape index: {}]
  %s2 = inlined_call_operand.vmem [shape: bf16[32,16], index: 2, kind: output, shape index: {0}]
  %s3 = inlined_call_operand.vmem [shape: f32[8,16], index: 3, kind: output, shape index: {1}]
  %4 = xla_tuple %s2, %s3
  %s5 = sld [smem:[#allocation0]]
  $region34: #{resnet_forward.35} parent=0
    _
  %s7 = ssub.s32 1, %s5
  %s8 = scalar_select 0, %s7, %s5
  // Predicated region
  $region2: #{resnet_forward.35} parent=0 // pred_check
    _
  $region3: #{resnet_forward.35} parent=0 // pred_check_branch
    %10 = sbr.rel (0) target = $region5
  $region4: #{resnet_forward.35} parent=0 // pred_region
    _
  $region5: #{resnet_forward.35} parent=0 // pred_fallthru
    _
  // Predicated region
  $region6: #{resnet_forward.35} parent=0 // pred_check
    _
  $region7: #{resnet_forward.35} parent=0 // pred_check_branch
    %12 = sbr.rel (0) target = $region9
  $region8: #{resnet_forward.35} parent=0 // pred_region
    _
  $region9: #{resnet_forward.35} parent=0 // pred_fallthru
    _
  %p14 = scmp.eq.s32.totalorder 0, 0
  // Predicated region
  $region10: #{resnet_forward.35} parent=0 // pred_check
    %p15 = pneg %p14
  $region11: #{resnet_forward.35} parent=0 // pred_check_branch
    %17 = sbr.rel (%p15) target = $region13
  $region12: #{resnet_forward.35} parent=0 // pred_region
    %18 = vst [vmem:[#allocation2] sm:$0xff] 0.0
    %19 = vst [vmem:[#allocation2 + $0x8] sm:$0xff] 0.0
    %20 = vst [vmem:[#allocation2 + $0x10] sm:$0xff] 0.0
    %21 = vst [vmem:[#allocation2 + $0x18] sm:$0xff] 0.0
  $region13: #{resnet_forward.35} parent=0 // pred_fallthru
    _
  %v22 = vld [vmem:[#allocation2] sm:$0xff]
  %v23 = vld [vmem:[#allocation2 + $0x8] sm:$0xff]
  %v24 = vld [vmem:[#allocation2 + $0x10] sm:$0xff]
  %v25 = vld [vmem:[#allocation2 + $0x18] sm:$0xff]
  %v26 = vld [vmem:[%s0] sm:$0xff]
  %v27 = vld [vmem:[%s0 + $0x8] sm:$0xff]
  %v28 = vld [vmem:[%s0 + $0x10] sm:$0xff]
  %v29 = vld [vmem:[%s0 + $0x18] sm:$0xff]
  %v30 = vld [vmem:[%s1] sm:$0xf]
  %v31 = vld [vmem:[%s1 + $0x4] sm:$0xf]
  %v32 = vld [vmem:[%s1 + $0x8] sm:$0xf]
  %v33 = vld [vmem:[%s1 + $0xc] sm:$0xf]
  %v34 = vld [vmem:[%s1 + $0x10] sm:$0xf]
  %v35 = vld [vmem:[%s1 + $0x14] sm:$0xf]
  %v36 = vld [vmem:[%s1 + $0x18] sm:$0xf]
  %v37 = vld [vmem:[%s1 + $0x1c] sm:$0xf]
  %v38 = vld [vmem:[%s1 + $0x20] sm:$0xf]
  %v39 = vld [vmem:[%s1 + $0x24] sm:$0xf]
  %v40 = vld [vmem:[%s1 + $0x28] sm:$0xf]
  %v41 = vld [vmem:[%s1 + $0x2c] sm:$0xf]
  %v42 = vld [vmem:[%s1 + $0x30] sm:$0xf]
  %v43 = vld [vmem:[%s1 + $0x34] sm:$0xf]
  %v44 = vld [vmem:[%s1 + $0x38] sm:$0xf]
  %v45 = vld [vmem:[%s1 + $0x3c] sm:$0xf]
  %v46 = vld [vmem:[%s1 + $0x40] sm:$0xf]
  %v47 = vld [vmem:[%s1 + $0x44] sm:$0xf]
  %v48 = vld [vmem:[%s1 + $0x48] sm:$0xf]
  %v49 = vld [vmem:[%s1 + $0x4c] sm:$0xf]
  %v50 = vld [vmem:[%s1 + $0x50] sm:$0xf]
  %v51 = vld [vmem:[%s1 + $0x54] sm:$0xf]
  %v52 = vld [vmem:[%s1 + $0x58] sm:$0xf]
  %v53 = vld [vmem:[%s1 + $0x5c] sm:$0xf]
  %v54 = vld [vmem:[%s1 + $0x60] sm:$0xf]
  %v55 = vld [vmem:[%s1 + $0x64] sm:$0xf]
  %v56 = vld [vmem:[%s1 + $0x68] sm:$0xf]
  %v57 = vld [vmem:[%s1 + $0x6c] sm:$0xf]
  %v58 = vld [vmem:[%s1 + $0x70] sm:$0xf]
  %v59 = vld [vmem:[%s1 + $0x74] sm:$0xf]
  %v60 = vld [vmem:[%s1 + $0x78] sm:$0xf]
  %v61 = vld [vmem:[%s1 + $0x7c] sm:$0xf]
  %v66 = vunpack.c.l.b16 %v26
  %v67 = vunpack.c.h.b16 %v26
  %v68 = vunpack.c.l.b16 %v27
  %v69 = vunpack.c.h.b16 %v27
  %v70 = vunpack.c.l.b16 %v28
  %v71 = vunpack.c.h.b16 %v28
  %v72 = vunpack.c.l.b16 %v29
  %v73 = vunpack.c.h.b16 %v29
  %v74 = vpack.c.b16 %v68, %v66
  %v75 = vpack.c.b16 %v69, %v67
  %v76 = vpack.c.b16 %v72, %v70
  %v77 = vpack.c.b16 %v73, %v71
  %v114 = vunpack.c.l.b16 %v30
  %v115 = vunpack.c.l.b16 %v31
  %v116 = vunpack.c.l.b16 %v32
  %v117 = vunpack.c.l.b16 %v33
  %v118 = vunpack.c.l.b16 %v34
  %v119 = vunpack.c.l.b16 %v35
  %v120 = vunpack.c.l.b16 %v36
  %v121 = vunpack.c.l.b16 %v37
  %v122 = vunpack.c.l.b16 %v38
  %v123 = vunpack.c.l.b16 %v39
  %v124 = vunpack.c.l.b16 %v40
  %v125 = vunpack.c.l.b16 %v41
  %v126 = vunpack.c.l.b16 %v42
  %v127 = vunpack.c.l.b16 %v43
  %v128 = vunpack.c.l.b16 %v44
  %v129 = vunpack.c.l.b16 %v45
  %v130 = vunpack.c.l.b16 %v46
  %v131 = vunpack.c.l.b16 %v47
  %v132 = vunpack.c.l.b16 %v48
  %v133 = vunpack.c.l.b16 %v49
  %v134 = vunpack.c.l.b16 %v50
  %v135 = vunpack.c.l.b16 %v51
  %v136 = vunpack.c.l.b16 %v52
  %v137 = vunpack.c.l.b16 %v53
  %v138 = vunpack.c.l.b16 %v54
  %v139 = vunpack.c.l.b16 %v55
  %v140 = vunpack.c.l.b16 %v56
  %v141 = vunpack.c.l.b16 %v57
  %v142 = vunpack.c.l.b16 %v58
  %v143 = vunpack.c.l.b16 %v59
  %v144 = vunpack.c.l.b16 %v60
  %v145 = vunpack.c.l.b16 %v61
  %v146 = vpack.c.b16 %v115, %v114
  %v147 = vpack.c.b16 %v117, %v116
  %v148 = vpack.c.b16 %v119, %v118
  %v149 = vpack.c.b16 %v121, %v120
  %v150 = vpack.c.b16 %v123, %v122
  %v151 = vpack.c.b16 %v125, %v124
  %v152 = vpack.c.b16 %v127, %v126
  %v153 = vpack.c.b16 %v129, %v128
  %v154 = vpack.c.b16 %v131, %v130
  %v155 = vpack.c.b16 %v133, %v132
  %v156 = vpack.c.b16 %v135, %v134
  %v157 = vpack.c.b16 %v137, %v136
  %v158 = vpack.c.b16 %v139, %v138
  %v159 = vpack.c.b16 %v141, %v140
  %v160 = vpack.c.b16 %v143, %v142
  %v161 = vpack.c.b16 %v145, %v144
  %178 = vmatprep.subr.bf16.mxu0 0
  %179 = vmatpush1.bf16.msra.mxu0 %v153
  %180 = vmatprep.subr.bf16.mxu0 0
  %181 = vmatpush1.bf16.msra.mxu0 %v152
  %182 = vmatprep.subr.bf16.mxu0 0
  %183 = vmatpush1.bf16.msra.mxu0 %v151
  %184 = vmatprep.subr.bf16.mxu0 0
  %185 = vmatpush1.bf16.msra.mxu0 %v150
  %186 = vmatprep.subr.bf16.mxu0 0
  %187 = vmatpush1.bf16.msra.mxu0 %v149
  %188 = vmatprep.subr.bf16.mxu0 0
  %189 = vmatpush1.bf16.msra.mxu0 %v148
  %190 = vmatprep.subr.bf16.mxu0 0
  %191 = vmatpush1.bf16.msra.mxu0 %v147
  %192 = vmatprep.subr.bf16.mxu0 0
  %193 = vmatpush1.bf16.msra.mxu0 %v146
  %194 = vmatprep.subr.bf16.mxu0 0
  %195 = vmatpush2.bf16.msra.mxu0 %v161
  %196 = vmatprep.subr.bf16.mxu0 0
  %197 = vmatpush2.bf16.msra.mxu0 %v160
  %198 = vmatprep.subr.bf16.mxu0 0
  %199 = vmatpush2.bf16.msra.mxu0 %v159
  %200 = vmatprep.subr.bf16.mxu0 0
  %201 = vmatpush2.bf16.msra.mxu0 %v158
  %202 = vmatprep.subr.bf16.mxu0 0
  %203 = vmatpush2.bf16.msra.mxu0 %v157
  %204 = vmatprep.subr.bf16.mxu0 0
  %205 = vmatpush2.bf16.msra.mxu0 %v156
  %206 = vmatprep.subr.bf16.mxu0 0
  %207 = vmatpush2.bf16.msra.mxu0 %v155
  %208 = vmatprep.subr.bf16.mxu0 0
  %209 = vmatpush2.bf16.msra.mxu0 %v154
  %210 = vmatprep.mubr.bf16.mxu0 %v75
  %211 = vmatmul.mubr.bf16.gmra.mxu0 %v74
  %v212 = vpop.f32.mrf.mxu0
  %v213 = vadd.f32 0.0, %v212
  %v214 = vpop.f32.mrf.mxu0
  %v215 = vpop.f32.mrf.mxu0
  %v216 = vadd.f32 0.0, %v215
  %v217 = vpop.f32.mrf.mxu0
  %218 = vmatprep.mubr.bf16.mxu0 %v77
  %219 = vmatmul.mubr.bf16.gmra.mxu0 %v76
  %v220 = vpop.f32.mrf.mxu0
  %v221 = vadd.f32 0.0, %v220
  %v222 = vpop.f32.mrf.mxu0
  %v223 = vpop.f32.mrf.mxu0
  %v224 = vadd.f32 0.0, %v223
  %v225 = vpop.f32.mrf.mxu0
  %226 = vdwg.mxu0
  %v227 = vadd.f32 %v22, %v213
  %v228 = vadd.f32 %v23, %v216
  %v229 = vadd.f32 %v24, %v221
  %v230 = vadd.f32 %v25, %v224
  %231 = vst [vmem:[#allocation2] sm:$0xff] %v227
  %232 = vst [vmem:[#allocation2 + $0x8] sm:$0xff] %v228
  %233 = vst [vmem:[#allocation2 + $0x10] sm:$0xff] %v229
  %234 = vst [vmem:[#allocation2 + $0x18] sm:$0xff] %v230
  // Predicated region
  $region14: #{resnet_forward.35} parent=0 // pred_check
    %p235 = pneg %p14
  $region15: #{resnet_forward.35} parent=0 // pred_check_branch
    %237 = sbr.rel (%p235) target = $region17
  $region16: #{resnet_forward.35} parent=0 // pred_region
    %v238 = vld [vmem:[#allocation2] sm:$0xff]
    %v239 = vld [vmem:[#allocation2 + $0x8] sm:$0xff]
    %v240 = vld [vmem:[#allocation2 + $0x10] sm:$0xff]
    %v241 = vld [vmem:[#allocation2 + $0x18] sm:$0xff]
    %v242 = vpack.c.bf16 %v239, %v238
    %v243 = vpack.c.bf16 %v241, %v240
    %v246 = vunpack.c.l.b16 %v242
    %v247 = vunpack.c.h.b16 %v242
    %v248 = vunpack.c.l.b16 %v243
    %v249 = vunpack.c.h.b16 %v243
    %v250 = vpack.c.b16 %v246, %v246
    %v251 = vpack.c.b16 %v247, %v247
    %v252 = vpack.c.b16 %v248, %v248
    %v253 = vpack.c.b16 %v249, %v249
    %vm258 = vcmask 125952
    %259 = vst.msk [vmem:[%s2] sm:$0xf] %vm258, %v250
    %260 = vst.msk [vmem:[%s2 + $0x4] sm:$0xf] %vm258, %v251
    %261 = vst.msk [vmem:[%s2 + $0x8] sm:$0xf] %vm258, %v252
    %262 = vst.msk [vmem:[%s2 + $0xc] sm:$0xf] %vm258, %v253
    %vm263 = vcmask 130048
    %v264 = vsel %vm263, %v238, 0.0
    %v265 = vsel %vm263, %v239, 0.0
    %v266 = vadd.f32 %v264, %v265
    %v267 = vsel %vm263, %v240, 0.0
    %v268 = vadd.f32 %v266, %v267
    %v269 = vsel %vm263, %v241, 0.0
    %v270 = vadd.f32 %v268, %v269
    %v271 = vrot.slane %v270, 4
    %v272 = vadd.f32 %v270, %v271
    %v273 = vrot.slane %v272, 2
    %v274 = vadd.f32 %v272, %v273
    %v275 = vrot.slane %v274, 1
    %v276 = vadd.f32 %v274, %v275
    %v277 = vmul.f32 %v238, %v238
    %v278 = vmul.f32 %v239, %v239
    %v279 = vmul.f32 %v240, %v240
    %v280 = vmul.f32 %v241, %v241
    %v281 = vsel %vm263, %v277, 0.0
    %v282 = vsel %vm263, %v278, 0.0
    %v283 = vadd.f32 %v281, %v282
    %v284 = vsel %vm263, %v279, 0.0
    %v285 = vadd.f32 %v283, %v284
    %v286 = vsel %vm263, %v280, 0.0
    %v287 = vadd.f32 %v285, %v286
    %v288 = vrot.slane %v287, 4
    %v289 = vadd.f32 %v287, %v288
    %v290 = vrot.slane %v289, 2
    %v291 = vadd.f32 %v289, %v290
    %v292 = vrot.slane %v291, 1
    %v293 = vadd.f32 %v291, %v292
    %v294 = vlaneseq
    %v295 = vshrl.u32 %v294, 7
    %vm296 = vcmp.lt.s32.totalorder %v295, 4
    %v297 = vsel %vm296, %v276, %v293
    %298 = vst.msk [vmem:[%s3] sm:$0xff] %vm263, %v297
  $region17: #{resnet_forward.35} parent=0 // pred_fallthru
    _
  // Predicated region
  $region18: #{resnet_forward.35} parent=0 // pred_check
    _
  $region19: #{resnet_forward.35} parent=0 // pred_check_branch
    %300 = sbr.rel (0) target = $region21
  $region20: #{resnet_forward.35} parent=0 // pred_region
    _
  $region21: #{resnet_forward.35} parent=0 // pred_fallthru
    _
  // Predicated region
  $region22: #{resnet_forward.35} parent=0 // pred_check
    _
  $region23: #{resnet_forward.35} parent=0 // pred_check_branch
    %302 = sbr.rel (0) target = $region25
  $region24: #{resnet_forward.35} parent=0 // pred_region
    _
  $region25: #{resnet_forward.35} parent=0 // pred_fallthru
    _
  // Predicated region
  $region26: #{resnet_forward.35} parent=0 // pred_check
    _
  $region27: #{resnet_forward.35} parent=0 // pred_check_branch
    %304 = sbr.rel (0) target = $region29
  $region28: #{resnet_forward.35} parent=0 // pred_region
    _
  $region29: #{resnet_forward.35} parent=0 // pred_fallthru
    _
  // Predicated region
  $region30: #{resnet_forward.35} parent=0 // pred_check
    _
  $region31: #{resnet_forward.35} parent=0 // pred_check_branch
    %306 = sbr.rel (0) target = $region33
  $region32: #{resnet_forward.35} parent=0 // pred_region
    _
  $region33: #{resnet_forward.35} parent=0 // pred_fallthru
    _

// kernel: resnet_forward.37
$region0: #{resnet_forward.37}
  #allocation0 [shape = 'u32[]', space=smem, size = 0x4, offset = 0x4, fixed_abs, tag = 'smem constant byte address 0x4 - core index']
  #allocation1 [shape = 'u32[144,128]{1,0:T(1,128)}', space=vmem, size = 0x12000, scoped, tag = 'internal scratch']
  #allocation2 [shape = 'f32[8,128]{1,0:T(8,128)}', space=vmem, size = 0x1000, scoped, tag = 'scratch operand']
  %s0 = inlined_call_operand.vmem [shape: bf16[8,128], index: 0, kind: input, shape index: {}]
  %s1 = inlined_call_operand.vmem [shape: bf16[128,128], index: 1, kind: input, shape index: {}]
  %s2 = inlined_call_operand.vmem [shape: f32[1,2], index: 2, kind: input, shape index: {}]
  %s3 = inlined_call_operand.vmem [shape: f32[8,2], index: 3, kind: output, shape index: {}]
  %s4 = sld [smem:[#allocation0]]
  $region30: #{resnet_forward.37} parent=0
    _
  %s6 = ssub.s32 1, %s4
  %s7 = scalar_select 0, %s6, %s4
  // Predicated region
  $region2: #{resnet_forward.37} parent=0 // pred_check
    _
  $region3: #{resnet_forward.37} parent=0 // pred_check_branch
    %9 = sbr.rel (0) target = $region5
  $region4: #{resnet_forward.37} parent=0 // pred_region
    _
  $region5: #{resnet_forward.37} parent=0 // pred_fallthru
    _
  // Predicated region
  $region6: #{resnet_forward.37} parent=0 // pred_check
    _
  $region7: #{resnet_forward.37} parent=0 // pred_check_branch
    %11 = sbr.rel (0) target = $region9
  $region8: #{resnet_forward.37} parent=0 // pred_region
    _
  $region9: #{resnet_forward.37} parent=0 // pred_fallthru
    _
  // Predicated region
  $region10: #{resnet_forward.37} parent=0 // pred_check
    _
  $region11: #{resnet_forward.37} parent=0 // pred_check_branch
    %13 = sbr.rel (0) target = $region13
  $region12: #{resnet_forward.37} parent=0 // pred_region
    _
  $region13: #{resnet_forward.37} parent=0 // pred_fallthru
    _
  %p15 = scmp.eq.s32.totalorder 0, 0
  // Predicated region
  $region14: #{resnet_forward.37} parent=0 // pred_check
    %p16 = pneg %p15
  $region15: #{resnet_forward.37} parent=0 // pred_check_branch
    %18 = sbr.rel (%p16) target = $region17
  $region16: #{resnet_forward.37} parent=0 // pred_region
    %19 = vst [vmem:[#allocation2] sm:$0xff] 0.0
  $region17: #{resnet_forward.37} parent=0 // pred_fallthru
    _
  %v20 = vld [vmem:[#allocation2] sm:$0xff]
  %v21 = vld [vmem:[%s0] sm:$0xf]
  %v22 = vld [vmem:[%s1] sm:$0xf]
  %v23 = vld [vmem:[%s1 + $0x4] sm:$0xf]
  %v24 = vld [vmem:[%s1 + $0x8] sm:$0xf]
  %v25 = vld [vmem:[%s1 + $0xc] sm:$0xf]
  %v26 = vld [vmem:[%s1 + $0x10] sm:$0xf]
  %v27 = vld [vmem:[%s1 + $0x14] sm:$0xf]
  %v28 = vld [vmem:[%s1 + $0x18] sm:$0xf]
  %v29 = vld [vmem:[%s1 + $0x1c] sm:$0xf]
  %v30 = vld [vmem:[%s1 + $0x20] sm:$0xf]
  %v31 = vld [vmem:[%s1 + $0x24] sm:$0xf]
  %v32 = vld [vmem:[%s1 + $0x28] sm:$0xf]
  %v33 = vld [vmem:[%s1 + $0x2c] sm:$0xf]
  %v34 = vld [vmem:[%s1 + $0x30] sm:$0xf]
  %v35 = vld [vmem:[%s1 + $0x34] sm:$0xf]
  %v36 = vld [vmem:[%s1 + $0x38] sm:$0xf]
  %v37 = vld [vmem:[%s1 + $0x3c] sm:$0xf]
  %v54 = vunpack.c.l.b16 %v22
  %v55 = vunpack.c.l.b16 %v23
  %v56 = vunpack.c.l.b16 %v24
  %v57 = vunpack.c.l.b16 %v25
  %v58 = vunpack.c.l.b16 %v26
  %v59 = vunpack.c.l.b16 %v27
  %v60 = vunpack.c.l.b16 %v28
  %v61 = vunpack.c.l.b16 %v29
  %v62 = vunpack.c.l.b16 %v30
  %v63 = vunpack.c.l.b16 %v31
  %v64 = vunpack.c.l.b16 %v32
  %v65 = vunpack.c.l.b16 %v33
  %v66 = vunpack.c.l.b16 %v34
  %v67 = vunpack.c.l.b16 %v35
  %v68 = vunpack.c.l.b16 %v36
  %v69 = vunpack.c.l.b16 %v37
  %v70 = vpack.c.b16 %v55, %v54
  %v71 = vpack.c.b16 %v57, %v56
  %v72 = vpack.c.b16 %v59, %v58
  %v73 = vpack.c.b16 %v61, %v60
  %v74 = vpack.c.b16 %v63, %v62
  %v75 = vpack.c.b16 %v65, %v64
  %v76 = vpack.c.b16 %v67, %v66
  %v77 = vpack.c.b16 %v69, %v68
  %86 = vmatprep.subr.bf16.mxu0 0
  %87 = vmatpush1.bf16.msra.mxu0 %v77
  %88 = vmatprep.subr.bf16.mxu0 0
  %89 = vmatpush1.bf16.msra.mxu0 %v76
  %90 = vmatprep.subr.bf16.mxu0 0
  %91 = vmatpush1.bf16.msra.mxu0 %v75
  %92 = vmatprep.subr.bf16.mxu0 0
  %93 = vmatpush1.bf16.msra.mxu0 %v74
  %94 = vmatprep.subr.bf16.mxu0 0
  %95 = vmatpush1.bf16.msra.mxu0 %v73
  %96 = vmatprep.subr.bf16.mxu0 0
  %97 = vmatpush1.bf16.msra.mxu0 %v72
  %98 = vmatprep.subr.bf16.mxu0 0
  %99 = vmatpush1.bf16.msra.mxu0 %v71
  %100 = vmatprep.subr.bf16.mxu0 0
  %101 = vmatpush1.bf16.msra.mxu0 %v70
  %102 = vmatprep.subr.bf16.mxu0 0
  %103 = vmatpush2.bf16.msra.mxu0 0
  %104 = vmatprep.subr.bf16.mxu0 0
  %105 = vmatpush2.bf16.msra.mxu0 0
  %106 = vmatprep.subr.bf16.mxu0 0
  %107 = vmatpush2.bf16.msra.mxu0 0
  %108 = vmatprep.subr.bf16.mxu0 0
  %109 = vmatpush2.bf16.msra.mxu0 0
  %110 = vmatprep.subr.bf16.mxu0 0
  %111 = vmatpush2.bf16.msra.mxu0 0
  %112 = vmatprep.subr.bf16.mxu0 0
  %113 = vmatpush2.bf16.msra.mxu0 0
  %114 = vmatprep.subr.bf16.mxu0 0
  %115 = vmatpush2.bf16.msra.mxu0 0
  %116 = vmatprep.subr.bf16.mxu0 0
  %117 = vmatpush2.bf16.msra.mxu0 0
  %118 = vmatprep.mubr.bf16.mxu0 0
  %119 = vmatmul.mubr.bf16.gmra.mxu0 %v21
  %v120 = vpop.f32.mrf.mxu0
  %v121 = vadd.f32 0.0, %v120
  %v122 = vpop.f32.mrf.mxu0
  %v123 = vpop.f32.mrf.mxu0
  %v124 = vpop.f32.mrf.mxu0
  %125 = vdwg.mxu0
  %v126 = vadd.f32 %v20, %v121
  %127 = vst [vmem:[#allocation2] sm:$0xff] %v126
  // Predicated region
  $region18: #{resnet_forward.37} parent=0 // pred_check
    %p128 = pneg %p15
  $region19: #{resnet_forward.37} parent=0 // pred_check_branch
    %130 = sbr.rel (%p128) target = $region21
  $region20: #{resnet_forward.37} parent=0 // pred_region
    %v131 = vld [vmem:[#allocation2] sm:$0xff]
    %v132 = vld [vmem:[%s2] sm:$0x1]
    %v134 = vlaneseq
    %v135 = vshrl.u32 %v134, 7
    %v136 = vsub.s32 0, %v135
    %v137 = vrot.slane %v132, %v136
    %v139 = vadd.f32 %v131, %v137
    %vm140 = vcmask 15360
    %141 = vst.msk [vmem:[%s3] sm:$0xff] %vm140, %v139
  $region21: #{resnet_forward.37} parent=0 // pred_fallthru
    _
  // Predicated region
  $region22: #{resnet_forward.37} parent=0 // pred_check
    _
  $region23: #{resnet_forward.37} parent=0 // pred_check_branch
    %143 = sbr.rel (0) target = $region25
  $region24: #{resnet_forward.37} parent=0 // pred_region
    _
  $region25: #{resnet_forward.37} parent=0 // pred_fallthru
    _
  // Predicated region
  $region26: #{resnet_forward.37} parent=0 // pred_check
    _
  $region27: #{resnet_forward.37} parent=0 // pred_check_branch
    %145 = sbr.rel (0) target = $region29
  $region28: #{resnet_forward.37} parent=0 // pred_region
    _
  $region29: #{resnet_forward.37} parent=0 // pred_fallthru
    _

</llo_original>
